<compile_context>
chip_gen: v7x
topology: tpu7x:2x2x1
jax: 0.10.0
libtpu: 0.0.40
codegen_flags: <defaults>
</compile_context>

<pallas_src>
import functools

import jax
import jax.numpy as jnp
from jax.experimental import pallas as pl
from jax.experimental.pallas import tpu as pltpu

_LANE = 128
_SUBLANE = 8
MAX_TL = 8192                    # max flattened-batch lanes per grid step
_FUSE_MAX_ROWS = 512             # fuse gather in-kernel only for tables <= this many (padded) rows
_FUSE_VMEM_BUDGET = 6 * 1024 * 1024   # per-step live-VMEM budget for the fused path


def _round_up(x, m):
    return ((x + m - 1) // m) * m


def _score(h, t, r, w, p):
    """TransH score on lane-dense (D, TL) f32 tiles; reductions over sublanes."""
    eps2 = jnp.float32(1e-24)    # == F.normalize eps (1e-12) squared

    def l2_normalize(x):
        ss = jnp.sum(x * x, axis=0, keepdims=True)         # (1, TL)
        return x * jax.lax.rsqrt(jnp.maximum(ss, eps2))    # EUP rsqrt + VPU mul

    h = l2_normalize(h)
    t = l2_normalize(t)
    r = l2_normalize(r)
    w = l2_normalize(w)

    # t_proj - h_proj == d0 - (w . d0) w  with d0 = t - h  (saves one projection)
    d0 = t - h
    diff = d0 - jnp.sum(w * d0, axis=0, keepdims=True) * w - r

    if p == 1:
        return jnp.sum(jnp.abs(diff), axis=0, keepdims=True)
    if p == 2:
        return jnp.sqrt(jnp.sum(diff * diff, axis=0, keepdims=True))
    return jnp.sum(jnp.abs(diff) ** p, axis=0, keepdims=True) ** (1.0 / p)


def _transh_fused_kernel(hidx_ref, tidx_ref, ridx_ref,
                         ent_t_ref, rel_t_ref, proj_t_ref, o_ref, *, p):
    """Gather fused in-kernel via one-hot MXU matmuls; tables VMEM-resident."""
    ent_t = ent_t_ref[...]      # (D_pad, NE_pad) f32
    rel_t = rel_t_ref[...]      # (D_pad, NR_pad) f32
    proj_t = proj_t_ref[...]    # (D_pad, NR_pad) f32

    def onehot(idx_row, n_rows):
        # idx_row: (1, TL) int32 -> (n_rows, TL) f32 one-hot.
        iota = jax.lax.broadcasted_iota(jnp.int32, (n_rows, idx_row.shape[1]), 0)
        return (iota == idx_row).astype(jnp.float32)

    oh_h = onehot(hidx_ref[...], ent_t.shape[1])
    oh_t = onehot(tidx_ref[...], ent_t.shape[1])
    oh_r = onehot(ridx_ref[...], rel_t.shape[1])

    # One-hot selection is exact under high-precision matmul.
    hi = jax.lax.Precision.HIGHEST
    h = jnp.dot(ent_t, oh_h, preferred_element_type=jnp.float32, precision=hi)
    t = jnp.dot(ent_t, oh_t, preferred_element_type=jnp.float32, precision=hi)
    r = jnp.dot(rel_t, oh_r, preferred_element_type=jnp.float32, precision=hi)
    w = jnp.dot(proj_t, oh_r, preferred_element_type=jnp.float32, precision=hi)

    o_ref[...] = _score(h, t, r, w, p)                      # (1, TL)


def _transh_tile_kernel(h_ref, t_ref, r_ref, w_ref, o_ref, *, p):
    # Fallback: pre-gathered lane-dense (D, TL) tiles.
    o_ref[...] = _score(h_ref[...], t_ref[...], r_ref[...], w_ref[...], p)


def _choose_tile(n, cap):
    # Aim for >= 2 grid steps (v7x megacore) while keeping large lane-dense tiles.
    half = _round_up(-(-n // 2), _LANE)
    return max(_LANE, min(half, cap))


def transh_forward(ent_embed, rel_embed, proj_rel_embed, head, tail, rela, p=2):
    """Full TransHModule.forward: index tensors -> score tensor of same shape."""
    shape = head.shape
    h_idx = head.reshape(-1).astype(jnp.int32)
    t_idx = tail.reshape(-1).astype(jnp.int32)
    r_idx = rela.reshape(-1).astype(jnp.int32)
    N = h_idx.shape[0]

    n_ent, D = ent_embed.shape
    n_rel = rel_embed.shape[0]
    NE_pad = _round_up(n_ent, _LANE)
    NR_pad = _round_up(n_rel, _LANE)
    D_pad = _round_up(D, _SUBLANE)

    fused = (NE_pad <= _FUSE_MAX_ROWS) and (NR_pad <= _FUSE_MAX_ROWS)

    if fused:
        # Rough live-VMEM per lane: 2 entity + 1 relation one-hot columns plus
        # gathered tiles / temps (~6 x D_pad rows), all f32.
        per_lane = 4 * (2 * NE_pad + NR_pad + 6 * D_pad)
        tl_cap = max(_LANE, (_FUSE_VMEM_BUDGET // per_lane) // _LANE * _LANE)
    else:
        tl_cap = MAX_TL

    TL = _choose_tile(N, tl_cap)
    Np = _round_up(N, TL)
    pad = Np - N
    if pad:
        # Pad only the cheap int32 index vectors (index 0 is always valid);
        # garbage lanes are sliced off after the kernel.
        h_idx = jnp.pad(h_idx, (0, pad))
        t_idx = jnp.pad(t_idx, (0, pad))
        r_idx = jnp.pad(r_idx, (0, pad))

    grid = (Np // TL,)
    out_spec = pl.BlockSpec((1, TL), lambda i: (0, i))
    params = pltpu.CompilerParams(dimension_semantics=("parallel",))

    if fused:
        def pad_table_t(tbl, n_pad):
            tbl_t = tbl.T                                   # (D, n) — tiny one-time copy
            return jnp.pad(tbl_t, ((0, D_pad - tbl_t.shape[0]),
                                   (0, n_pad - tbl_t.shape[1])))

        ent_t = pad_table_t(ent_embed, NE_pad)
        rel_t = pad_table_t(rel_embed, NR_pad)
        proj_t = pad_table_t(proj_rel_embed, NR_pad)

        idx_spec = pl.BlockSpec((1, TL), lambda i: (0, i))
        ent_spec = pl.BlockSpec((D_pad, NE_pad), lambda i: (0, 0))   # VMEM-resident, DMA'd once
        rel_spec = pl.BlockSpec((D_pad, NR_pad), lambda i: (0, 0))

        out = pl.pallas_call(
            functools.partial(_transh_fused_kernel, p=p),
            out_shape=jax.ShapeDtypeStruct((1, Np), jnp.float32),
            grid=grid,
            in_specs=[idx_spec, idx_spec, idx_spec, ent_spec, rel_spec, rel_spec],
            out_specs=out_spec,
            compiler_params=params,
        )(h_idx.reshape(1, Np), t_idx.reshape(1, Np), r_idx.reshape(1, Np),
          ent_t, rel_t, proj_t)
    else:
        # Large tables: gather in the wrapper, but from pre-transposed (D, n)
        # tables so the gathered arrays come out in the lane-dense (D, Np)
        # layout with no separate big-array transpose pass.
        ent_T = ent_embed.T
        h_e = jnp.take(ent_T, h_idx, axis=1)
        t_e = jnp.take(ent_T, t_idx, axis=1)
        r_e = jnp.take(rel_embed.T, r_idx, axis=1)
        w_e = jnp.take(proj_rel_embed.T, r_idx, axis=1)

        in_spec = pl.BlockSpec((D, TL), lambda i: (0, i))
        out = pl.pallas_call(
            functools.partial(_transh_tile_kernel, p=p),
            out_shape=jax.ShapeDtypeStruct((1, Np), jnp.float32),
            grid=grid,
            in_specs=[in_spec, in_spec, in_spec, in_spec],
            out_specs=out_spec,
            compiler_params=params,
        )(h_e, t_e, r_e, w_e)

    return out[0, :N].reshape(shape)


def transh_reference(ent_embed, rel_embed, proj_rel_embed, head, tail, rela, p=2):
    """Pure-JAX mirror of TransHModule.forward for correctness checking."""
    shape = head.shape
    h = ent_embed[head.reshape(-1)]
    t = ent_embed[tail.reshape(-1)]
    r = rel_embed[rela.reshape(-1)]
    w = proj_rel_embed[rela.reshape(-1)]

    def norm(x):
        n = jnp.sqrt(jnp.sum(x * x, axis=-1, keepdims=True))
        return x / jnp.maximum(n, 1e-12)

    h, t, r, w = norm(h), norm(t), norm(r), norm(w)
    h_proj = h - jnp.sum(w * h, axis=-1, keepdims=True) * w
    t_proj = t - jnp.sum(w * t, axis=-1, keepdims=True) * w
    d = t_proj - h_proj - r
    if p == 1:
        s = jnp.sum(jnp.abs(d), axis=-1)
    elif p == 2:
        s = jnp.sqrt(jnp.sum(d * d, axis=-1))
    else:
        s = jnp.sum(jnp.abs(d) ** p, axis=-1) ** (1.0 / p)
    return s.reshape(shape)


if __name__ == "__main__":
    # Deterministic parameter init (xavier_uniform-style bounds) and small inputs.
    n_ent, n_rel, hidden_dim = 50, 10, 32
    batch, num_cand = 2, 8
    p_norm = 2  # args.p

    key = jax.random.PRNGKey(0)
    k_ent, k_rel, k_proj, k_h, k_t, k_r = jax.random.split(key, 6)

    b_ent = (6.0 / (n_ent + hidden_dim)) ** 0.5
    b_rel = (6.0 / (n_rel + hidden_dim)) ** 0.5
    ent_embed = jax.random.uniform(k_ent, (n_ent, hidden_dim), jnp.float32,
                                   minval=-b_ent, maxval=b_ent)
    rel_embed = jax.random.uniform(k_rel, (n_rel, hidden_dim), jnp.float32,
                                   minval=-b_rel, maxval=b_rel)
    proj_rel_embed = jax.random.uniform(k_proj, (n_rel, hidden_dim), jnp.float32,
                                        minval=-b_rel, maxval=b_rel)

    head = jax.random.randint(k_h, (batch, num_cand), 0, n_ent)
    tail = jax.random.randint(k_t, (batch, num_cand), 0, n_ent)
    rela = jax.random.randint(k_r, (batch, num_cand), 0, n_rel)

    out = transh_forward(ent_embed, rel_embed, proj_rel_embed,
                         head, tail, rela, p=p_norm)
    out = jax.block_until_ready(out)

    ref = transh_reference(ent_embed, rel_embed, proj_rel_embed,
                           head, tail, rela, p=p_norm)

    assert out.shape == head.shape, (out.shape, head.shape)
    assert out.dtype == jnp.float32
    assert jnp.allclose(out, ref, atol=1e-4, rtol=1e-4), (
        float(jnp.max(jnp.abs(out - ref))))
    print("KERNEL_OK")
</pallas_src>

<mosaic_0001>
module attributes {stable_mosaic.version = 11 : i64} {
  func.func @_transh_fused_kernel(%arg0: i32, %arg1: memref<1x128xi32, #tpu.memory_space<vmem>>, %arg2: memref<1x128xi32, #tpu.memory_space<vmem>>, %arg3: memref<1x128xi32, #tpu.memory_space<vmem>>, %arg4: memref<32x128xf32, #tpu.memory_space<vmem>>, %arg5: memref<32x128xf32, #tpu.memory_space<vmem>>, %arg6: memref<32x128xf32, #tpu.memory_space<vmem>>, %arg7: memref<1x128xf32, #tpu.memory_space<vmem>>) attributes {dimension_semantics = [#tpu.dimension_semantics<parallel>], iteration_bounds = array<i64: 1>, scalar_prefetch = 0 : i64, scratch_operands = 0 : i64, tpu.core_type = #tpu.core_type<tc>, window_params = [{transform_indices = @transform_0, window_bounds = array<i64: 1, 128>}, {transform_indices = @transform_1, window_bounds = array<i64: 1, 128>}, {transform_indices = @transform_2, window_bounds = array<i64: 1, 128>}, {pipeline_mode = #tpu.pipeline_mode<synchronous>, transform_indices = @transform_3, window_bounds = array<i64: 32, 128>}, {pipeline_mode = #tpu.pipeline_mode<synchronous>, transform_indices = @transform_4, window_bounds = array<i64: 32, 128>}, {pipeline_mode = #tpu.pipeline_mode<synchronous>, transform_indices = @transform_5, window_bounds = array<i64: 32, 128>}, {transform_indices = @transform_6, window_bounds = array<i64: 1, 128>}]} {
    %c0 = arith.constant 0 : index
    %c0_0 = arith.constant 0 : index
    %0 = vector.load %arg4[%c0, %c0_0] : memref<32x128xf32, #tpu.memory_space<vmem>>, vector<32x128xf32>
    %c0_1 = arith.constant 0 : index
    %c0_2 = arith.constant 0 : index
    %1 = vector.load %arg5[%c0_1, %c0_2] : memref<32x128xf32, #tpu.memory_space<vmem>>, vector<32x128xf32>
    %c0_3 = arith.constant 0 : index
    %c0_4 = arith.constant 0 : index
    %2 = vector.load %arg6[%c0_3, %c0_4] : memref<32x128xf32, #tpu.memory_space<vmem>>, vector<32x128xf32>
    %c0_5 = arith.constant 0 : index
    %c0_6 = arith.constant 0 : index
    %3 = vector.load %arg1[%c0_5, %c0_6] : memref<1x128xi32, #tpu.memory_space<vmem>>, vector<1x128xi32>
    %4 = tpu.iota {dimensions = array<i32: 0>} : vector<128x128xi32>
    %5 = vector.broadcast %3 : vector<1x128xi32> to vector<128x128xi32>
    %6 = arith.cmpi eq, %4, %5 : vector<128x128xi32>
    %7 = arith.extui %6 : vector<128x128xi1> to vector<128x128xi32>
    %8 = arith.sitofp %7 : vector<128x128xi32> to vector<128x128xf32>
    %c0_7 = arith.constant 0 : index
    %c0_8 = arith.constant 0 : index
    %9 = vector.load %arg2[%c0_7, %c0_8] : memref<1x128xi32, #tpu.memory_space<vmem>>, vector<1x128xi32>
    %10 = tpu.iota {dimensions = array<i32: 0>} : vector<128x128xi32>
    %11 = vector.broadcast %9 : vector<1x128xi32> to vector<128x128xi32>
    %12 = arith.cmpi eq, %10, %11 : vector<128x128xi32>
    %13 = arith.extui %12 : vector<128x128xi1> to vector<128x128xi32>
    %14 = arith.sitofp %13 : vector<128x128xi32> to vector<128x128xf32>
    %c0_9 = arith.constant 0 : index
    %c0_10 = arith.constant 0 : index
    %15 = vector.load %arg3[%c0_9, %c0_10] : memref<1x128xi32, #tpu.memory_space<vmem>>, vector<1x128xi32>
    %16 = tpu.iota {dimensions = array<i32: 0>} : vector<128x128xi32>
    %17 = vector.broadcast %15 : vector<1x128xi32> to vector<128x128xi32>
    %18 = arith.cmpi eq, %16, %17 : vector<128x128xi32>
    %19 = arith.extui %18 : vector<128x128xi1> to vector<128x128xi32>
    %20 = arith.sitofp %19 : vector<128x128xi32> to vector<128x128xf32>
    %cst = arith.constant dense<0.000000e+00> : vector<32x128xf32>
    %21 = tpu.matmul %0, %8, %cst {dimension_numbers = #tpu.dot_dimension_numbers<[1], [0], [0], [1], [0, 0, 1, 1], [], []>, precision = #tpu.contract_precision<fp32>} : vector<32x128xf32>, vector<128x128xf32>, vector<32x128xf32> -> vector<32x128xf32>
    %cst_11 = arith.constant dense<0.000000e+00> : vector<32x128xf32>
    %22 = tpu.matmul %0, %14, %cst_11 {dimension_numbers = #tpu.dot_dimension_numbers<[1], [0], [0], [1], [0, 0, 1, 1], [], []>, precision = #tpu.contract_precision<fp32>} : vector<32x128xf32>, vector<128x128xf32>, vector<32x128xf32> -> vector<32x128xf32>
    %cst_12 = arith.constant dense<0.000000e+00> : vector<32x128xf32>
    %23 = tpu.matmul %1, %20, %cst_12 {dimension_numbers = #tpu.dot_dimension_numbers<[1], [0], [0], [1], [0, 0, 1, 1], [], []>, precision = #tpu.contract_precision<fp32>} : vector<32x128xf32>, vector<128x128xf32>, vector<32x128xf32> -> vector<32x128xf32>
    %cst_13 = arith.constant dense<0.000000e+00> : vector<32x128xf32>
    %24 = tpu.matmul %2, %20, %cst_13 {dimension_numbers = #tpu.dot_dimension_numbers<[1], [0], [0], [1], [0, 0, 1, 1], [], []>, precision = #tpu.contract_precision<fp32>} : vector<32x128xf32>, vector<128x128xf32>, vector<32x128xf32> -> vector<32x128xf32>
    %25 = arith.mulf %21, %21 : vector<32x128xf32>
    %cst_14 = arith.constant dense<0.000000e+00> : vector<128xf32>
    %26 = vector.multi_reduction <add>, %25, %cst_14 [0] : vector<32x128xf32> to vector<128xf32>
    %27 = vector.shape_cast %26 : vector<128xf32> to vector<1x128xf32>
    %cst_15 = arith.constant 1.000000e-24 : f32
    %28 = vector.broadcast %cst_15 : f32 to vector<1x128xf32>
    %29 = arith.maximumf %27, %28 : vector<1x128xf32>
    %30 = math.rsqrt %29 : vector<1x128xf32>
    %31 = vector.broadcast %30 : vector<1x128xf32> to vector<32x128xf32>
    %32 = arith.mulf %21, %31 : vector<32x128xf32>
    %33 = arith.mulf %22, %22 : vector<32x128xf32>
    %cst_16 = arith.constant dense<0.000000e+00> : vector<128xf32>
    %34 = vector.multi_reduction <add>, %33, %cst_16 [0] : vector<32x128xf32> to vector<128xf32>
    %35 = vector.shape_cast %34 : vector<128xf32> to vector<1x128xf32>
    %cst_17 = arith.constant 1.000000e-24 : f32
    %36 = vector.broadcast %cst_17 : f32 to vector<1x128xf32>
    %37 = arith.maximumf %35, %36 : vector<1x128xf32>
    %38 = math.rsqrt %37 : vector<1x128xf32>
    %39 = vector.broadcast %38 : vector<1x128xf32> to vector<32x128xf32>
    %40 = arith.mulf %22, %39 : vector<32x128xf32>
    %41 = arith.mulf %23, %23 : vector<32x128xf32>
    %cst_18 = arith.constant dense<0.000000e+00> : vector<128xf32>
    %42 = vector.multi_reduction <add>, %41, %cst_18 [0] : vector<32x128xf32> to vector<128xf32>
    %43 = vector.shape_cast %42 : vector<128xf32> to vector<1x128xf32>
    %cst_19 = arith.constant 1.000000e-24 : f32
    %44 = vector.broadcast %cst_19 : f32 to vector<1x128xf32>
    %45 = arith.maximumf %43, %44 : vector<1x128xf32>
    %46 = math.rsqrt %45 : vector<1x128xf32>
    %47 = vector.broadcast %46 : vector<1x128xf32> to vector<32x128xf32>
    %48 = arith.mulf %23, %47 : vector<32x128xf32>
    %49 = arith.mulf %24, %24 : vector<32x128xf32>
    %cst_20 = arith.constant dense<0.000000e+00> : vector<128xf32>
    %50 = vector.multi_reduction <add>, %49, %cst_20 [0] : vector<32x128xf32> to vector<128xf32>
    %51 = vector.shape_cast %50 : vector<128xf32> to vector<1x128xf32>
    %cst_21 = arith.constant 1.000000e-24 : f32
    %52 = vector.broadcast %cst_21 : f32 to vector<1x128xf32>
    %53 = arith.maximumf %51, %52 : vector<1x128xf32>
    %54 = math.rsqrt %53 : vector<1x128xf32>
    %55 = vector.broadcast %54 : vector<1x128xf32> to vector<32x128xf32>
    %56 = arith.mulf %24, %55 : vector<32x128xf32>
    %57 = arith.subf %40, %32 : vector<32x128xf32>
    %58 = arith.mulf %56, %57 : vector<32x128xf32>
    %cst_22 = arith.constant dense<0.000000e+00> : vector<128xf32>
    %59 = vector.multi_reduction <add>, %58, %cst_22 [0] : vector<32x128xf32> to vector<128xf32>
    %60 = vector.shape_cast %59 : vector<128xf32> to vector<1x128xf32>
    %61 = vector.broadcast %60 : vector<1x128xf32> to vector<32x128xf32>
    %62 = arith.mulf %61, %56 : vector<32x128xf32>
    %63 = arith.subf %57, %62 : vector<32x128xf32>
    %64 = arith.subf %63, %48 : vector<32x128xf32>
    %65 = arith.mulf %64, %64 : vector<32x128xf32>
    %cst_23 = arith.constant dense<0.000000e+00> : vector<128xf32>
    %66 = vector.multi_reduction <add>, %65, %cst_23 [0] : vector<32x128xf32> to vector<128xf32>
    %67 = vector.shape_cast %66 : vector<128xf32> to vector<1x128xf32>
    %68 = math.sqrt %67 : vector<1x128xf32>
    %c0_24 = arith.constant 0 : index
    %c0_25 = arith.constant 0 : index
    %69 = vector.load %arg7[%c0_24, %c0_25] : memref<1x128xf32, #tpu.memory_space<vmem>>, vector<1x128xf32>
    tpu.vector_store %arg7[%c0_24, %c0_25], %68 {strides = array<i32>} : memref<1x128xf32, #tpu.memory_space<vmem>>, vector<1x128xf32>,
    return
  }
  func.func @transform_0(%arg0: i32) -> (i32, i32) {
    %c0_i32 = arith.constant 0 : i32
    %c0_i32_0 = arith.constant 0 : i32
    return %c0_i32, %arg0 : i32, i32
  }
  func.func @transform_1(%arg0: i32) -> (i32, i32) {
    %c0_i32 = arith.constant 0 : i32
    %c0_i32_0 = arith.constant 0 : i32
    return %c0_i32, %arg0 : i32, i32
  }
  func.func @transform_2(%arg0: i32) -> (i32, i32) {
    %c0_i32 = arith.constant 0 : i32
    %c0_i32_0 = arith.constant 0 : i32
    return %c0_i32, %arg0 : i32, i32
  }
  func.func @transform_3(%arg0: i32) -> (i32, i32) {
    %c0_i32 = arith.constant 0 : i32
    %c0_i32_0 = arith.constant 0 : i32
    %c0_i32_1 = arith.constant 0 : i32
    return %c0_i32, %c0_i32_0 : i32, i32
  }
  func.func @transform_4(%arg0: i32) -> (i32, i32) {
    %c0_i32 = arith.constant 0 : i32
    %c0_i32_0 = arith.constant 0 : i32
    %c0_i32_1 = arith.constant 0 : i32
    return %c0_i32, %c0_i32_0 : i32, i32
  }
  func.func @transform_5(%arg0: i32) -> (i32, i32) {
    %c0_i32 = arith.constant 0 : i32
    %c0_i32_0 = arith.constant 0 : i32
    %c0_i32_1 = arith.constant 0 : i32
    return %c0_i32, %c0_i32_0 : i32, i32
  }
  func.func @transform_6(%arg0: i32) -> (i32, i32) {
    %c0_i32 = arith.constant 0 : i32
    %c0_i32_0 = arith.constant 0 : i32
    return %c0_i32, %arg0 : i32, i32
  }
}

</mosaic_0001>

<llo_original>
// kernel: tpu_custom_call.1
$region0: #{tpu_custom_call.1}
  #allocation0 [shape = 'u32[]', space=smem, size = 0x4, offset = 0x4, fixed_abs, tag = 'smem constant byte address 0x4 - core index']
  #allocation1 [shape = 'u32[144,128]{1,0:T(1,128)}', space=vmem, size = 0x12000, scoped, tag = 'internal scratch']
  %s0 = inlined_call_operand.hbm [shape: s32[1,128], index: 0, kind: input, shape index: {}]
  %s1 = inlined_call_operand.vmem [shape: s32[1,128], index: 1, kind: input, shape index: {}]
  %s2 = inlined_call_operand.vmem [shape: s32[1,128], index: 2, kind: input, shape index: {}]
  %s3 = inlined_call_operand.hbm [shape: f32[32,128], index: 3, kind: input, shape index: {}]
  %s4 = inlined_call_operand.hbm [shape: f32[32,128], index: 4, kind: input, shape index: {}]
  %s5 = inlined_call_operand.hbm [shape: f32[32,128], index: 5, kind: input, shape index: {}]
  %s6 = inlined_call_operand.hbm [shape: f32[1,128], index: 6, kind: output, shape index: {}]
  %s7 = sld [smem:[#allocation0]]
  $region50: #{tpu_custom_call.1} parent=0
    _
  %s9 = ssub.s32 1, %s7
  %s10 = scalar_select 0, %s9, %s7
  $region1: #{tpu_custom_call.1} parent=0
    #allocation2 [shape = 'u8[512]{0}', space=vmem, size = 0x400, scoped, tag = 'input window, operand 0, single buffered']
    #allocation3 [shape = 's32[1]{0}', space=sflag, size = 0x4, scoped, tag = 'scoped memory for tpu_custom_call.1']
    #allocation4 [shape = 's32[1]{0}', space=sflag, size = 0x4, scoped, tag = 'scoped memory for tpu_custom_call.1']
    #allocation5 [shape = 'u8[16384]{0}', space=vmem, size = 0x4000, scoped, tag = 'input window, operand 3, single buffered']
    #allocation6 [shape = 's32[1]{0}', space=sflag, size = 0x4, scoped, tag = 'scoped memory for tpu_custom_call.1']
    #allocation7 [shape = 'u8[16384]{0}', space=vmem, size = 0x4000, scoped, tag = 'input window, operand 4, single buffered']
    #allocation8 [shape = 'u8[16384]{0}', space=vmem, size = 0x4000, scoped, tag = 'input window, operand 5, single buffered']
    #allocation9 [shape = 's32[1]{0}', space=sflag, size = 0x4, scoped, tag = 'scoped memory for tpu_custom_call.1']
    #allocation10 [shape = 'u8[512]{0}', space=vmem, size = 0x400, scoped, tag = 'output window, operand 0, single buffered']
    %11 = vsyncpa [#allocation3], 0
    %12 = vsyncpa [#allocation6], 0
    %13 = vsyncpa [#allocation9], 0
    %14 = vsyncpa [#allocation4], 0
    // Predicated region
    $region2: #{tpu_custom_call.1} parent=1 // pred_check
      _
    $region3: #{tpu_custom_call.1} parent=1 // pred_check_branch
      %16 = sbr.rel (0) target = $region5
    $region4: #{tpu_custom_call.1} parent=1 // pred_region
      %s18 = ssub.s32 16, 16
      %19 = vsyncadd [#allocation3], %s18
      %s21 = sshll.u32 [#allocation2], 4
      %s22 = int_to_ptr.vmem [resolvable:$true] %s21
      %24 = dma.hbm_to_vmem [thread:$0]  %s0, 16, %s22, [#allocation3]
    $region5: #{tpu_custom_call.1} parent=1 // pred_fallthru
      _
    // Predicated region
    $region6: #{tpu_custom_call.1} parent=1 // pred_check
      _
    $region7: #{tpu_custom_call.1} parent=1 // pred_check_branch
      %26 = sbr.rel (0) target = $region9
    $region8: #{tpu_custom_call.1} parent=1 // pred_region
      _
    $region9: #{tpu_custom_call.1} parent=1 // pred_fallthru
      _
    // Predicated region
    $region10: #{tpu_custom_call.1} parent=1 // pred_check
      _
    $region11: #{tpu_custom_call.1} parent=1 // pred_check_branch
      %28 = sbr.rel (0) target = $region13
    $region12: #{tpu_custom_call.1} parent=1 // pred_region
      _
    $region13: #{tpu_custom_call.1} parent=1 // pred_fallthru
      _
    // Predicated region
    $region14: #{tpu_custom_call.1} parent=1 // pred_check
      _
    $region15: #{tpu_custom_call.1} parent=1 // pred_check_branch
      %30 = sbr.rel (0) target = $region17
    $region16: #{tpu_custom_call.1} parent=1 // pred_region
      %s32 = ssub.s32 512, 512
      %33 = vsyncadd [#allocation6], %s32
      %s34 = sshll.u32 [#allocation5], 4
      %s35 = int_to_ptr.vmem [resolvable:$true] %s34
      %40 = dma.hbm_to_vmem [thread:$0]  %s3, 512, %s35, [#allocation6], 128, 128, 8
    $region17: #{tpu_custom_call.1} parent=1 // pred_fallthru
      _
    // Predicated region
    $region18: #{tpu_custom_call.1} parent=1 // pred_check
      _
    $region19: #{tpu_custom_call.1} parent=1 // pred_check_branch
      %42 = sbr.rel (0) target = $region21
    $region20: #{tpu_custom_call.1} parent=1 // pred_region
      %s44 = ssub.s32 512, 512
      %45 = vsyncadd [#allocation6], %s44
      %s46 = sshll.u32 [#allocation7], 4
      %s47 = int_to_ptr.vmem [resolvable:$true] %s46
      %52 = dma.hbm_to_vmem [thread:$0]  %s4, 512, %s47, [#allocation6], 128, 128, 8
    $region21: #{tpu_custom_call.1} parent=1 // pred_fallthru
      _
    // Predicated region
    $region22: #{tpu_custom_call.1} parent=1 // pred_check
      _
    $region23: #{tpu_custom_call.1} parent=1 // pred_check_branch
      %54 = sbr.rel (0) target = $region25
    $region24: #{tpu_custom_call.1} parent=1 // pred_region
      %s56 = ssub.s32 512, 512
      %57 = vsyncadd [#allocation9], %s56
      %s58 = sshll.u32 [#allocation8], 4
      %s59 = int_to_ptr.vmem [resolvable:$true] %s58
      %64 = dma.hbm_to_vmem [thread:$0]  %s5, 512, %s59, [#allocation9], 128, 128, 8
    $region25: #{tpu_custom_call.1} parent=1 // pred_fallthru
      _
    // Predicated region
    $region26: #{tpu_custom_call.1} parent=1 // pred_check
      _
    $region27: #{tpu_custom_call.1} parent=1 // pred_check_branch
      %66 = sbr.rel (0) target = $region29
    $region28: #{tpu_custom_call.1} parent=1 // pred_region
      %67 = dma.done [#allocation3], 16
    $region29: #{tpu_custom_call.1} parent=1 // pred_fallthru
      _
    // Predicated region
    $region30: #{tpu_custom_call.1} parent=1 // pred_check
      _
    $region31: #{tpu_custom_call.1} parent=1 // pred_check_branch
      %69 = sbr.rel (0) target = $region33
    $region32: #{tpu_custom_call.1} parent=1 // pred_region
      %70 = dma.done [#allocation6], 512
    $region33: #{tpu_custom_call.1} parent=1 // pred_fallthru
      _
    // Predicated region
    $region34: #{tpu_custom_call.1} parent=1 // pred_check
      _
    $region35: #{tpu_custom_call.1} parent=1 // pred_check_branch
      %72 = sbr.rel (0) target = $region37
    $region36: #{tpu_custom_call.1} parent=1 // pred_region
      %73 = dma.done [#allocation6], 512
    $region37: #{tpu_custom_call.1} parent=1 // pred_fallthru
      _
    // Predicated region
    $region38: #{tpu_custom_call.1} parent=1 // pred_check
      _
    $region39: #{tpu_custom_call.1} parent=1 // pred_check_branch
      %75 = sbr.rel (0) target = $region41
    $region40: #{tpu_custom_call.1} parent=1 // pred_region
      %76 = dma.done [#allocation9], 512
    $region41: #{tpu_custom_call.1} parent=1 // pred_fallthru
      _
    %v77 = vld [vmem:[#allocation5] sm:$0xff]
    %v78 = vld [vmem:[#allocation5 + $0x8] sm:$0xff]
    %v79 = vld [vmem:[#allocation5 + $0x10] sm:$0xff]
    %v80 = vld [vmem:[#allocation5 + $0x18] sm:$0xff]
    %v81 = vld [vmem:[#allocation7] sm:$0xff]
    %v82 = vld [vmem:[#allocation7 + $0x8] sm:$0xff]
    %v83 = vld [vmem:[#allocation7 + $0x10] sm:$0xff]
    %v84 = vld [vmem:[#allocation7 + $0x18] sm:$0xff]
    %v85 = vld [vmem:[#allocation8] sm:$0xff]
    %v86 = vld [vmem:[#allocation8 + $0x8] sm:$0xff]
    %v87 = vld [vmem:[#allocation8 + $0x10] sm:$0xff]
    %v88 = vld [vmem:[#allocation8 + $0x18] sm:$0xff]
    %v89 = vld [vmem:[#allocation2] sm:$0x1]
    %v90 = vlaneseq
    %v91 = vshrl.u32 %v90, 7
    %v92 = vadd.s32 %v91, 8
    %v93 = vadd.s32 %v91, 16
    %v94 = vadd.s32 %v91, 24
    %v95 = vadd.s32 %v91, 32
    %v96 = vadd.s32 %v91, 40
    %v97 = vadd.s32 %v91, 48
    %v98 = vadd.s32 %v91, 56
    %v99 = vadd.s32 %v91, 64
    %v100 = vadd.s32 %v91, 72
    %v101 = vadd.s32 %v91, 80
    %v102 = vadd.s32 %v91, 88
    %v103 = vadd.s32 %v91, 96
    %v104 = vadd.s32 %v91, 104
    %v105 = vadd.s32 %v91, 112
    %v106 = vadd.s32 %v91, 120
    %v107 = vlaneseq
    %v108 = vshrl.u32 %v107, 7
    %v109 = vsub.s32 0, %v108
    %v110 = vrot.slane %v89, %v109
    %vm111 = vcmp.eq.s32.totalorder %v91, %v110
    %vm112 = vcmp.eq.s32.totalorder %v92, %v110
    %vm113 = vcmp.eq.s32.totalorder %v93, %v110
    %vm114 = vcmp.eq.s32.totalorder %v94, %v110
    %vm115 = vcmp.eq.s32.totalorder %v95, %v110
    %vm116 = vcmp.eq.s32.totalorder %v96, %v110
    %vm117 = vcmp.eq.s32.totalorder %v97, %v110
    %vm118 = vcmp.eq.s32.totalorder %v98, %v110
    %vm119 = vcmp.eq.s32.totalorder %v99, %v110
    %vm120 = vcmp.eq.s32.totalorder %v100, %v110
    %vm121 = vcmp.eq.s32.totalorder %v101, %v110
    %vm122 = vcmp.eq.s32.totalorder %v102, %v110
    %vm123 = vcmp.eq.s32.totalorder %v103, %v110
    %vm124 = vcmp.eq.s32.totalorder %v104, %v110
    %vm125 = vcmp.eq.s32.totalorder %v105, %v110
    %vm126 = vcmp.eq.s32.totalorder %v106, %v110
    %v127 = vsel %vm111, 1, 0
    %v128 = vsel %vm112, 1, 0
    %v129 = vsel %vm113, 1, 0
    %v130 = vsel %vm114, 1, 0
    %v131 = vsel %vm115, 1, 0
    %v132 = vsel %vm116, 1, 0
    %v133 = vsel %vm117, 1, 0
    %v134 = vsel %vm118, 1, 0
    %v135 = vsel %vm119, 1, 0
    %v136 = vsel %vm120, 1, 0
    %v137 = vsel %vm121, 1, 0
    %v138 = vsel %vm122, 1, 0
    %v139 = vsel %vm123, 1, 0
    %v140 = vsel %vm124, 1, 0
    %v141 = vsel %vm125, 1, 0
    %v142 = vsel %vm126, 1, 0
    %v143 = vcvt.s32.f32 %v127
    %v144 = vcvt.s32.f32 %v128
    %v145 = vcvt.s32.f32 %v129
    %v146 = vcvt.s32.f32 %v130
    %v147 = vcvt.s32.f32 %v131
    %v148 = vcvt.s32.f32 %v132
    %v149 = vcvt.s32.f32 %v133
    %v150 = vcvt.s32.f32 %v134
    %v151 = vcvt.s32.f32 %v135
    %v152 = vcvt.s32.f32 %v136
    %v153 = vcvt.s32.f32 %v137
    %v154 = vcvt.s32.f32 %v138
    %v155 = vcvt.s32.f32 %v139
    %v156 = vcvt.s32.f32 %v140
    %v157 = vcvt.s32.f32 %v141
    %v158 = vcvt.s32.f32 %v142
    %v159 = vld [vmem:[%s1] sm:$0x1]
    %v160 = vlaneseq
    %v161 = vshrl.u32 %v160, 7
    %v162 = vsub.s32 0, %v161
    %v163 = vrot.slane %v159, %v162
    %vm164 = vcmp.eq.s32.totalorder %v91, %v163
    %vm165 = vcmp.eq.s32.totalorder %v92, %v163
    %vm166 = vcmp.eq.s32.totalorder %v93, %v163
    %vm167 = vcmp.eq.s32.totalorder %v94, %v163
    %vm168 = vcmp.eq.s32.totalorder %v95, %v163
    %vm169 = vcmp.eq.s32.totalorder %v96, %v163
    %vm170 = vcmp.eq.s32.totalorder %v97, %v163
    %vm171 = vcmp.eq.s32.totalorder %v98, %v163
    %vm172 = vcmp.eq.s32.totalorder %v99, %v163
    %vm173 = vcmp.eq.s32.totalorder %v100, %v163
    %vm174 = vcmp.eq.s32.totalorder %v101, %v163
    %vm175 = vcmp.eq.s32.totalorder %v102, %v163
    %vm176 = vcmp.eq.s32.totalorder %v103, %v163
    %vm177 = vcmp.eq.s32.totalorder %v104, %v163
    %vm178 = vcmp.eq.s32.totalorder %v105, %v163
    %vm179 = vcmp.eq.s32.totalorder %v106, %v163
    %v180 = vsel %vm164, 1, 0
    %v181 = vsel %vm165, 1, 0
    %v182 = vsel %vm166, 1, 0
    %v183 = vsel %vm167, 1, 0
    %v184 = vsel %vm168, 1, 0
    %v185 = vsel %vm169, 1, 0
    %v186 = vsel %vm170, 1, 0
    %v187 = vsel %vm171, 1, 0
    %v188 = vsel %vm172, 1, 0
    %v189 = vsel %vm173, 1, 0
    %v190 = vsel %vm174, 1, 0
    %v191 = vsel %vm175, 1, 0
    %v192 = vsel %vm176, 1, 0
    %v193 = vsel %vm177, 1, 0
    %v194 = vsel %vm178, 1, 0
    %v195 = vsel %vm179, 1, 0
    %v196 = vcvt.s32.f32 %v180
    %v197 = vcvt.s32.f32 %v181
    %v198 = vcvt.s32.f32 %v182
    %v199 = vcvt.s32.f32 %v183
    %v200 = vcvt.s32.f32 %v184
    %v201 = vcvt.s32.f32 %v185
    %v202 = vcvt.s32.f32 %v186
    %v203 = vcvt.s32.f32 %v187
    %v204 = vcvt.s32.f32 %v188
    %v205 = vcvt.s32.f32 %v189
    %v206 = vcvt.s32.f32 %v190
    %v207 = vcvt.s32.f32 %v191
    %v208 = vcvt.s32.f32 %v192
    %v209 = vcvt.s32.f32 %v193
    %v210 = vcvt.s32.f32 %v194
    %v211 = vcvt.s32.f32 %v195
    %v212 = vld [vmem:[%s2] sm:$0x1]
    %v213 = vlaneseq
    %v214 = vshrl.u32 %v213, 7
    %v215 = vsub.s32 0, %v214
    %v216 = vrot.slane %v212, %v215
    %vm217 = vcmp.eq.s32.totalorder %v91, %v216
    %vm218 = vcmp.eq.s32.totalorder %v92, %v216
    %vm219 = vcmp.eq.s32.totalorder %v93, %v216
    %vm220 = vcmp.eq.s32.totalorder %v94, %v216
    %vm221 = vcmp.eq.s32.totalorder %v95, %v216
    %vm222 = vcmp.eq.s32.totalorder %v96, %v216
    %vm223 = vcmp.eq.s32.totalorder %v97, %v216
    %vm224 = vcmp.eq.s32.totalorder %v98, %v216
    %vm225 = vcmp.eq.s32.totalorder %v99, %v216
    %vm226 = vcmp.eq.s32.totalorder %v100, %v216
    %vm227 = vcmp.eq.s32.totalorder %v101, %v216
    %vm228 = vcmp.eq.s32.totalorder %v102, %v216
    %vm229 = vcmp.eq.s32.totalorder %v103, %v216
    %vm230 = vcmp.eq.s32.totalorder %v104, %v216
    %vm231 = vcmp.eq.s32.totalorder %v105, %v216
    %vm232 = vcmp.eq.s32.totalorder %v106, %v216
    %v233 = vsel %vm217, 1, 0
    %v234 = vsel %vm218, 1, 0
    %v235 = vsel %vm219, 1, 0
    %v236 = vsel %vm220, 1, 0
    %v237 = vsel %vm221, 1, 0
    %v238 = vsel %vm222, 1, 0
    %v239 = vsel %vm223, 1, 0
    %v240 = vsel %vm224, 1, 0
    %v241 = vsel %vm225, 1, 0
    %v242 = vsel %vm226, 1, 0
    %v243 = vsel %vm227, 1, 0
    %v244 = vsel %vm228, 1, 0
    %v245 = vsel %vm229, 1, 0
    %v246 = vsel %vm230, 1, 0
    %v247 = vsel %vm231, 1, 0
    %v248 = vsel %vm232, 1, 0
    %v249 = vcvt.s32.f32 %v233
    %v250 = vcvt.s32.f32 %v234
    %v251 = vcvt.s32.f32 %v235
    %v252 = vcvt.s32.f32 %v236
    %v253 = vcvt.s32.f32 %v237
    %v254 = vcvt.s32.f32 %v238
    %v255 = vcvt.s32.f32 %v239
    %v256 = vcvt.s32.f32 %v240
    %v257 = vcvt.s32.f32 %v241
    %v258 = vcvt.s32.f32 %v242
    %v259 = vcvt.s32.f32 %v243
    %v260 = vcvt.s32.f32 %v244
    %v261 = vcvt.s32.f32 %v245
    %v262 = vcvt.s32.f32 %v246
    %v263 = vcvt.s32.f32 %v247
    %v264 = vcvt.s32.f32 %v248
    %265 = vmatprep.subr.mxu0 0.0
    %v266 = vand.u32 %v143, 4294901760
    %267 = vmatpush1.msra.mxu0 %v266
    %268 = vmatprep.subr.mxu0 0.0
    %v269 = vand.u32 %v144, 4294901760
    %270 = vmatpush1.msra.mxu0 %v269
    %271 = vmatprep.subr.mxu0 0.0
    %v272 = vand.u32 %v145, 4294901760
    %273 = vmatpush1.msra.mxu0 %v272
    %274 = vmatprep.subr.mxu0 0.0
    %v275 = vand.u32 %v146, 4294901760
    %276 = vmatpush1.msra.mxu0 %v275
    %277 = vmatprep.subr.mxu0 0.0
    %v278 = vand.u32 %v147, 4294901760
    %279 = vmatpush1.msra.mxu0 %v278
    %280 = vmatprep.subr.mxu0 0.0
    %v281 = vand.u32 %v148, 4294901760
    %282 = vmatpush1.msra.mxu0 %v281
    %283 = vmatprep.subr.mxu0 0.0
    %v284 = vand.u32 %v149, 4294901760
    %285 = vmatpush1.msra.mxu0 %v284
    %286 = vmatprep.subr.mxu0 0.0
    %v287 = vand.u32 %v150, 4294901760
    %288 = vmatpush1.msra.mxu0 %v287
    %289 = vmatprep.subr.mxu0 0.0
    %v290 = vand.u32 %v151, 4294901760
    %291 = vmatpush1.msra.mxu0 %v290
    %292 = vmatprep.subr.mxu0 0.0
    %v293 = vand.u32 %v152, 4294901760
    %294 = vmatpush1.msra.mxu0 %v293
    %295 = vmatprep.subr.mxu0 0.0
    %v296 = vand.u32 %v153, 4294901760
    %297 = vmatpush1.msra.mxu0 %v296
    %298 = vmatprep.subr.mxu0 0.0
    %v299 = vand.u32 %v154, 4294901760
    %300 = vmatpush1.msra.mxu0 %v299
    %301 = vmatprep.subr.mxu0 0.0
    %v302 = vand.u32 %v155, 4294901760
    %303 = vmatpush1.msra.mxu0 %v302
    %304 = vmatprep.subr.mxu0 0.0
    %v305 = vand.u32 %v156, 4294901760
    %306 = vmatpush1.msra.mxu0 %v305
    %307 = vmatprep.subr.mxu0 0.0
    %v308 = vand.u32 %v157, 4294901760
    %309 = vmatpush1.msra.mxu0 %v308
    %310 = vmatprep.subr.mxu0 0.0
    %v311 = vand.u32 %v158, 4294901760
    %312 = vmatpush1.msra.mxu0 %v311
    %313 = vmatprep.subr.mxu0 0.0
    %314 = vmatpush1.msra.mxu0 0.0
    %315 = vmatprep.subr.mxu0 0.0
    %316 = vmatpush1.msra.mxu0 0.0
    %317 = vmatprep.subr.mxu0 0.0
    %318 = vmatpush1.msra.mxu0 0.0
    %319 = vmatprep.subr.mxu0 0.0
    %320 = vmatpush1.msra.mxu0 0.0
    %321 = vmatprep.subr.mxu0 0.0
    %322 = vmatpush1.msra.mxu0 0.0
    %323 = vmatprep.subr.mxu0 0.0
    %324 = vmatpush1.msra.mxu0 0.0
    %325 = vmatprep.subr.mxu0 0.0
    %326 = vmatpush1.msra.mxu0 0.0
    %327 = vmatprep.subr.mxu0 0.0
    %328 = vmatpush1.msra.mxu0 0.0
    %329 = vmatprep.subr.mxu0 0.0
    %330 = vmatpush1.msra.mxu0 0.0
    %331 = vmatprep.subr.mxu0 0.0
    %332 = vmatpush1.msra.mxu0 0.0
    %333 = vmatprep.subr.mxu0 0.0
    %334 = vmatpush1.msra.mxu0 0.0
    %335 = vmatprep.subr.mxu0 0.0
    %336 = vmatpush1.msra.mxu0 0.0
    %337 = vmatprep.subr.mxu0 0.0
    %338 = vmatpush1.msra.mxu0 0.0
    %339 = vmatprep.subr.mxu0 0.0
    %340 = vmatpush1.msra.mxu0 0.0
    %341 = vmatprep.subr.mxu0 0.0
    %342 = vmatpush1.msra.mxu0 0.0
    %343 = vmatprep.subr.mxu0 0.0
    %344 = vmatpush1.msra.mxu0 0.0
    %345 = vmatprep.mubr.f32.mxu0 0.0
    %v346 = vand.u32 %v77, 4294901760
    %v347 = vsub.f32 %v77, %v346
    %v348 = vand.u32 %v347, 4294901760
    %v349 = vsub.f32 %v347, %v348
    %v350 = vand.u32 %v349, 4294901760
    %351 = vmatmul.mubr.f32.gmra.mrb[0].mxu0 %v350
    %v352 = vpop.f32.mrb[0].mxu0
    %v353 = vadd.f32 0.0, %v352
    %v354 = vpop.f32.mrb[0].mxu0
    %355 = vmatprep.mubr.f32.mxu0 0.0
    %v356 = vand.u32 %v78, 4294901760
    %v357 = vsub.f32 %v78, %v356
    %v358 = vand.u32 %v357, 4294901760
    %v359 = vsub.f32 %v357, %v358
    %v360 = vand.u32 %v359, 4294901760
    %361 = vmatmul.mubr.f32.gmra.mrb[0].mxu0 %v360
    %v362 = vpop.f32.mrb[0].mxu0
    %v363 = vadd.f32 0.0, %v362
    %v364 = vpop.f32.mrb[0].mxu0
    %365 = vmatprep.mubr.f32.mxu0 0.0
    %v366 = vand.u32 %v79, 4294901760
    %v367 = vsub.f32 %v79, %v366
    %v368 = vand.u32 %v367, 4294901760
    %v369 = vsub.f32 %v367, %v368
    %v370 = vand.u32 %v369, 4294901760
    %371 = vmatmul.mubr.f32.gmra.mrb[0].mxu0 %v370
    %v372 = vpop.f32.mrb[0].mxu0
    %v373 = vadd.f32 0.0, %v372
    %v374 = vpop.f32.mrb[0].mxu0
    %375 = vmatprep.mubr.f32.mxu0 0.0
    %v376 = vand.u32 %v80, 4294901760
    %v377 = vsub.f32 %v80, %v376
    %v378 = vand.u32 %v377, 4294901760
    %v379 = vsub.f32 %v377, %v378
    %v380 = vand.u32 %v379, 4294901760
    %381 = vmatmul.mubr.f32.gmra.mrb[0].mxu0 %v380
    %v382 = vpop.f32.mrb[0].mxu0
    %v383 = vadd.f32 0.0, %v382
    %v384 = vpop.f32.mrb[0].mxu0
    %385 = vdwg.mxu0
    %386 = vmatprep.subr.mxu0 0.0
    %v387 = vand.u32 %v143, 4294901760
    %v388 = vsub.f32 %v143, %v387
    %v389 = vand.u32 %v388, 4294901760
    %v390 = vsub.f32 %v388, %v389
    %v391 = vand.u32 %v390, 4294901760
    %392 = vmatpush1.msra.mxu0 %v391
    %393 = vmatprep.subr.mxu0 0.0
    %v394 = vand.u32 %v144, 4294901760
    %v395 = vsub.f32 %v144, %v394
    %v396 = vand.u32 %v395, 4294901760
    %v397 = vsub.f32 %v395, %v396
    %v398 = vand.u32 %v397, 4294901760
    %399 = vmatpush1.msra.mxu0 %v398
    %400 = vmatprep.subr.mxu0 0.0
    %v401 = vand.u32 %v145, 4294901760
    %v402 = vsub.f32 %v145, %v401
    %v403 = vand.u32 %v402, 4294901760
    %v404 = vsub.f32 %v402, %v403
    %v405 = vand.u32 %v404, 4294901760
    %406 = vmatpush1.msra.mxu0 %v405
    %407 = vmatprep.subr.mxu0 0.0
    %v408 = vand.u32 %v146, 4294901760
    %v409 = vsub.f32 %v146, %v408
    %v410 = vand.u32 %v409, 4294901760
    %v411 = vsub.f32 %v409, %v410
    %v412 = vand.u32 %v411, 4294901760
    %413 = vmatpush1.msra.mxu0 %v412
    %414 = vmatprep.subr.mxu0 0.0
    %v415 = vand.u32 %v147, 4294901760
    %v416 = vsub.f32 %v147, %v415
    %v417 = vand.u32 %v416, 4294901760
    %v418 = vsub.f32 %v416, %v417
    %v419 = vand.u32 %v418, 4294901760
    %420 = vmatpush1.msra.mxu0 %v419
    %421 = vmatprep.subr.mxu0 0.0
    %v422 = vand.u32 %v148, 4294901760
    %v423 = vsub.f32 %v148, %v422
    %v424 = vand.u32 %v423, 4294901760
    %v425 = vsub.f32 %v423, %v424
    %v426 = vand.u32 %v425, 4294901760
    %427 = vmatpush1.msra.mxu0 %v426
    %428 = vmatprep.subr.mxu0 0.0
    %v429 = vand.u32 %v149, 4294901760
    %v430 = vsub.f32 %v149, %v429
    %v431 = vand.u32 %v430, 4294901760
    %v432 = vsub.f32 %v430, %v431
    %v433 = vand.u32 %v432, 4294901760
    %434 = vmatpush1.msra.mxu0 %v433
    %435 = vmatprep.subr.mxu0 0.0
    %v436 = vand.u32 %v150, 4294901760
    %v437 = vsub.f32 %v150, %v436
    %v438 = vand.u32 %v437, 4294901760
    %v439 = vsub.f32 %v437, %v438
    %v440 = vand.u32 %v439, 4294901760
    %441 = vmatpush1.msra.mxu0 %v440
    %442 = vmatprep.subr.mxu0 0.0
    %v443 = vand.u32 %v151, 4294901760
    %v444 = vsub.f32 %v151, %v443
    %v445 = vand.u32 %v444, 4294901760
    %v446 = vsub.f32 %v444, %v445
    %v447 = vand.u32 %v446, 4294901760
    %448 = vmatpush1.msra.mxu0 %v447
    %449 = vmatprep.subr.mxu0 0.0
    %v450 = vand.u32 %v152, 4294901760
    %v451 = vsub.f32 %v152, %v450
    %v452 = vand.u32 %v451, 4294901760
    %v453 = vsub.f32 %v451, %v452
    %v454 = vand.u32 %v453, 4294901760
    %455 = vmatpush1.msra.mxu0 %v454
    %456 = vmatprep.subr.mxu0 0.0
    %v457 = vand.u32 %v153, 4294901760
    %v458 = vsub.f32 %v153, %v457
    %v459 = vand.u32 %v458, 4294901760
    %v460 = vsub.f32 %v458, %v459
    %v461 = vand.u32 %v460, 4294901760
    %462 = vmatpush1.msra.mxu0 %v461
    %463 = vmatprep.subr.mxu0 0.0
    %v464 = vand.u32 %v154, 4294901760
    %v465 = vsub.f32 %v154, %v464
    %v466 = vand.u32 %v465, 4294901760
    %v467 = vsub.f32 %v465, %v466
    %v468 = vand.u32 %v467, 4294901760
    %469 = vmatpush1.msra.mxu0 %v468
    %470 = vmatprep.subr.mxu0 0.0
    %v471 = vand.u32 %v155, 4294901760
    %v472 = vsub.f32 %v155, %v471
    %v473 = vand.u32 %v472, 4294901760
    %v474 = vsub.f32 %v472, %v473
    %v475 = vand.u32 %v474, 4294901760
    %476 = vmatpush1.msra.mxu0 %v475
    %477 = vmatprep.subr.mxu0 0.0
    %v478 = vand.u32 %v156, 4294901760
    %v479 = vsub.f32 %v156, %v478
    %v480 = vand.u32 %v479, 4294901760
    %v481 = vsub.f32 %v479, %v480
    %v482 = vand.u32 %v481, 4294901760
    %483 = vmatpush1.msra.mxu0 %v482
    %484 = vmatprep.subr.mxu0 0.0
    %v485 = vand.u32 %v157, 4294901760
    %v486 = vsub.f32 %v157, %v485
    %v487 = vand.u32 %v486, 4294901760
    %v488 = vsub.f32 %v486, %v487
    %v489 = vand.u32 %v488, 4294901760
    %490 = vmatpush1.msra.mxu0 %v489
    %491 = vmatprep.subr.mxu0 0.0
    %v492 = vand.u32 %v158, 4294901760
    %v493 = vsub.f32 %v158, %v492
    %v494 = vand.u32 %v493, 4294901760
    %v495 = vsub.f32 %v493, %v494
    %v496 = vand.u32 %v495, 4294901760
    %497 = vmatpush1.msra.mxu0 %v496
    %498 = vmatprep.subr.mxu0 0.0
    %499 = vmatpush1.msra.mxu0 0.0
    %500 = vmatprep.subr.mxu0 0.0
    %501 = vmatpush1.msra.mxu0 0.0
    %502 = vmatprep.subr.mxu0 0.0
    %503 = vmatpush1.msra.mxu0 0.0
    %504 = vmatprep.subr.mxu0 0.0
    %505 = vmatpush1.msra.mxu0 0.0
    %506 = vmatprep.subr.mxu0 0.0
    %507 = vmatpush1.msra.mxu0 0.0
    %508 = vmatprep.subr.mxu0 0.0
    %509 = vmatpush1.msra.mxu0 0.0
    %510 = vmatprep.subr.mxu0 0.0
    %511 = vmatpush1.msra.mxu0 0.0
    %512 = vmatprep.subr.mxu0 0.0
    %513 = vmatpush1.msra.mxu0 0.0
    %514 = vmatprep.subr.mxu0 0.0
    %515 = vmatpush1.msra.mxu0 0.0
    %516 = vmatprep.subr.mxu0 0.0
    %517 = vmatpush1.msra.mxu0 0.0
    %518 = vmatprep.subr.mxu0 0.0
    %519 = vmatpush1.msra.mxu0 0.0
    %520 = vmatprep.subr.mxu0 0.0
    %521 = vmatpush1.msra.mxu0 0.0
    %522 = vmatprep.subr.mxu0 0.0
    %523 = vmatpush1.msra.mxu0 0.0
    %524 = vmatprep.subr.mxu0 0.0
    %525 = vmatpush1.msra.mxu0 0.0
    %526 = vmatprep.subr.mxu0 0.0
    %527 = vmatpush1.msra.mxu0 0.0
    %528 = vmatprep.subr.mxu0 0.0
    %529 = vmatpush1.msra.mxu0 0.0
    %530 = vmatprep.mubr.f32.mxu0 0.0
    %v531 = vand.u32 %v77, 4294901760
    %532 = vmatmul.mubr.f32.gmra.mrb[0].mxu0 %v531
    %v533 = vpop.f32.mrb[0].mxu0
    %v534 = vadd.f32 %v353, %v533
    %v535 = vpop.f32.mrb[0].mxu0
    %536 = vmatprep.mubr.f32.mxu0 0.0
    %v537 = vand.u32 %v78, 4294901760
    %538 = vmatmul.mubr.f32.gmra.mrb[0].mxu0 %v537
    %v539 = vpop.f32.mrb[0].mxu0
    %v540 = vadd.f32 %v363, %v539
    %v541 = vpop.f32.mrb[0].mxu0
    %542 = vmatprep.mubr.f32.mxu0 0.0
    %v543 = vand.u32 %v79, 4294901760
    %544 = vmatmul.mubr.f32.gmra.mrb[0].mxu0 %v543
    %v545 = vpop.f32.mrb[0].mxu0
    %v546 = vadd.f32 %v373, %v545
    %v547 = vpop.f32.mrb[0].mxu0
    %548 = vmatprep.mubr.f32.mxu0 0.0
    %v549 = vand.u32 %v80, 4294901760
    %550 = vmatmul.mubr.f32.gmra.mrb[0].mxu0 %v549
    %v551 = vpop.f32.mrb[0].mxu0
    %v552 = vadd.f32 %v383, %v551
    %v553 = vpop.f32.mrb[0].mxu0
    %554 = vdwg.mxu0
    %555 = vmatprep.subr.mxu0 0.0
    %v556 = vand.u32 %v143, 4294901760
    %v557 = vsub.f32 %v143, %v556
    %558 = vmatpush1.msra.mxu0 %v557
    %559 = vmatprep.subr.mxu0 0.0
    %v560 = vand.u32 %v144, 4294901760
    %v561 = vsub.f32 %v144, %v560
    %562 = vmatpush1.msra.mxu0 %v561
    %563 = vmatprep.subr.mxu0 0.0
    %v564 = vand.u32 %v145, 4294901760
    %v565 = vsub.f32 %v145, %v564
    %566 = vmatpush1.msra.mxu0 %v565
    %567 = vmatprep.subr.mxu0 0.0
    %v568 = vand.u32 %v146, 4294901760
    %v569 = vsub.f32 %v146, %v568
    %570 = vmatpush1.msra.mxu0 %v569
    %571 = vmatprep.subr.mxu0 0.0
    %v572 = vand.u32 %v147, 4294901760
    %v573 = vsub.f32 %v147, %v572
    %574 = vmatpush1.msra.mxu0 %v573
    %575 = vmatprep.subr.mxu0 0.0
    %v576 = vand.u32 %v148, 4294901760
    %v577 = vsub.f32 %v148, %v576
    %578 = vmatpush1.msra.mxu0 %v577
    %579 = vmatprep.subr.mxu0 0.0
    %v580 = vand.u32 %v149, 4294901760
    %v581 = vsub.f32 %v149, %v580
    %582 = vmatpush1.msra.mxu0 %v581
    %583 = vmatprep.subr.mxu0 0.0
    %v584 = vand.u32 %v150, 4294901760
    %v585 = vsub.f32 %v150, %v584
    %586 = vmatpush1.msra.mxu0 %v585
    %587 = vmatprep.subr.mxu0 0.0
    %v588 = vand.u32 %v151, 4294901760
    %v589 = vsub.f32 %v151, %v588
    %590 = vmatpush1.msra.mxu0 %v589
    %591 = vmatprep.subr.mxu0 0.0
    %v592 = vand.u32 %v152, 4294901760
    %v593 = vsub.f32 %v152, %v592
    %594 = vmatpush1.msra.mxu0 %v593
    %595 = vmatprep.subr.mxu0 0.0
    %v596 = vand.u32 %v153, 4294901760
    %v597 = vsub.f32 %v153, %v596
    %598 = vmatpush1.msra.mxu0 %v597
    %599 = vmatprep.subr.mxu0 0.0
    %v600 = vand.u32 %v154, 4294901760
    %v601 = vsub.f32 %v154, %v600
    %602 = vmatpush1.msra.mxu0 %v601
    %603 = vmatprep.subr.mxu0 0.0
    %v604 = vand.u32 %v155, 4294901760
    %v605 = vsub.f32 %v155, %v604
    %606 = vmatpush1.msra.mxu0 %v605
    %607 = vmatprep.subr.mxu0 0.0
    %v608 = vand.u32 %v156, 4294901760
    %v609 = vsub.f32 %v156, %v608
    %610 = vmatpush1.msra.mxu0 %v609
    %611 = vmatprep.subr.mxu0 0.0
    %v612 = vand.u32 %v157, 4294901760
    %v613 = vsub.f32 %v157, %v612
    %614 = vmatpush1.msra.mxu0 %v613
    %615 = vmatprep.subr.mxu0 0.0
    %v616 = vand.u32 %v158, 4294901760
    %v617 = vsub.f32 %v158, %v616
    %618 = vmatpush1.msra.mxu0 %v617
    %619 = vmatprep.subr.mxu0 0.0
    %620 = vmatpush1.msra.mxu0 0.0
    %621 = vmatprep.subr.mxu0 0.0
    %622 = vmatpush1.msra.mxu0 0.0
    %623 = vmatprep.subr.mxu0 0.0
    %624 = vmatpush1.msra.mxu0 0.0
    %625 = vmatprep.subr.mxu0 0.0
    %626 = vmatpush1.msra.mxu0 0.0
    %627 = vmatprep.subr.mxu0 0.0
    %628 = vmatpush1.msra.mxu0 0.0
    %629 = vmatprep.subr.mxu0 0.0
    %630 = vmatpush1.msra.mxu0 0.0
    %631 = vmatprep.subr.mxu0 0.0
    %632 = vmatpush1.msra.mxu0 0.0
    %633 = vmatprep.subr.mxu0 0.0
    %634 = vmatpush1.msra.mxu0 0.0
    %635 = vmatprep.subr.mxu0 0.0
    %636 = vmatpush1.msra.mxu0 0.0
    %637 = vmatprep.subr.mxu0 0.0
    %638 = vmatpush1.msra.mxu0 0.0
    %639 = vmatprep.subr.mxu0 0.0
    %640 = vmatpush1.msra.mxu0 0.0
    %641 = vmatprep.subr.mxu0 0.0
    %642 = vmatpush1.msra.mxu0 0.0
    %643 = vmatprep.subr.mxu0 0.0
    %644 = vmatpush1.msra.mxu0 0.0
    %645 = vmatprep.subr.mxu0 0.0
    %646 = vmatpush1.msra.mxu0 0.0
    %647 = vmatprep.subr.mxu0 0.0
    %648 = vmatpush1.msra.mxu0 0.0
    %649 = vmatprep.subr.mxu0 0.0
    %650 = vmatpush1.msra.mxu0 0.0
    %651 = vmatprep.mubr.f32.mxu0 0.0
    %v652 = vand.u32 %v77, 4294901760
    %v653 = vsub.f32 %v77, %v652
    %654 = vmatmul.mubr.f32.gmra.mrb[0].mxu0 %v653
    %v655 = vpop.f32.mrb[0].mxu0
    %v656 = vadd.f32 %v534, %v655
    %v657 = vpop.f32.mrb[0].mxu0
    %658 = vmatprep.mubr.f32.mxu0 0.0
    %v659 = vand.u32 %v78, 4294901760
    %v660 = vsub.f32 %v78, %v659
    %661 = vmatmul.mubr.f32.gmra.mrb[0].mxu0 %v660
    %v662 = vpop.f32.mrb[0].mxu0
    %v663 = vadd.f32 %v540, %v662
    %v664 = vpop.f32.mrb[0].mxu0
    %665 = vmatprep.mubr.f32.mxu0 0.0
    %v666 = vand.u32 %v79, 4294901760
    %v667 = vsub.f32 %v79, %v666
    %668 = vmatmul.mubr.f32.gmra.mrb[0].mxu0 %v667
    %v669 = vpop.f32.mrb[0].mxu0
    %v670 = vadd.f32 %v546, %v669
    %v671 = vpop.f32.mrb[0].mxu0
    %672 = vmatprep.mubr.f32.mxu0 0.0
    %v673 = vand.u32 %v80, 4294901760
    %v674 = vsub.f32 %v80, %v673
    %675 = vmatmul.mubr.f32.gmra.mrb[0].mxu0 %v674
    %v676 = vpop.f32.mrb[0].mxu0
    %v677 = vadd.f32 %v552, %v676
    %v678 = vpop.f32.mrb[0].mxu0
    %679 = vdwg.mxu0
    %680 = vmatprep.subr.mxu0 0.0
    %v681 = vand.u32 %v143, 4294901760
    %682 = vmatpush1.msra.mxu0 %v681
    %683 = vmatprep.subr.mxu0 0.0
    %v684 = vand.u32 %v144, 4294901760
    %685 = vmatpush1.msra.mxu0 %v684
    %686 = vmatprep.subr.mxu0 0.0
    %v687 = vand.u32 %v145, 4294901760
    %688 = vmatpush1.msra.mxu0 %v687
    %689 = vmatprep.subr.mxu0 0.0
    %v690 = vand.u32 %v146, 4294901760
    %691 = vmatpush1.msra.mxu0 %v690
    %692 = vmatprep.subr.mxu0 0.0
    %v693 = vand.u32 %v147, 4294901760
    %694 = vmatpush1.msra.mxu0 %v693
    %695 = vmatprep.subr.mxu0 0.0
    %v696 = vand.u32 %v148, 4294901760
    %697 = vmatpush1.msra.mxu0 %v696
    %698 = vmatprep.subr.mxu0 0.0
    %v699 = vand.u32 %v149, 4294901760
    %700 = vmatpush1.msra.mxu0 %v699
    %701 = vmatprep.subr.mxu0 0.0
    %v702 = vand.u32 %v150, 4294901760
    %703 = vmatpush1.msra.mxu0 %v702
    %704 = vmatprep.subr.mxu0 0.0
    %v705 = vand.u32 %v151, 4294901760
    %706 = vmatpush1.msra.mxu0 %v705
    %707 = vmatprep.subr.mxu0 0.0
    %v708 = vand.u32 %v152, 4294901760
    %709 = vmatpush1.msra.mxu0 %v708
    %710 = vmatprep.subr.mxu0 0.0
    %v711 = vand.u32 %v153, 4294901760
    %712 = vmatpush1.msra.mxu0 %v711
    %713 = vmatprep.subr.mxu0 0.0
    %v714 = vand.u32 %v154, 4294901760
    %715 = vmatpush1.msra.mxu0 %v714
    %716 = vmatprep.subr.mxu0 0.0
    %v717 = vand.u32 %v155, 4294901760
    %718 = vmatpush1.msra.mxu0 %v717
    %719 = vmatprep.subr.mxu0 0.0
    %v720 = vand.u32 %v156, 4294901760
    %721 = vmatpush1.msra.mxu0 %v720
    %722 = vmatprep.subr.mxu0 0.0
    %v723 = vand.u32 %v157, 4294901760
    %724 = vmatpush1.msra.mxu0 %v723
    %725 = vmatprep.subr.mxu0 0.0
    %v726 = vand.u32 %v158, 4294901760
    %727 = vmatpush1.msra.mxu0 %v726
    %728 = vmatprep.subr.mxu0 0.0
    %729 = vmatpush1.msra.mxu0 0.0
    %730 = vmatprep.subr.mxu0 0.0
    %731 = vmatpush1.msra.mxu0 0.0
    %732 = vmatprep.subr.mxu0 0.0
    %733 = vmatpush1.msra.mxu0 0.0
    %734 = vmatprep.subr.mxu0 0.0
    %735 = vmatpush1.msra.mxu0 0.0
    %736 = vmatprep.subr.mxu0 0.0
    %737 = vmatpush1.msra.mxu0 0.0
    %738 = vmatprep.subr.mxu0 0.0
    %739 = vmatpush1.msra.mxu0 0.0
    %740 = vmatprep.subr.mxu0 0.0
    %741 = vmatpush1.msra.mxu0 0.0
    %742 = vmatprep.subr.mxu0 0.0
    %743 = vmatpush1.msra.mxu0 0.0
    %744 = vmatprep.subr.mxu0 0.0
    %745 = vmatpush1.msra.mxu0 0.0
    %746 = vmatprep.subr.mxu0 0.0
    %747 = vmatpush1.msra.mxu0 0.0
    %748 = vmatprep.subr.mxu0 0.0
    %749 = vmatpush1.msra.mxu0 0.0
    %750 = vmatprep.subr.mxu0 0.0
    %751 = vmatpush1.msra.mxu0 0.0
    %752 = vmatprep.subr.mxu0 0.0
    %753 = vmatpush1.msra.mxu0 0.0
    %754 = vmatprep.subr.mxu0 0.0
    %755 = vmatpush1.msra.mxu0 0.0
    %756 = vmatprep.subr.mxu0 0.0
    %757 = vmatpush1.msra.mxu0 0.0
    %758 = vmatprep.subr.mxu0 0.0
    %759 = vmatpush1.msra.mxu0 0.0
    %760 = vmatprep.mubr.f32.mxu0 0.0
    %v761 = vand.u32 %v77, 4294901760
    %v762 = vsub.f32 %v77, %v761
    %v763 = vand.u32 %v762, 4294901760
    %764 = vmatmul.mubr.f32.gmra.mrb[0].mxu0 %v763
    %v765 = vpop.f32.mrb[0].mxu0
    %v766 = vadd.f32 %v656, %v765
    %v767 = vpop.f32.mrb[0].mxu0
    %768 = vmatprep.mubr.f32.mxu0 0.0
    %v769 = vand.u32 %v78, 4294901760
    %v770 = vsub.f32 %v78, %v769
    %v771 = vand.u32 %v770, 4294901760
    %772 = vmatmul.mubr.f32.gmra.mrb[0].mxu0 %v771
    %v773 = vpop.f32.mrb[0].mxu0
    %v774 = vadd.f32 %v663, %v773
    %v775 = vpop.f32.mrb[0].mxu0
    %776 = vmatprep.mubr.f32.mxu0 0.0
    %v777 = vand.u32 %v79, 4294901760
    %v778 = vsub.f32 %v79, %v777
    %v779 = vand.u32 %v778, 4294901760
    %780 = vmatmul.mubr.f32.gmra.mrb[0].mxu0 %v779
    %v781 = vpop.f32.mrb[0].mxu0
    %v782 = vadd.f32 %v670, %v781
    %v783 = vpop.f32.mrb[0].mxu0
    %784 = vmatprep.mubr.f32.mxu0 0.0
    %v785 = vand.u32 %v80, 4294901760
    %v786 = vsub.f32 %v80, %v785
    %v787 = vand.u32 %v786, 4294901760
    %788 = vmatmul.mubr.f32.gmra.mrb[0].mxu0 %v787
    %v789 = vpop.f32.mrb[0].mxu0
    %v790 = vadd.f32 %v677, %v789
    %v791 = vpop.f32.mrb[0].mxu0
    %792 = vdwg.mxu0
    %793 = vmatprep.subr.mxu0 0.0
    %v794 = vand.u32 %v143, 4294901760
    %v795 = vsub.f32 %v143, %v794
    %v796 = vand.u32 %v795, 4294901760
    %797 = vmatpush1.msra.mxu0 %v796
    %798 = vmatprep.subr.mxu0 0.0
    %v799 = vand.u32 %v144, 4294901760
    %v800 = vsub.f32 %v144, %v799
    %v801 = vand.u32 %v800, 4294901760
    %802 = vmatpush1.msra.mxu0 %v801
    %803 = vmatprep.subr.mxu0 0.0
    %v804 = vand.u32 %v145, 4294901760
    %v805 = vsub.f32 %v145, %v804
    %v806 = vand.u32 %v805, 4294901760
    %807 = vmatpush1.msra.mxu0 %v806
    %808 = vmatprep.subr.mxu0 0.0
    %v809 = vand.u32 %v146, 4294901760
    %v810 = vsub.f32 %v146, %v809
    %v811 = vand.u32 %v810, 4294901760
    %812 = vmatpush1.msra.mxu0 %v811
    %813 = vmatprep.subr.mxu0 0.0
    %v814 = vand.u32 %v147, 4294901760
    %v815 = vsub.f32 %v147, %v814
    %v816 = vand.u32 %v815, 4294901760
    %817 = vmatpush1.msra.mxu0 %v816
    %818 = vmatprep.subr.mxu0 0.0
    %v819 = vand.u32 %v148, 4294901760
    %v820 = vsub.f32 %v148, %v819
    %v821 = vand.u32 %v820, 4294901760
    %822 = vmatpush1.msra.mxu0 %v821
    %823 = vmatprep.subr.mxu0 0.0
    %v824 = vand.u32 %v149, 4294901760
    %v825 = vsub.f32 %v149, %v824
    %v826 = vand.u32 %v825, 4294901760
    %827 = vmatpush1.msra.mxu0 %v826
    %828 = vmatprep.subr.mxu0 0.0
    %v829 = vand.u32 %v150, 4294901760
    %v830 = vsub.f32 %v150, %v829
    %v831 = vand.u32 %v830, 4294901760
    %832 = vmatpush1.msra.mxu0 %v831
    %833 = vmatprep.subr.mxu0 0.0
    %v834 = vand.u32 %v151, 4294901760
    %v835 = vsub.f32 %v151, %v834
    %v836 = vand.u32 %v835, 4294901760
    %837 = vmatpush1.msra.mxu0 %v836
    %838 = vmatprep.subr.mxu0 0.0
    %v839 = vand.u32 %v152, 4294901760
    %v840 = vsub.f32 %v152, %v839
    %v841 = vand.u32 %v840, 4294901760
    %842 = vmatpush1.msra.mxu0 %v841
    %843 = vmatprep.subr.mxu0 0.0
    %v844 = vand.u32 %v153, 4294901760
    %v845 = vsub.f32 %v153, %v844
    %v846 = vand.u32 %v845, 4294901760
    %847 = vmatpush1.msra.mxu0 %v846
    %848 = vmatprep.subr.mxu0 0.0
    %v849 = vand.u32 %v154, 4294901760
    %v850 = vsub.f32 %v154, %v849
    %v851 = vand.u32 %v850, 4294901760
    %852 = vmatpush1.msra.mxu0 %v851
    %853 = vmatprep.subr.mxu0 0.0
    %v854 = vand.u32 %v155, 4294901760
    %v855 = vsub.f32 %v155, %v854
    %v856 = vand.u32 %v855, 4294901760
    %857 = vmatpush1.msra.mxu0 %v856
    %858 = vmatprep.subr.mxu0 0.0
    %v859 = vand.u32 %v156, 4294901760
    %v860 = vsub.f32 %v156, %v859
    %v861 = vand.u32 %v860, 4294901760
    %862 = vmatpush1.msra.mxu0 %v861
    %863 = vmatprep.subr.mxu0 0.0
    %v864 = vand.u32 %v157, 4294901760
    %v865 = vsub.f32 %v157, %v864
    %v866 = vand.u32 %v865, 4294901760
    %867 = vmatpush1.msra.mxu0 %v866
    %868 = vmatprep.subr.mxu0 0.0
    %v869 = vand.u32 %v158, 4294901760
    %v870 = vsub.f32 %v158, %v869
    %v871 = vand.u32 %v870, 4294901760
    %872 = vmatpush1.msra.mxu0 %v871
    %873 = vmatprep.subr.mxu0 0.0
    %874 = vmatpush1.msra.mxu0 0.0
    %875 = vmatprep.subr.mxu0 0.0
    %876 = vmatpush1.msra.mxu0 0.0
    %877 = vmatprep.subr.mxu0 0.0
    %878 = vmatpush1.msra.mxu0 0.0
    %879 = vmatprep.subr.mxu0 0.0
    %880 = vmatpush1.msra.mxu0 0.0
    %881 = vmatprep.subr.mxu0 0.0
    %882 = vmatpush1.msra.mxu0 0.0
    %883 = vmatprep.subr.mxu0 0.0
    %884 = vmatpush1.msra.mxu0 0.0
    %885 = vmatprep.subr.mxu0 0.0
    %886 = vmatpush1.msra.mxu0 0.0
    %887 = vmatprep.subr.mxu0 0.0
    %888 = vmatpush1.msra.mxu0 0.0
    %889 = vmatprep.subr.mxu0 0.0
    %890 = vmatpush1.msra.mxu0 0.0
    %891 = vmatprep.subr.mxu0 0.0
    %892 = vmatpush1.msra.mxu0 0.0
    %893 = vmatprep.subr.mxu0 0.0
    %894 = vmatpush1.msra.mxu0 0.0
    %895 = vmatprep.subr.mxu0 0.0
    %896 = vmatpush1.msra.mxu0 0.0
    %897 = vmatprep.subr.mxu0 0.0
    %898 = vmatpush1.msra.mxu0 0.0
    %899 = vmatprep.subr.mxu0 0.0
    %900 = vmatpush1.msra.mxu0 0.0
    %901 = vmatprep.subr.mxu0 0.0
    %902 = vmatpush1.msra.mxu0 0.0
    %903 = vmatprep.subr.mxu0 0.0
    %904 = vmatpush1.msra.mxu0 0.0
    %905 = vmatprep.mubr.f32.mxu0 0.0
    %v906 = vand.u32 %v77, 4294901760
    %907 = vmatmul.mubr.f32.gmra.mrb[0].mxu0 %v906
    %v908 = vpop.f32.mrb[0].mxu0
    %v909 = vadd.f32 %v766, %v908
    %v910 = vpop.f32.mrb[0].mxu0
    %911 = vmatprep.mubr.f32.mxu0 0.0
    %v912 = vand.u32 %v78, 4294901760
    %913 = vmatmul.mubr.f32.gmra.mrb[0].mxu0 %v912
    %v914 = vpop.f32.mrb[0].mxu0
    %v915 = vadd.f32 %v774, %v914
    %v916 = vpop.f32.mrb[0].mxu0
    %917 = vmatprep.mubr.f32.mxu0 0.0
    %v918 = vand.u32 %v79, 4294901760
    %919 = vmatmul.mubr.f32.gmra.mrb[0].mxu0 %v918
    %v920 = vpop.f32.mrb[0].mxu0
    %v921 = vadd.f32 %v782, %v920
    %v922 = vpop.f32.mrb[0].mxu0
    %923 = vmatprep.mubr.f32.mxu0 0.0
    %v924 = vand.u32 %v80, 4294901760
    %925 = vmatmul.mubr.f32.gmra.mrb[0].mxu0 %v924
    %v926 = vpop.f32.mrb[0].mxu0
    %v927 = vadd.f32 %v790, %v926
    %v928 = vpop.f32.mrb[0].mxu0
    %929 = vdwg.mxu0
    %930 = vmatprep.subr.mxu0 0.0
    %v931 = vand.u32 %v143, 4294901760
    %932 = vmatpush1.msra.mxu0 %v931
    %933 = vmatprep.subr.mxu0 0.0
    %v934 = vand.u32 %v144, 4294901760
    %935 = vmatpush1.msra.mxu0 %v934
    %936 = vmatprep.subr.mxu0 0.0
    %v937 = vand.u32 %v145, 4294901760
    %938 = vmatpush1.msra.mxu0 %v937
    %939 = vmatprep.subr.mxu0 0.0
    %v940 = vand.u32 %v146, 4294901760
    %941 = vmatpush1.msra.mxu0 %v940
    %942 = vmatprep.subr.mxu0 0.0
    %v943 = vand.u32 %v147, 4294901760
    %944 = vmatpush1.msra.mxu0 %v943
    %945 = vmatprep.subr.mxu0 0.0
    %v946 = vand.u32 %v148, 4294901760
    %947 = vmatpush1.msra.mxu0 %v946
    %948 = vmatprep.subr.mxu0 0.0
    %v949 = vand.u32 %v149, 4294901760
    %950 = vmatpush1.msra.mxu0 %v949
    %951 = vmatprep.subr.mxu0 0.0
    %v952 = vand.u32 %v150, 4294901760
    %953 = vmatpush1.msra.mxu0 %v952
    %954 = vmatprep.subr.mxu0 0.0
    %v955 = vand.u32 %v151, 4294901760
    %956 = vmatpush1.msra.mxu0 %v955
    %957 = vmatprep.subr.mxu0 0.0
    %v958 = vand.u32 %v152, 4294901760
    %959 = vmatpush1.msra.mxu0 %v958
    %960 = vmatprep.subr.mxu0 0.0
    %v961 = vand.u32 %v153, 4294901760
    %962 = vmatpush1.msra.mxu0 %v961
    %963 = vmatprep.subr.mxu0 0.0
    %v964 = vand.u32 %v154, 4294901760
    %965 = vmatpush1.msra.mxu0 %v964
    %966 = vmatprep.subr.mxu0 0.0
    %v967 = vand.u32 %v155, 4294901760
    %968 = vmatpush1.msra.mxu0 %v967
    %969 = vmatprep.subr.mxu0 0.0
    %v970 = vand.u32 %v156, 4294901760
    %971 = vmatpush1.msra.mxu0 %v970
    %972 = vmatprep.subr.mxu0 0.0
    %v973 = vand.u32 %v157, 4294901760
    %974 = vmatpush1.msra.mxu0 %v973
    %975 = vmatprep.subr.mxu0 0.0
    %v976 = vand.u32 %v158, 4294901760
    %977 = vmatpush1.msra.mxu0 %v976
    %978 = vmatprep.subr.mxu0 0.0
    %979 = vmatpush1.msra.mxu0 0.0
    %980 = vmatprep.subr.mxu0 0.0
    %981 = vmatpush1.msra.mxu0 0.0
    %982 = vmatprep.subr.mxu0 0.0
    %983 = vmatpush1.msra.mxu0 0.0
    %984 = vmatprep.subr.mxu0 0.0
    %985 = vmatpush1.msra.mxu0 0.0
    %986 = vmatprep.subr.mxu0 0.0
    %987 = vmatpush1.msra.mxu0 0.0
    %988 = vmatprep.subr.mxu0 0.0
    %989 = vmatpush1.msra.mxu0 0.0
    %990 = vmatprep.subr.mxu0 0.0
    %991 = vmatpush1.msra.mxu0 0.0
    %992 = vmatprep.subr.mxu0 0.0
    %993 = vmatpush1.msra.mxu0 0.0
    %994 = vmatprep.subr.mxu0 0.0
    %995 = vmatpush1.msra.mxu0 0.0
    %996 = vmatprep.subr.mxu0 0.0
    %997 = vmatpush1.msra.mxu0 0.0
    %998 = vmatprep.subr.mxu0 0.0
    %999 = vmatpush1.msra.mxu0 0.0
    %1000 = vmatprep.subr.mxu0 0.0
    %1001 = vmatpush1.msra.mxu0 0.0
    %1002 = vmatprep.subr.mxu0 0.0
    %1003 = vmatpush1.msra.mxu0 0.0
    %1004 = vmatprep.subr.mxu0 0.0
    %1005 = vmatpush1.msra.mxu0 0.0
    %1006 = vmatprep.subr.mxu0 0.0
    %1007 = vmatpush1.msra.mxu0 0.0
    %1008 = vmatprep.subr.mxu0 0.0
    %1009 = vmatpush1.msra.mxu0 0.0
    %1010 = vmatprep.mubr.f32.mxu0 0.0
    %v1011 = vand.u32 %v77, 4294901760
    %1012 = vmatmul.mubr.f32.gmra.mrb[0].mxu0 %v1011
    %v1013 = vpop.f32.mrb[0].mxu0
    %v1014 = vadd.f32 %v909, %v1013
    %v1015 = vpop.f32.mrb[0].mxu0
    %1016 = vmatprep.mubr.f32.mxu0 0.0
    %v1017 = vand.u32 %v78, 4294901760
    %1018 = vmatmul.mubr.f32.gmra.mrb[0].mxu0 %v1017
    %v1019 = vpop.f32.mrb[0].mxu0
    %v1020 = vadd.f32 %v915, %v1019
    %v1021 = vpop.f32.mrb[0].mxu0
    %1022 = vmatprep.mubr.f32.mxu0 0.0
    %v1023 = vand.u32 %v79, 4294901760
    %1024 = vmatmul.mubr.f32.gmra.mrb[0].mxu0 %v1023
    %v1025 = vpop.f32.mrb[0].mxu0
    %v1026 = vadd.f32 %v921, %v1025
    %v1027 = vpop.f32.mrb[0].mxu0
    %1028 = vmatprep.mubr.f32.mxu0 0.0
    %v1029 = vand.u32 %v80, 4294901760
    %1030 = vmatmul.mubr.f32.gmra.mrb[0].mxu0 %v1029
    %v1031 = vpop.f32.mrb[0].mxu0
    %v1032 = vadd.f32 %v927, %v1031
    %v1033 = vpop.f32.mrb[0].mxu0
    %1034 = vdwg.mxu0
    %1035 = vmatprep.subr.mxu0 0.0
    %v1036 = vand.u32 %v196, 4294901760
    %1037 = vmatpush1.msra.mxu0 %v1036
    %1038 = vmatprep.subr.mxu0 0.0
    %v1039 = vand.u32 %v197, 4294901760
    %1040 = vmatpush1.msra.mxu0 %v1039
    %1041 = vmatprep.subr.mxu0 0.0
    %v1042 = vand.u32 %v198, 4294901760
    %1043 = vmatpush1.msra.mxu0 %v1042
    %1044 = vmatprep.subr.mxu0 0.0
    %v1045 = vand.u32 %v199, 4294901760
    %1046 = vmatpush1.msra.mxu0 %v1045
    %1047 = vmatprep.subr.mxu0 0.0
    %v1048 = vand.u32 %v200, 4294901760
    %1049 = vmatpush1.msra.mxu0 %v1048
    %1050 = vmatprep.subr.mxu0 0.0
    %v1051 = vand.u32 %v201, 4294901760
    %1052 = vmatpush1.msra.mxu0 %v1051
    %1053 = vmatprep.subr.mxu0 0.0
    %v1054 = vand.u32 %v202, 4294901760
    %1055 = vmatpush1.msra.mxu0 %v1054
    %1056 = vmatprep.subr.mxu0 0.0
    %v1057 = vand.u32 %v203, 4294901760
    %1058 = vmatpush1.msra.mxu0 %v1057
    %1059 = vmatprep.subr.mxu0 0.0
    %v1060 = vand.u32 %v204, 4294901760
    %1061 = vmatpush1.msra.mxu0 %v1060
    %1062 = vmatprep.subr.mxu0 0.0
    %v1063 = vand.u32 %v205, 4294901760
    %1064 = vmatpush1.msra.mxu0 %v1063
    %1065 = vmatprep.subr.mxu0 0.0
    %v1066 = vand.u32 %v206, 4294901760
    %1067 = vmatpush1.msra.mxu0 %v1066
    %1068 = vmatprep.subr.mxu0 0.0
    %v1069 = vand.u32 %v207, 4294901760
    %1070 = vmatpush1.msra.mxu0 %v1069
    %1071 = vmatprep.subr.mxu0 0.0
    %v1072 = vand.u32 %v208, 4294901760
    %1073 = vmatpush1.msra.mxu0 %v1072
    %1074 = vmatprep.subr.mxu0 0.0
    %v1075 = vand.u32 %v209, 4294901760
    %1076 = vmatpush1.msra.mxu0 %v1075
    %1077 = vmatprep.subr.mxu0 0.0
    %v1078 = vand.u32 %v210, 4294901760
    %1079 = vmatpush1.msra.mxu0 %v1078
    %1080 = vmatprep.subr.mxu0 0.0
    %v1081 = vand.u32 %v211, 4294901760
    %1082 = vmatpush1.msra.mxu0 %v1081
    %1083 = vmatprep.subr.mxu0 0.0
    %1084 = vmatpush1.msra.mxu0 0.0
    %1085 = vmatprep.subr.mxu0 0.0
    %1086 = vmatpush1.msra.mxu0 0.0
    %1087 = vmatprep.subr.mxu0 0.0
    %1088 = vmatpush1.msra.mxu0 0.0
    %1089 = vmatprep.subr.mxu0 0.0
    %1090 = vmatpush1.msra.mxu0 0.0
    %1091 = vmatprep.subr.mxu0 0.0
    %1092 = vmatpush1.msra.mxu0 0.0
    %1093 = vmatprep.subr.mxu0 0.0
    %1094 = vmatpush1.msra.mxu0 0.0
    %1095 = vmatprep.subr.mxu0 0.0
    %1096 = vmatpush1.msra.mxu0 0.0
    %1097 = vmatprep.subr.mxu0 0.0
    %1098 = vmatpush1.msra.mxu0 0.0
    %1099 = vmatprep.subr.mxu0 0.0
    %1100 = vmatpush1.msra.mxu0 0.0
    %1101 = vmatprep.subr.mxu0 0.0
    %1102 = vmatpush1.msra.mxu0 0.0
    %1103 = vmatprep.subr.mxu0 0.0
    %1104 = vmatpush1.msra.mxu0 0.0
    %1105 = vmatprep.subr.mxu0 0.0
    %1106 = vmatpush1.msra.mxu0 0.0
    %1107 = vmatprep.subr.mxu0 0.0
    %1108 = vmatpush1.msra.mxu0 0.0
    %1109 = vmatprep.subr.mxu0 0.0
    %1110 = vmatpush1.msra.mxu0 0.0
    %1111 = vmatprep.subr.mxu0 0.0
    %1112 = vmatpush1.msra.mxu0 0.0
    %1113 = vmatprep.subr.mxu0 0.0
    %1114 = vmatpush1.msra.mxu0 0.0
    %1115 = vmatprep.mubr.f32.mxu0 0.0
    %v1116 = vand.u32 %v77, 4294901760
    %v1117 = vsub.f32 %v77, %v1116
    %v1118 = vand.u32 %v1117, 4294901760
    %v1119 = vsub.f32 %v1117, %v1118
    %v1120 = vand.u32 %v1119, 4294901760
    %1121 = vmatmul.mubr.f32.gmra.mrb[0].mxu0 %v1120
    %v1122 = vpop.f32.mrb[0].mxu0
    %v1123 = vadd.f32 0.0, %v1122
    %v1124 = vpop.f32.mrb[0].mxu0
    %1125 = vmatprep.mubr.f32.mxu0 0.0
    %v1126 = vand.u32 %v78, 4294901760
    %v1127 = vsub.f32 %v78, %v1126
    %v1128 = vand.u32 %v1127, 4294901760
    %v1129 = vsub.f32 %v1127, %v1128
    %v1130 = vand.u32 %v1129, 4294901760
    %1131 = vmatmul.mubr.f32.gmra.mrb[0].mxu0 %v1130
    %v1132 = vpop.f32.mrb[0].mxu0
    %v1133 = vadd.f32 0.0, %v1132
    %v1134 = vpop.f32.mrb[0].mxu0
    %1135 = vmatprep.mubr.f32.mxu0 0.0
    %v1136 = vand.u32 %v79, 4294901760
    %v1137 = vsub.f32 %v79, %v1136
    %v1138 = vand.u32 %v1137, 4294901760
    %v1139 = vsub.f32 %v1137, %v1138
    %v1140 = vand.u32 %v1139, 4294901760
    %1141 = vmatmul.mubr.f32.gmra.mrb[0].mxu0 %v1140
    %v1142 = vpop.f32.mrb[0].mxu0
    %v1143 = vadd.f32 0.0, %v1142
    %v1144 = vpop.f32.mrb[0].mxu0
    %1145 = vmatprep.mubr.f32.mxu0 0.0
    %v1146 = vand.u32 %v80, 4294901760
    %v1147 = vsub.f32 %v80, %v1146
    %v1148 = vand.u32 %v1147, 4294901760
    %v1149 = vsub.f32 %v1147, %v1148
    %v1150 = vand.u32 %v1149, 4294901760
    %1151 = vmatmul.mubr.f32.gmra.mrb[0].mxu0 %v1150
    %v1152 = vpop.f32.mrb[0].mxu0
    %v1153 = vadd.f32 0.0, %v1152
    %v1154 = vpop.f32.mrb[0].mxu0
    %1155 = vdwg.mxu0
    %1156 = vmatprep.subr.mxu0 0.0
    %v1157 = vand.u32 %v196, 4294901760
    %v1158 = vsub.f32 %v196, %v1157
    %v1159 = vand.u32 %v1158, 4294901760
    %v1160 = vsub.f32 %v1158, %v1159
    %v1161 = vand.u32 %v1160, 4294901760
    %1162 = vmatpush1.msra.mxu0 %v1161
    %1163 = vmatprep.subr.mxu0 0.0
    %v1164 = vand.u32 %v197, 4294901760
    %v1165 = vsub.f32 %v197, %v1164
    %v1166 = vand.u32 %v1165, 4294901760
    %v1167 = vsub.f32 %v1165, %v1166
    %v1168 = vand.u32 %v1167, 4294901760
    %1169 = vmatpush1.msra.mxu0 %v1168
    %1170 = vmatprep.subr.mxu0 0.0
    %v1171 = vand.u32 %v198, 4294901760
    %v1172 = vsub.f32 %v198, %v1171
    %v1173 = vand.u32 %v1172, 4294901760
    %v1174 = vsub.f32 %v1172, %v1173
    %v1175 = vand.u32 %v1174, 4294901760
    %1176 = vmatpush1.msra.mxu0 %v1175
    %1177 = vmatprep.subr.mxu0 0.0
    %v1178 = vand.u32 %v199, 4294901760
    %v1179 = vsub.f32 %v199, %v1178
    %v1180 = vand.u32 %v1179, 4294901760
    %v1181 = vsub.f32 %v1179, %v1180
    %v1182 = vand.u32 %v1181, 4294901760
    %1183 = vmatpush1.msra.mxu0 %v1182
    %1184 = vmatprep.subr.mxu0 0.0
    %v1185 = vand.u32 %v200, 4294901760
    %v1186 = vsub.f32 %v200, %v1185
    %v1187 = vand.u32 %v1186, 4294901760
    %v1188 = vsub.f32 %v1186, %v1187
    %v1189 = vand.u32 %v1188, 4294901760
    %1190 = vmatpush1.msra.mxu0 %v1189
    %1191 = vmatprep.subr.mxu0 0.0
    %v1192 = vand.u32 %v201, 4294901760
    %v1193 = vsub.f32 %v201, %v1192
    %v1194 = vand.u32 %v1193, 4294901760
    %v1195 = vsub.f32 %v1193, %v1194
    %v1196 = vand.u32 %v1195, 4294901760
    %1197 = vmatpush1.msra.mxu0 %v1196
    %1198 = vmatprep.subr.mxu0 0.0
    %v1199 = vand.u32 %v202, 4294901760
    %v1200 = vsub.f32 %v202, %v1199
    %v1201 = vand.u32 %v1200, 4294901760
    %v1202 = vsub.f32 %v1200, %v1201
    %v1203 = vand.u32 %v1202, 4294901760
    %1204 = vmatpush1.msra.mxu0 %v1203
    %1205 = vmatprep.subr.mxu0 0.0
    %v1206 = vand.u32 %v203, 4294901760
    %v1207 = vsub.f32 %v203, %v1206
    %v1208 = vand.u32 %v1207, 4294901760
    %v1209 = vsub.f32 %v1207, %v1208
    %v1210 = vand.u32 %v1209, 4294901760
    %1211 = vmatpush1.msra.mxu0 %v1210
    %1212 = vmatprep.subr.mxu0 0.0
    %v1213 = vand.u32 %v204, 4294901760
    %v1214 = vsub.f32 %v204, %v1213
    %v1215 = vand.u32 %v1214, 4294901760
    %v1216 = vsub.f32 %v1214, %v1215
    %v1217 = vand.u32 %v1216, 4294901760
    %1218 = vmatpush1.msra.mxu0 %v1217
    %1219 = vmatprep.subr.mxu0 0.0
    %v1220 = vand.u32 %v205, 4294901760
    %v1221 = vsub.f32 %v205, %v1220
    %v1222 = vand.u32 %v1221, 4294901760
    %v1223 = vsub.f32 %v1221, %v1222
    %v1224 = vand.u32 %v1223, 4294901760
    %1225 = vmatpush1.msra.mxu0 %v1224
    %1226 = vmatprep.subr.mxu0 0.0
    %v1227 = vand.u32 %v206, 4294901760
    %v1228 = vsub.f32 %v206, %v1227
    %v1229 = vand.u32 %v1228, 4294901760
    %v1230 = vsub.f32 %v1228, %v1229
    %v1231 = vand.u32 %v1230, 4294901760
    %1232 = vmatpush1.msra.mxu0 %v1231
    %1233 = vmatprep.subr.mxu0 0.0
    %v1234 = vand.u32 %v207, 4294901760
    %v1235 = vsub.f32 %v207, %v1234
    %v1236 = vand.u32 %v1235, 4294901760
    %v1237 = vsub.f32 %v1235, %v1236
    %v1238 = vand.u32 %v1237, 4294901760
    %1239 = vmatpush1.msra.mxu0 %v1238
    %1240 = vmatprep.subr.mxu0 0.0
    %v1241 = vand.u32 %v208, 4294901760
    %v1242 = vsub.f32 %v208, %v1241
    %v1243 = vand.u32 %v1242, 4294901760
    %v1244 = vsub.f32 %v1242, %v1243
    %v1245 = vand.u32 %v1244, 4294901760
    %1246 = vmatpush1.msra.mxu0 %v1245
    %1247 = vmatprep.subr.mxu0 0.0
    %v1248 = vand.u32 %v209, 4294901760
    %v1249 = vsub.f32 %v209, %v1248
    %v1250 = vand.u32 %v1249, 4294901760
    %v1251 = vsub.f32 %v1249, %v1250
    %v1252 = vand.u32 %v1251, 4294901760
    %1253 = vmatpush1.msra.mxu0 %v1252
    %1254 = vmatprep.subr.mxu0 0.0
    %v1255 = vand.u32 %v210, 4294901760
    %v1256 = vsub.f32 %v210, %v1255
    %v1257 = vand.u32 %v1256, 4294901760
    %v1258 = vsub.f32 %v1256, %v1257
    %v1259 = vand.u32 %v1258, 4294901760
    %1260 = vmatpush1.msra.mxu0 %v1259
    %1261 = vmatprep.subr.mxu0 0.0
    %v1262 = vand.u32 %v211, 4294901760
    %v1263 = vsub.f32 %v211, %v1262
    %v1264 = vand.u32 %v1263, 4294901760
    %v1265 = vsub.f32 %v1263, %v1264
    %v1266 = vand.u32 %v1265, 4294901760
    %1267 = vmatpush1.msra.mxu0 %v1266
    %1268 = vmatprep.subr.mxu0 0.0
    %1269 = vmatpush1.msra.mxu0 0.0
    %1270 = vmatprep.subr.mxu0 0.0
    %1271 = vmatpush1.msra.mxu0 0.0
    %1272 = vmatprep.subr.mxu0 0.0
    %1273 = vmatpush1.msra.mxu0 0.0
    %1274 = vmatprep.subr.mxu0 0.0
    %1275 = vmatpush1.msra.mxu0 0.0
    %1276 = vmatprep.subr.mxu0 0.0
    %1277 = vmatpush1.msra.mxu0 0.0
    %1278 = vmatprep.subr.mxu0 0.0
    %1279 = vmatpush1.msra.mxu0 0.0
    %1280 = vmatprep.subr.mxu0 0.0
    %1281 = vmatpush1.msra.mxu0 0.0
    %1282 = vmatprep.subr.mxu0 0.0
    %1283 = vmatpush1.msra.mxu0 0.0
    %1284 = vmatprep.subr.mxu0 0.0
    %1285 = vmatpush1.msra.mxu0 0.0
    %1286 = vmatprep.subr.mxu0 0.0
    %1287 = vmatpush1.msra.mxu0 0.0
    %1288 = vmatprep.subr.mxu0 0.0
    %1289 = vmatpush1.msra.mxu0 0.0
    %1290 = vmatprep.subr.mxu0 0.0
    %1291 = vmatpush1.msra.mxu0 0.0
    %1292 = vmatprep.subr.mxu0 0.0
    %1293 = vmatpush1.msra.mxu0 0.0
    %1294 = vmatprep.subr.mxu0 0.0
    %1295 = vmatpush1.msra.mxu0 0.0
    %1296 = vmatprep.subr.mxu0 0.0
    %1297 = vmatpush1.msra.mxu0 0.0
    %1298 = vmatprep.subr.mxu0 0.0
    %1299 = vmatpush1.msra.mxu0 0.0
    %1300 = vmatprep.mubr.f32.mxu0 0.0
    %v1301 = vand.u32 %v77, 4294901760
    %1302 = vmatmul.mubr.f32.gmra.mrb[0].mxu0 %v1301
    %v1303 = vpop.f32.mrb[0].mxu0
    %v1304 = vadd.f32 %v1123, %v1303
    %v1305 = vpop.f32.mrb[0].mxu0
    %1306 = vmatprep.mubr.f32.mxu0 0.0
    %v1307 = vand.u32 %v78, 4294901760
    %1308 = vmatmul.mubr.f32.gmra.mrb[0].mxu0 %v1307
    %v1309 = vpop.f32.mrb[0].mxu0
    %v1310 = vadd.f32 %v1133, %v1309
    %v1311 = vpop.f32.mrb[0].mxu0
    %1312 = vmatprep.mubr.f32.mxu0 0.0
    %v1313 = vand.u32 %v79, 4294901760
    %1314 = vmatmul.mubr.f32.gmra.mrb[0].mxu0 %v1313
    %v1315 = vpop.f32.mrb[0].mxu0
    %v1316 = vadd.f32 %v1143, %v1315
    %v1317 = vpop.f32.mrb[0].mxu0
    %1318 = vmatprep.mubr.f32.mxu0 0.0
    %v1319 = vand.u32 %v80, 4294901760
    %1320 = vmatmul.mubr.f32.gmra.mrb[0].mxu0 %v1319
    %v1321 = vpop.f32.mrb[0].mxu0
    %v1322 = vadd.f32 %v1153, %v1321
    %v1323 = vpop.f32.mrb[0].mxu0
    %1324 = vdwg.mxu0
    %1325 = vmatprep.subr.mxu0 0.0
    %v1326 = vand.u32 %v196, 4294901760
    %v1327 = vsub.f32 %v196, %v1326
    %1328 = vmatpush1.msra.mxu0 %v1327
    %1329 = vmatprep.subr.mxu0 0.0
    %v1330 = vand.u32 %v197, 4294901760
    %v1331 = vsub.f32 %v197, %v1330
    %1332 = vmatpush1.msra.mxu0 %v1331
    %1333 = vmatprep.subr.mxu0 0.0
    %v1334 = vand.u32 %v198, 4294901760
    %v1335 = vsub.f32 %v198, %v1334
    %1336 = vmatpush1.msra.mxu0 %v1335
    %1337 = vmatprep.subr.mxu0 0.0
    %v1338 = vand.u32 %v199, 4294901760
    %v1339 = vsub.f32 %v199, %v1338
    %1340 = vmatpush1.msra.mxu0 %v1339
    %1341 = vmatprep.subr.mxu0 0.0
    %v1342 = vand.u32 %v200, 4294901760
    %v1343 = vsub.f32 %v200, %v1342
    %1344 = vmatpush1.msra.mxu0 %v1343
    %1345 = vmatprep.subr.mxu0 0.0
    %v1346 = vand.u32 %v201, 4294901760
    %v1347 = vsub.f32 %v201, %v1346
    %1348 = vmatpush1.msra.mxu0 %v1347
    %1349 = vmatprep.subr.mxu0 0.0
    %v1350 = vand.u32 %v202, 4294901760
    %v1351 = vsub.f32 %v202, %v1350
    %1352 = vmatpush1.msra.mxu0 %v1351
    %1353 = vmatprep.subr.mxu0 0.0
    %v1354 = vand.u32 %v203, 4294901760
    %v1355 = vsub.f32 %v203, %v1354
    %1356 = vmatpush1.msra.mxu0 %v1355
    %1357 = vmatprep.subr.mxu0 0.0
    %v1358 = vand.u32 %v204, 4294901760
    %v1359 = vsub.f32 %v204, %v1358
    %1360 = vmatpush1.msra.mxu0 %v1359
    %1361 = vmatprep.subr.mxu0 0.0
    %v1362 = vand.u32 %v205, 4294901760
    %v1363 = vsub.f32 %v205, %v1362
    %1364 = vmatpush1.msra.mxu0 %v1363
    %1365 = vmatprep.subr.mxu0 0.0
    %v1366 = vand.u32 %v206, 4294901760
    %v1367 = vsub.f32 %v206, %v1366
    %1368 = vmatpush1.msra.mxu0 %v1367
    %1369 = vmatprep.subr.mxu0 0.0
    %v1370 = vand.u32 %v207, 4294901760
    %v1371 = vsub.f32 %v207, %v1370
    %1372 = vmatpush1.msra.mxu0 %v1371
    %1373 = vmatprep.subr.mxu0 0.0
    %v1374 = vand.u32 %v208, 4294901760
    %v1375 = vsub.f32 %v208, %v1374
    %1376 = vmatpush1.msra.mxu0 %v1375
    %1377 = vmatprep.subr.mxu0 0.0
    %v1378 = vand.u32 %v209, 4294901760
    %v1379 = vsub.f32 %v209, %v1378
    %1380 = vmatpush1.msra.mxu0 %v1379
    %1381 = vmatprep.subr.mxu0 0.0
    %v1382 = vand.u32 %v210, 4294901760
    %v1383 = vsub.f32 %v210, %v1382
    %1384 = vmatpush1.msra.mxu0 %v1383
    %1385 = vmatprep.subr.mxu0 0.0
    %v1386 = vand.u32 %v211, 4294901760
    %v1387 = vsub.f32 %v211, %v1386
    %1388 = vmatpush1.msra.mxu0 %v1387
    %1389 = vmatprep.subr.mxu0 0.0
    %1390 = vmatpush1.msra.mxu0 0.0
    %1391 = vmatprep.subr.mxu0 0.0
    %1392 = vmatpush1.msra.mxu0 0.0
    %1393 = vmatprep.subr.mxu0 0.0
    %1394 = vmatpush1.msra.mxu0 0.0
    %1395 = vmatprep.subr.mxu0 0.0
    %1396 = vmatpush1.msra.mxu0 0.0
    %1397 = vmatprep.subr.mxu0 0.0
    %1398 = vmatpush1.msra.mxu0 0.0
    %1399 = vmatprep.subr.mxu0 0.0
    %1400 = vmatpush1.msra.mxu0 0.0
    %1401 = vmatprep.subr.mxu0 0.0
    %1402 = vmatpush1.msra.mxu0 0.0
    %1403 = vmatprep.subr.mxu0 0.0
    %1404 = vmatpush1.msra.mxu0 0.0
    %1405 = vmatprep.subr.mxu0 0.0
    %1406 = vmatpush1.msra.mxu0 0.0
    %1407 = vmatprep.subr.mxu0 0.0
    %1408 = vmatpush1.msra.mxu0 0.0
    %1409 = vmatprep.subr.mxu0 0.0
    %1410 = vmatpush1.msra.mxu0 0.0
    %1411 = vmatprep.subr.mxu0 0.0
    %1412 = vmatpush1.msra.mxu0 0.0
    %1413 = vmatprep.subr.mxu0 0.0
    %1414 = vmatpush1.msra.mxu0 0.0
    %1415 = vmatprep.subr.mxu0 0.0
    %1416 = vmatpush1.msra.mxu0 0.0
    %1417 = vmatprep.subr.mxu0 0.0
    %1418 = vmatpush1.msra.mxu0 0.0
    %1419 = vmatprep.subr.mxu0 0.0
    %1420 = vmatpush1.msra.mxu0 0.0
    %1421 = vmatprep.mubr.f32.mxu0 0.0
    %v1422 = vand.u32 %v77, 4294901760
    %v1423 = vsub.f32 %v77, %v1422
    %1424 = vmatmul.mubr.f32.gmra.mrb[0].mxu0 %v1423
    %v1425 = vpop.f32.mrb[0].mxu0
    %v1426 = vadd.f32 %v1304, %v1425
    %v1427 = vpop.f32.mrb[0].mxu0
    %1428 = vmatprep.mubr.f32.mxu0 0.0
    %v1429 = vand.u32 %v78, 4294901760
    %v1430 = vsub.f32 %v78, %v1429
    %1431 = vmatmul.mubr.f32.gmra.mrb[0].mxu0 %v1430
    %v1432 = vpop.f32.mrb[0].mxu0
    %v1433 = vadd.f32 %v1310, %v1432
    %v1434 = vpop.f32.mrb[0].mxu0
    %1435 = vmatprep.mubr.f32.mxu0 0.0
    %v1436 = vand.u32 %v79, 4294901760
    %v1437 = vsub.f32 %v79, %v1436
    %1438 = vmatmul.mubr.f32.gmra.mrb[0].mxu0 %v1437
    %v1439 = vpop.f32.mrb[0].mxu0
    %v1440 = vadd.f32 %v1316, %v1439
    %v1441 = vpop.f32.mrb[0].mxu0
    %1442 = vmatprep.mubr.f32.mxu0 0.0
    %v1443 = vand.u32 %v80, 4294901760
    %v1444 = vsub.f32 %v80, %v1443
    %1445 = vmatmul.mubr.f32.gmra.mrb[0].mxu0 %v1444
    %v1446 = vpop.f32.mrb[0].mxu0
    %v1447 = vadd.f32 %v1322, %v1446
    %v1448 = vpop.f32.mrb[0].mxu0
    %1449 = vdwg.mxu0
    %1450 = vmatprep.subr.mxu0 0.0
    %v1451 = vand.u32 %v196, 4294901760
    %1452 = vmatpush1.msra.mxu0 %v1451
    %1453 = vmatprep.subr.mxu0 0.0
    %v1454 = vand.u32 %v197, 4294901760
    %1455 = vmatpush1.msra.mxu0 %v1454
    %1456 = vmatprep.subr.mxu0 0.0
    %v1457 = vand.u32 %v198, 4294901760
    %1458 = vmatpush1.msra.mxu0 %v1457
    %1459 = vmatprep.subr.mxu0 0.0
    %v1460 = vand.u32 %v199, 4294901760
    %1461 = vmatpush1.msra.mxu0 %v1460
    %1462 = vmatprep.subr.mxu0 0.0
    %v1463 = vand.u32 %v200, 4294901760
    %1464 = vmatpush1.msra.mxu0 %v1463
    %1465 = vmatprep.subr.mxu0 0.0
    %v1466 = vand.u32 %v201, 4294901760
    %1467 = vmatpush1.msra.mxu0 %v1466
    %1468 = vmatprep.subr.mxu0 0.0
    %v1469 = vand.u32 %v202, 4294901760
    %1470 = vmatpush1.msra.mxu0 %v1469
    %1471 = vmatprep.subr.mxu0 0.0
    %v1472 = vand.u32 %v203, 4294901760
    %1473 = vmatpush1.msra.mxu0 %v1472
    %1474 = vmatprep.subr.mxu0 0.0
    %v1475 = vand.u32 %v204, 4294901760
    %1476 = vmatpush1.msra.mxu0 %v1475
    %1477 = vmatprep.subr.mxu0 0.0
    %v1478 = vand.u32 %v205, 4294901760
    %1479 = vmatpush1.msra.mxu0 %v1478
    %1480 = vmatprep.subr.mxu0 0.0
    %v1481 = vand.u32 %v206, 4294901760
    %1482 = vmatpush1.msra.mxu0 %v1481
    %1483 = vmatprep.subr.mxu0 0.0
    %v1484 = vand.u32 %v207, 4294901760
    %1485 = vmatpush1.msra.mxu0 %v1484
    %1486 = vmatprep.subr.mxu0 0.0
    %v1487 = vand.u32 %v208, 4294901760
    %1488 = vmatpush1.msra.mxu0 %v1487
    %1489 = vmatprep.subr.mxu0 0.0
    %v1490 = vand.u32 %v209, 4294901760
    %1491 = vmatpush1.msra.mxu0 %v1490
    %1492 = vmatprep.subr.mxu0 0.0
    %v1493 = vand.u32 %v210, 4294901760
    %1494 = vmatpush1.msra.mxu0 %v1493
    %1495 = vmatprep.subr.mxu0 0.0
    %v1496 = vand.u32 %v211, 4294901760
    %1497 = vmatpush1.msra.mxu0 %v1496
    %1498 = vmatprep.subr.mxu0 0.0
    %1499 = vmatpush1.msra.mxu0 0.0
    %1500 = vmatprep.subr.mxu0 0.0
    %1501 = vmatpush1.msra.mxu0 0.0
    %1502 = vmatprep.subr.mxu0 0.0
    %1503 = vmatpush1.msra.mxu0 0.0
    %1504 = vmatprep.subr.mxu0 0.0
    %1505 = vmatpush1.msra.mxu0 0.0
    %1506 = vmatprep.subr.mxu0 0.0
    %1507 = vmatpush1.msra.mxu0 0.0
    %1508 = vmatprep.subr.mxu0 0.0
    %1509 = vmatpush1.msra.mxu0 0.0
    %1510 = vmatprep.subr.mxu0 0.0
    %1511 = vmatpush1.msra.mxu0 0.0
    %1512 = vmatprep.subr.mxu0 0.0
    %1513 = vmatpush1.msra.mxu0 0.0
    %1514 = vmatprep.subr.mxu0 0.0
    %1515 = vmatpush1.msra.mxu0 0.0
    %1516 = vmatprep.subr.mxu0 0.0
    %1517 = vmatpush1.msra.mxu0 0.0
    %1518 = vmatprep.subr.mxu0 0.0
    %1519 = vmatpush1.msra.mxu0 0.0
    %1520 = vmatprep.subr.mxu0 0.0
    %1521 = vmatpush1.msra.mxu0 0.0
    %1522 = vmatprep.subr.mxu0 0.0
    %1523 = vmatpush1.msra.mxu0 0.0
    %1524 = vmatprep.subr.mxu0 0.0
    %1525 = vmatpush1.msra.mxu0 0.0
    %1526 = vmatprep.subr.mxu0 0.0
    %1527 = vmatpush1.msra.mxu0 0.0
    %1528 = vmatprep.subr.mxu0 0.0
    %1529 = vmatpush1.msra.mxu0 0.0
    %1530 = vmatprep.mubr.f32.mxu0 0.0
    %v1531 = vand.u32 %v77, 4294901760
    %v1532 = vsub.f32 %v77, %v1531
    %v1533 = vand.u32 %v1532, 4294901760
    %1534 = vmatmul.mubr.f32.gmra.mrb[0].mxu0 %v1533
    %v1535 = vpop.f32.mrb[0].mxu0
    %v1536 = vadd.f32 %v1426, %v1535
    %v1537 = vpop.f32.mrb[0].mxu0
    %1538 = vmatprep.mubr.f32.mxu0 0.0
    %v1539 = vand.u32 %v78, 4294901760
    %v1540 = vsub.f32 %v78, %v1539
    %v1541 = vand.u32 %v1540, 4294901760
    %1542 = vmatmul.mubr.f32.gmra.mrb[0].mxu0 %v1541
    %v1543 = vpop.f32.mrb[0].mxu0
    %v1544 = vadd.f32 %v1433, %v1543
    %v1545 = vpop.f32.mrb[0].mxu0
    %1546 = vmatprep.mubr.f32.mxu0 0.0
    %v1547 = vand.u32 %v79, 4294901760
    %v1548 = vsub.f32 %v79, %v1547
    %v1549 = vand.u32 %v1548, 4294901760
    %1550 = vmatmul.mubr.f32.gmra.mrb[0].mxu0 %v1549
    %v1551 = vpop.f32.mrb[0].mxu0
    %v1552 = vadd.f32 %v1440, %v1551
    %v1553 = vpop.f32.mrb[0].mxu0
    %1554 = vmatprep.mubr.f32.mxu0 0.0
    %v1555 = vand.u32 %v80, 4294901760
    %v1556 = vsub.f32 %v80, %v1555
    %v1557 = vand.u32 %v1556, 4294901760
    %1558 = vmatmul.mubr.f32.gmra.mrb[0].mxu0 %v1557
    %v1559 = vpop.f32.mrb[0].mxu0
    %v1560 = vadd.f32 %v1447, %v1559
    %v1561 = vpop.f32.mrb[0].mxu0
    %1562 = vdwg.mxu0
    %1563 = vmatprep.subr.mxu0 0.0
    %v1564 = vand.u32 %v196, 4294901760
    %v1565 = vsub.f32 %v196, %v1564
    %v1566 = vand.u32 %v1565, 4294901760
    %1567 = vmatpush1.msra.mxu0 %v1566
    %1568 = vmatprep.subr.mxu0 0.0
    %v1569 = vand.u32 %v197, 4294901760
    %v1570 = vsub.f32 %v197, %v1569
    %v1571 = vand.u32 %v1570, 4294901760
    %1572 = vmatpush1.msra.mxu0 %v1571
    %1573 = vmatprep.subr.mxu0 0.0
    %v1574 = vand.u32 %v198, 4294901760
    %v1575 = vsub.f32 %v198, %v1574
    %v1576 = vand.u32 %v1575, 4294901760
    %1577 = vmatpush1.msra.mxu0 %v1576
    %1578 = vmatprep.subr.mxu0 0.0
    %v1579 = vand.u32 %v199, 4294901760
    %v1580 = vsub.f32 %v199, %v1579
    %v1581 = vand.u32 %v1580, 4294901760
    %1582 = vmatpush1.msra.mxu0 %v1581
    %1583 = vmatprep.subr.mxu0 0.0
    %v1584 = vand.u32 %v200, 4294901760
    %v1585 = vsub.f32 %v200, %v1584
    %v1586 = vand.u32 %v1585, 4294901760
    %1587 = vmatpush1.msra.mxu0 %v1586
    %1588 = vmatprep.subr.mxu0 0.0
    %v1589 = vand.u32 %v201, 4294901760
    %v1590 = vsub.f32 %v201, %v1589
    %v1591 = vand.u32 %v1590, 4294901760
    %1592 = vmatpush1.msra.mxu0 %v1591
    %1593 = vmatprep.subr.mxu0 0.0
    %v1594 = vand.u32 %v202, 4294901760
    %v1595 = vsub.f32 %v202, %v1594
    %v1596 = vand.u32 %v1595, 4294901760
    %1597 = vmatpush1.msra.mxu0 %v1596
    %1598 = vmatprep.subr.mxu0 0.0
    %v1599 = vand.u32 %v203, 4294901760
    %v1600 = vsub.f32 %v203, %v1599
    %v1601 = vand.u32 %v1600, 4294901760
    %1602 = vmatpush1.msra.mxu0 %v1601
    %1603 = vmatprep.subr.mxu0 0.0
    %v1604 = vand.u32 %v204, 4294901760
    %v1605 = vsub.f32 %v204, %v1604
    %v1606 = vand.u32 %v1605, 4294901760
    %1607 = vmatpush1.msra.mxu0 %v1606
    %1608 = vmatprep.subr.mxu0 0.0
    %v1609 = vand.u32 %v205, 4294901760
    %v1610 = vsub.f32 %v205, %v1609
    %v1611 = vand.u32 %v1610, 4294901760
    %1612 = vmatpush1.msra.mxu0 %v1611
    %1613 = vmatprep.subr.mxu0 0.0
    %v1614 = vand.u32 %v206, 4294901760
    %v1615 = vsub.f32 %v206, %v1614
    %v1616 = vand.u32 %v1615, 4294901760
    %1617 = vmatpush1.msra.mxu0 %v1616
    %1618 = vmatprep.subr.mxu0 0.0
    %v1619 = vand.u32 %v207, 4294901760
    %v1620 = vsub.f32 %v207, %v1619
    %v1621 = vand.u32 %v1620, 4294901760
    %1622 = vmatpush1.msra.mxu0 %v1621
    %1623 = vmatprep.subr.mxu0 0.0
    %v1624 = vand.u32 %v208, 4294901760
    %v1625 = vsub.f32 %v208, %v1624
    %v1626 = vand.u32 %v1625, 4294901760
    %1627 = vmatpush1.msra.mxu0 %v1626
    %1628 = vmatprep.subr.mxu0 0.0
    %v1629 = vand.u32 %v209, 4294901760
    %v1630 = vsub.f32 %v209, %v1629
    %v1631 = vand.u32 %v1630, 4294901760
    %1632 = vmatpush1.msra.mxu0 %v1631
    %1633 = vmatprep.subr.mxu0 0.0
    %v1634 = vand.u32 %v210, 4294901760
    %v1635 = vsub.f32 %v210, %v1634
    %v1636 = vand.u32 %v1635, 4294901760
    %1637 = vmatpush1.msra.mxu0 %v1636
    %1638 = vmatprep.subr.mxu0 0.0
    %v1639 = vand.u32 %v211, 4294901760
    %v1640 = vsub.f32 %v211, %v1639
    %v1641 = vand.u32 %v1640, 4294901760
    %1642 = vmatpush1.msra.mxu0 %v1641
    %1643 = vmatprep.subr.mxu0 0.0
    %1644 = vmatpush1.msra.mxu0 0.0
    %1645 = vmatprep.subr.mxu0 0.0
    %1646 = vmatpush1.msra.mxu0 0.0
    %1647 = vmatprep.subr.mxu0 0.0
    %1648 = vmatpush1.msra.mxu0 0.0
    %1649 = vmatprep.subr.mxu0 0.0
    %1650 = vmatpush1.msra.mxu0 0.0
    %1651 = vmatprep.subr.mxu0 0.0
    %1652 = vmatpush1.msra.mxu0 0.0
    %1653 = vmatprep.subr.mxu0 0.0
    %1654 = vmatpush1.msra.mxu0 0.0
    %1655 = vmatprep.subr.mxu0 0.0
    %1656 = vmatpush1.msra.mxu0 0.0
    %1657 = vmatprep.subr.mxu0 0.0
    %1658 = vmatpush1.msra.mxu0 0.0
    %1659 = vmatprep.subr.mxu0 0.0
    %1660 = vmatpush1.msra.mxu0 0.0
    %1661 = vmatprep.subr.mxu0 0.0
    %1662 = vmatpush1.msra.mxu0 0.0
    %1663 = vmatprep.subr.mxu0 0.0
    %1664 = vmatpush1.msra.mxu0 0.0
    %1665 = vmatprep.subr.mxu0 0.0
    %1666 = vmatpush1.msra.mxu0 0.0
    %1667 = vmatprep.subr.mxu0 0.0
    %1668 = vmatpush1.msra.mxu0 0.0
    %1669 = vmatprep.subr.mxu0 0.0
    %1670 = vmatpush1.msra.mxu0 0.0
    %1671 = vmatprep.subr.mxu0 0.0
    %1672 = vmatpush1.msra.mxu0 0.0
    %1673 = vmatprep.subr.mxu0 0.0
    %1674 = vmatpush1.msra.mxu0 0.0
    %1675 = vmatprep.mubr.f32.mxu0 0.0
    %v1676 = vand.u32 %v77, 4294901760
    %1677 = vmatmul.mubr.f32.gmra.mrb[0].mxu0 %v1676
    %v1678 = vpop.f32.mrb[0].mxu0
    %v1679 = vadd.f32 %v1536, %v1678
    %v1680 = vpop.f32.mrb[0].mxu0
    %1681 = vmatprep.mubr.f32.mxu0 0.0
    %v1682 = vand.u32 %v78, 4294901760
    %1683 = vmatmul.mubr.f32.gmra.mrb[0].mxu0 %v1682
    %v1684 = vpop.f32.mrb[0].mxu0
    %v1685 = vadd.f32 %v1544, %v1684
    %v1686 = vpop.f32.mrb[0].mxu0
    %1687 = vmatprep.mubr.f32.mxu0 0.0
    %v1688 = vand.u32 %v79, 4294901760
    %1689 = vmatmul.mubr.f32.gmra.mrb[0].mxu0 %v1688
    %v1690 = vpop.f32.mrb[0].mxu0
    %v1691 = vadd.f32 %v1552, %v1690
    %v1692 = vpop.f32.mrb[0].mxu0
    %1693 = vmatprep.mubr.f32.mxu0 0.0
    %v1694 = vand.u32 %v80, 4294901760
    %1695 = vmatmul.mubr.f32.gmra.mrb[0].mxu0 %v1694
    %v1696 = vpop.f32.mrb[0].mxu0
    %v1697 = vadd.f32 %v1560, %v1696
    %v1698 = vpop.f32.mrb[0].mxu0
    %1699 = vdwg.mxu0
    %1700 = vmatprep.subr.mxu0 0.0
    %v1701 = vand.u32 %v196, 4294901760
    %1702 = vmatpush1.msra.mxu0 %v1701
    %1703 = vmatprep.subr.mxu0 0.0
    %v1704 = vand.u32 %v197, 4294901760
    %1705 = vmatpush1.msra.mxu0 %v1704
    %1706 = vmatprep.subr.mxu0 0.0
    %v1707 = vand.u32 %v198, 4294901760
    %1708 = vmatpush1.msra.mxu0 %v1707
    %1709 = vmatprep.subr.mxu0 0.0
    %v1710 = vand.u32 %v199, 4294901760
    %1711 = vmatpush1.msra.mxu0 %v1710
    %1712 = vmatprep.subr.mxu0 0.0
    %v1713 = vand.u32 %v200, 4294901760
    %1714 = vmatpush1.msra.mxu0 %v1713
    %1715 = vmatprep.subr.mxu0 0.0
    %v1716 = vand.u32 %v201, 4294901760
    %1717 = vmatpush1.msra.mxu0 %v1716
    %1718 = vmatprep.subr.mxu0 0.0
    %v1719 = vand.u32 %v202, 4294901760
    %1720 = vmatpush1.msra.mxu0 %v1719
    %1721 = vmatprep.subr.mxu0 0.0
    %v1722 = vand.u32 %v203, 4294901760
    %1723 = vmatpush1.msra.mxu0 %v1722
    %1724 = vmatprep.subr.mxu0 0.0
    %v1725 = vand.u32 %v204, 4294901760
    %1726 = vmatpush1.msra.mxu0 %v1725
    %1727 = vmatprep.subr.mxu0 0.0
    %v1728 = vand.u32 %v205, 4294901760
    %1729 = vmatpush1.msra.mxu0 %v1728
    %1730 = vmatprep.subr.mxu0 0.0
    %v1731 = vand.u32 %v206, 4294901760
    %1732 = vmatpush1.msra.mxu0 %v1731
    %1733 = vmatprep.subr.mxu0 0.0
    %v1734 = vand.u32 %v207, 4294901760
    %1735 = vmatpush1.msra.mxu0 %v1734
    %1736 = vmatprep.subr.mxu0 0.0
    %v1737 = vand.u32 %v208, 4294901760
    %1738 = vmatpush1.msra.mxu0 %v1737
    %1739 = vmatprep.subr.mxu0 0.0
    %v1740 = vand.u32 %v209, 4294901760
    %1741 = vmatpush1.msra.mxu0 %v1740
    %1742 = vmatprep.subr.mxu0 0.0
    %v1743 = vand.u32 %v210, 4294901760
    %1744 = vmatpush1.msra.mxu0 %v1743
    %1745 = vmatprep.subr.mxu0 0.0
    %v1746 = vand.u32 %v211, 4294901760
    %1747 = vmatpush1.msra.mxu0 %v1746
    %1748 = vmatprep.subr.mxu0 0.0
    %1749 = vmatpush1.msra.mxu0 0.0
    %1750 = vmatprep.subr.mxu0 0.0
    %1751 = vmatpush1.msra.mxu0 0.0
    %1752 = vmatprep.subr.mxu0 0.0
    %1753 = vmatpush1.msra.mxu0 0.0
    %1754 = vmatprep.subr.mxu0 0.0
    %1755 = vmatpush1.msra.mxu0 0.0
    %1756 = vmatprep.subr.mxu0 0.0
    %1757 = vmatpush1.msra.mxu0 0.0
    %1758 = vmatprep.subr.mxu0 0.0
    %1759 = vmatpush1.msra.mxu0 0.0
    %1760 = vmatprep.subr.mxu0 0.0
    %1761 = vmatpush1.msra.mxu0 0.0
    %1762 = vmatprep.subr.mxu0 0.0
    %1763 = vmatpush1.msra.mxu0 0.0
    %1764 = vmatprep.subr.mxu0 0.0
    %1765 = vmatpush1.msra.mxu0 0.0
    %1766 = vmatprep.subr.mxu0 0.0
    %1767 = vmatpush1.msra.mxu0 0.0
    %1768 = vmatprep.subr.mxu0 0.0
    %1769 = vmatpush1.msra.mxu0 0.0
    %1770 = vmatprep.subr.mxu0 0.0
    %1771 = vmatpush1.msra.mxu0 0.0
    %1772 = vmatprep.subr.mxu0 0.0
    %1773 = vmatpush1.msra.mxu0 0.0
    %1774 = vmatprep.subr.mxu0 0.0
    %1775 = vmatpush1.msra.mxu0 0.0
    %1776 = vmatprep.subr.mxu0 0.0
    %1777 = vmatpush1.msra.mxu0 0.0
    %1778 = vmatprep.subr.mxu0 0.0
    %1779 = vmatpush1.msra.mxu0 0.0
    %1780 = vmatprep.mubr.f32.mxu0 0.0
    %v1781 = vand.u32 %v77, 4294901760
    %1782 = vmatmul.mubr.f32.gmra.mrb[0].mxu0 %v1781
    %v1783 = vpop.f32.mrb[0].mxu0
    %v1784 = vadd.f32 %v1679, %v1783
    %v1785 = vpop.f32.mrb[0].mxu0
    %1786 = vmatprep.mubr.f32.mxu0 0.0
    %v1787 = vand.u32 %v78, 4294901760
    %1788 = vmatmul.mubr.f32.gmra.mrb[0].mxu0 %v1787
    %v1789 = vpop.f32.mrb[0].mxu0
    %v1790 = vadd.f32 %v1685, %v1789
    %v1791 = vpop.f32.mrb[0].mxu0
    %1792 = vmatprep.mubr.f32.mxu0 0.0
    %v1793 = vand.u32 %v79, 4294901760
    %1794 = vmatmul.mubr.f32.gmra.mrb[0].mxu0 %v1793
    %v1795 = vpop.f32.mrb[0].mxu0
    %v1796 = vadd.f32 %v1691, %v1795
    %v1797 = vpop.f32.mrb[0].mxu0
    %1798 = vmatprep.mubr.f32.mxu0 0.0
    %v1799 = vand.u32 %v80, 4294901760
    %1800 = vmatmul.mubr.f32.gmra.mrb[0].mxu0 %v1799
    %v1801 = vpop.f32.mrb[0].mxu0
    %v1802 = vadd.f32 %v1697, %v1801
    %v1803 = vpop.f32.mrb[0].mxu0
    %1804 = vdwg.mxu0
    %1805 = vmatprep.subr.mxu0 0.0
    %v1806 = vand.u32 %v249, 4294901760
    %1807 = vmatpush1.msra.mxu0 %v1806
    %1808 = vmatprep.subr.mxu0 0.0
    %v1809 = vand.u32 %v250, 4294901760
    %1810 = vmatpush1.msra.mxu0 %v1809
    %1811 = vmatprep.subr.mxu0 0.0
    %v1812 = vand.u32 %v251, 4294901760
    %1813 = vmatpush1.msra.mxu0 %v1812
    %1814 = vmatprep.subr.mxu0 0.0
    %v1815 = vand.u32 %v252, 4294901760
    %1816 = vmatpush1.msra.mxu0 %v1815
    %1817 = vmatprep.subr.mxu0 0.0
    %v1818 = vand.u32 %v253, 4294901760
    %1819 = vmatpush1.msra.mxu0 %v1818
    %1820 = vmatprep.subr.mxu0 0.0
    %v1821 = vand.u32 %v254, 4294901760
    %1822 = vmatpush1.msra.mxu0 %v1821
    %1823 = vmatprep.subr.mxu0 0.0
    %v1824 = vand.u32 %v255, 4294901760
    %1825 = vmatpush1.msra.mxu0 %v1824
    %1826 = vmatprep.subr.mxu0 0.0
    %v1827 = vand.u32 %v256, 4294901760
    %1828 = vmatpush1.msra.mxu0 %v1827
    %1829 = vmatprep.subr.mxu0 0.0
    %v1830 = vand.u32 %v257, 4294901760
    %1831 = vmatpush1.msra.mxu0 %v1830
    %1832 = vmatprep.subr.mxu0 0.0
    %v1833 = vand.u32 %v258, 4294901760
    %1834 = vmatpush1.msra.mxu0 %v1833
    %1835 = vmatprep.subr.mxu0 0.0
    %v1836 = vand.u32 %v259, 4294901760
    %1837 = vmatpush1.msra.mxu0 %v1836
    %1838 = vmatprep.subr.mxu0 0.0
    %v1839 = vand.u32 %v260, 4294901760
    %1840 = vmatpush1.msra.mxu0 %v1839
    %1841 = vmatprep.subr.mxu0 0.0
    %v1842 = vand.u32 %v261, 4294901760
    %1843 = vmatpush1.msra.mxu0 %v1842
    %1844 = vmatprep.subr.mxu0 0.0
    %v1845 = vand.u32 %v262, 4294901760
    %1846 = vmatpush1.msra.mxu0 %v1845
    %1847 = vmatprep.subr.mxu0 0.0
    %v1848 = vand.u32 %v263, 4294901760
    %1849 = vmatpush1.msra.mxu0 %v1848
    %1850 = vmatprep.subr.mxu0 0.0
    %v1851 = vand.u32 %v264, 4294901760
    %1852 = vmatpush1.msra.mxu0 %v1851
    %1853 = vmatprep.subr.mxu0 0.0
    %1854 = vmatpush1.msra.mxu0 0.0
    %1855 = vmatprep.subr.mxu0 0.0
    %1856 = vmatpush1.msra.mxu0 0.0
    %1857 = vmatprep.subr.mxu0 0.0
    %1858 = vmatpush1.msra.mxu0 0.0
    %1859 = vmatprep.subr.mxu0 0.0
    %1860 = vmatpush1.msra.mxu0 0.0
    %1861 = vmatprep.subr.mxu0 0.0
    %1862 = vmatpush1.msra.mxu0 0.0
    %1863 = vmatprep.subr.mxu0 0.0
    %1864 = vmatpush1.msra.mxu0 0.0
    %1865 = vmatprep.subr.mxu0 0.0
    %1866 = vmatpush1.msra.mxu0 0.0
    %1867 = vmatprep.subr.mxu0 0.0
    %1868 = vmatpush1.msra.mxu0 0.0
    %1869 = vmatprep.subr.mxu0 0.0
    %1870 = vmatpush1.msra.mxu0 0.0
    %1871 = vmatprep.subr.mxu0 0.0
    %1872 = vmatpush1.msra.mxu0 0.0
    %1873 = vmatprep.subr.mxu0 0.0
    %1874 = vmatpush1.msra.mxu0 0.0
    %1875 = vmatprep.subr.mxu0 0.0
    %1876 = vmatpush1.msra.mxu0 0.0
    %1877 = vmatprep.subr.mxu0 0.0
    %1878 = vmatpush1.msra.mxu0 0.0
    %1879 = vmatprep.subr.mxu0 0.0
    %1880 = vmatpush1.msra.mxu0 0.0
    %1881 = vmatprep.subr.mxu0 0.0
    %1882 = vmatpush1.msra.mxu0 0.0
    %1883 = vmatprep.subr.mxu0 0.0
    %1884 = vmatpush1.msra.mxu0 0.0
    %1885 = vmatprep.mubr.f32.mxu0 0.0
    %v1886 = vand.u32 %v81, 4294901760
    %v1887 = vsub.f32 %v81, %v1886
    %v1888 = vand.u32 %v1887, 4294901760
    %v1889 = vsub.f32 %v1887, %v1888
    %v1890 = vand.u32 %v1889, 4294901760
    %1891 = vmatmul.mubr.f32.gmra.mrb[0].mxu0 %v1890
    %v1892 = vpop.f32.mrb[0].mxu0
    %v1893 = vadd.f32 0.0, %v1892
    %v1894 = vpop.f32.mrb[0].mxu0
    %1895 = vmatprep.mubr.f32.mxu0 0.0
    %v1896 = vand.u32 %v82, 4294901760
    %v1897 = vsub.f32 %v82, %v1896
    %v1898 = vand.u32 %v1897, 4294901760
    %v1899 = vsub.f32 %v1897, %v1898
    %v1900 = vand.u32 %v1899, 4294901760
    %1901 = vmatmul.mubr.f32.gmra.mrb[0].mxu0 %v1900
    %v1902 = vpop.f32.mrb[0].mxu0
    %v1903 = vadd.f32 0.0, %v1902
    %v1904 = vpop.f32.mrb[0].mxu0
    %1905 = vmatprep.mubr.f32.mxu0 0.0
    %v1906 = vand.u32 %v83, 4294901760
    %v1907 = vsub.f32 %v83, %v1906
    %v1908 = vand.u32 %v1907, 4294901760
    %v1909 = vsub.f32 %v1907, %v1908
    %v1910 = vand.u32 %v1909, 4294901760
    %1911 = vmatmul.mubr.f32.gmra.mrb[0].mxu0 %v1910
    %v1912 = vpop.f32.mrb[0].mxu0
    %v1913 = vadd.f32 0.0, %v1912
    %v1914 = vpop.f32.mrb[0].mxu0
    %1915 = vmatprep.mubr.f32.mxu0 0.0
    %v1916 = vand.u32 %v84, 4294901760
    %v1917 = vsub.f32 %v84, %v1916
    %v1918 = vand.u32 %v1917, 4294901760
    %v1919 = vsub.f32 %v1917, %v1918
    %v1920 = vand.u32 %v1919, 4294901760
    %1921 = vmatmul.mubr.f32.gmra.mrb[0].mxu0 %v1920
    %v1922 = vpop.f32.mrb[0].mxu0
    %v1923 = vadd.f32 0.0, %v1922
    %v1924 = vpop.f32.mrb[0].mxu0
    %1925 = vdwg.mxu0
    %1926 = vmatprep.subr.mxu0 0.0
    %v1927 = vand.u32 %v249, 4294901760
    %v1928 = vsub.f32 %v249, %v1927
    %v1929 = vand.u32 %v1928, 4294901760
    %v1930 = vsub.f32 %v1928, %v1929
    %v1931 = vand.u32 %v1930, 4294901760
    %1932 = vmatpush1.msra.mxu0 %v1931
    %1933 = vmatprep.subr.mxu0 0.0
    %v1934 = vand.u32 %v250, 4294901760
    %v1935 = vsub.f32 %v250, %v1934
    %v1936 = vand.u32 %v1935, 4294901760
    %v1937 = vsub.f32 %v1935, %v1936
    %v1938 = vand.u32 %v1937, 4294901760
    %1939 = vmatpush1.msra.mxu0 %v1938
    %1940 = vmatprep.subr.mxu0 0.0
    %v1941 = vand.u32 %v251, 4294901760
    %v1942 = vsub.f32 %v251, %v1941
    %v1943 = vand.u32 %v1942, 4294901760
    %v1944 = vsub.f32 %v1942, %v1943
    %v1945 = vand.u32 %v1944, 4294901760
    %1946 = vmatpush1.msra.mxu0 %v1945
    %1947 = vmatprep.subr.mxu0 0.0
    %v1948 = vand.u32 %v252, 4294901760
    %v1949 = vsub.f32 %v252, %v1948
    %v1950 = vand.u32 %v1949, 4294901760
    %v1951 = vsub.f32 %v1949, %v1950
    %v1952 = vand.u32 %v1951, 4294901760
    %1953 = vmatpush1.msra.mxu0 %v1952
    %1954 = vmatprep.subr.mxu0 0.0
    %v1955 = vand.u32 %v253, 4294901760
    %v1956 = vsub.f32 %v253, %v1955
    %v1957 = vand.u32 %v1956, 4294901760
    %v1958 = vsub.f32 %v1956, %v1957
    %v1959 = vand.u32 %v1958, 4294901760
    %1960 = vmatpush1.msra.mxu0 %v1959
    %1961 = vmatprep.subr.mxu0 0.0
    %v1962 = vand.u32 %v254, 4294901760
    %v1963 = vsub.f32 %v254, %v1962
    %v1964 = vand.u32 %v1963, 4294901760
    %v1965 = vsub.f32 %v1963, %v1964
    %v1966 = vand.u32 %v1965, 4294901760
    %1967 = vmatpush1.msra.mxu0 %v1966
    %1968 = vmatprep.subr.mxu0 0.0
    %v1969 = vand.u32 %v255, 4294901760
    %v1970 = vsub.f32 %v255, %v1969
    %v1971 = vand.u32 %v1970, 4294901760
    %v1972 = vsub.f32 %v1970, %v1971
    %v1973 = vand.u32 %v1972, 4294901760
    %1974 = vmatpush1.msra.mxu0 %v1973
    %1975 = vmatprep.subr.mxu0 0.0
    %v1976 = vand.u32 %v256, 4294901760
    %v1977 = vsub.f32 %v256, %v1976
    %v1978 = vand.u32 %v1977, 4294901760
    %v1979 = vsub.f32 %v1977, %v1978
    %v1980 = vand.u32 %v1979, 4294901760
    %1981 = vmatpush1.msra.mxu0 %v1980
    %1982 = vmatprep.subr.mxu0 0.0
    %v1983 = vand.u32 %v257, 4294901760
    %v1984 = vsub.f32 %v257, %v1983
    %v1985 = vand.u32 %v1984, 4294901760
    %v1986 = vsub.f32 %v1984, %v1985
    %v1987 = vand.u32 %v1986, 4294901760
    %1988 = vmatpush1.msra.mxu0 %v1987
    %1989 = vmatprep.subr.mxu0 0.0
    %v1990 = vand.u32 %v258, 4294901760
    %v1991 = vsub.f32 %v258, %v1990
    %v1992 = vand.u32 %v1991, 4294901760
    %v1993 = vsub.f32 %v1991, %v1992
    %v1994 = vand.u32 %v1993, 4294901760
    %1995 = vmatpush1.msra.mxu0 %v1994
    %1996 = vmatprep.subr.mxu0 0.0
    %v1997 = vand.u32 %v259, 4294901760
    %v1998 = vsub.f32 %v259, %v1997
    %v1999 = vand.u32 %v1998, 4294901760
    %v2000 = vsub.f32 %v1998, %v1999
    %v2001 = vand.u32 %v2000, 4294901760
    %2002 = vmatpush1.msra.mxu0 %v2001
    %2003 = vmatprep.subr.mxu0 0.0
    %v2004 = vand.u32 %v260, 4294901760
    %v2005 = vsub.f32 %v260, %v2004
    %v2006 = vand.u32 %v2005, 4294901760
    %v2007 = vsub.f32 %v2005, %v2006
    %v2008 = vand.u32 %v2007, 4294901760
    %2009 = vmatpush1.msra.mxu0 %v2008
    %2010 = vmatprep.subr.mxu0 0.0
    %v2011 = vand.u32 %v261, 4294901760
    %v2012 = vsub.f32 %v261, %v2011
    %v2013 = vand.u32 %v2012, 4294901760
    %v2014 = vsub.f32 %v2012, %v2013
    %v2015 = vand.u32 %v2014, 4294901760
    %2016 = vmatpush1.msra.mxu0 %v2015
    %2017 = vmatprep.subr.mxu0 0.0
    %v2018 = vand.u32 %v262, 4294901760
    %v2019 = vsub.f32 %v262, %v2018
    %v2020 = vand.u32 %v2019, 4294901760
    %v2021 = vsub.f32 %v2019, %v2020
    %v2022 = vand.u32 %v2021, 4294901760
    %2023 = vmatpush1.msra.mxu0 %v2022
    %2024 = vmatprep.subr.mxu0 0.0
    %v2025 = vand.u32 %v263, 4294901760
    %v2026 = vsub.f32 %v263, %v2025
    %v2027 = vand.u32 %v2026, 4294901760
    %v2028 = vsub.f32 %v2026, %v2027
    %v2029 = vand.u32 %v2028, 4294901760
    %2030 = vmatpush1.msra.mxu0 %v2029
    %2031 = vmatprep.subr.mxu0 0.0
    %v2032 = vand.u32 %v264, 4294901760
    %v2033 = vsub.f32 %v264, %v2032
    %v2034 = vand.u32 %v2033, 4294901760
    %v2035 = vsub.f32 %v2033, %v2034
    %v2036 = vand.u32 %v2035, 4294901760
    %2037 = vmatpush1.msra.mxu0 %v2036
    %2038 = vmatprep.subr.mxu0 0.0
    %2039 = vmatpush1.msra.mxu0 0.0
    %2040 = vmatprep.subr.mxu0 0.0
    %2041 = vmatpush1.msra.mxu0 0.0
    %2042 = vmatprep.subr.mxu0 0.0
    %2043 = vmatpush1.msra.mxu0 0.0
    %2044 = vmatprep.subr.mxu0 0.0
    %2045 = vmatpush1.msra.mxu0 0.0
    %2046 = vmatprep.subr.mxu0 0.0
    %2047 = vmatpush1.msra.mxu0 0.0
    %2048 = vmatprep.subr.mxu0 0.0
    %2049 = vmatpush1.msra.mxu0 0.0
    %2050 = vmatprep.subr.mxu0 0.0
    %2051 = vmatpush1.msra.mxu0 0.0
    %2052 = vmatprep.subr.mxu0 0.0
    %2053 = vmatpush1.msra.mxu0 0.0
    %2054 = vmatprep.subr.mxu0 0.0
    %2055 = vmatpush1.msra.mxu0 0.0
    %2056 = vmatprep.subr.mxu0 0.0
    %2057 = vmatpush1.msra.mxu0 0.0
    %2058 = vmatprep.subr.mxu0 0.0
    %2059 = vmatpush1.msra.mxu0 0.0
    %2060 = vmatprep.subr.mxu0 0.0
    %2061 = vmatpush1.msra.mxu0 0.0
    %2062 = vmatprep.subr.mxu0 0.0
    %2063 = vmatpush1.msra.mxu0 0.0
    %2064 = vmatprep.subr.mxu0 0.0
    %2065 = vmatpush1.msra.mxu0 0.0
    %2066 = vmatprep.subr.mxu0 0.0
    %2067 = vmatpush1.msra.mxu0 0.0
    %2068 = vmatprep.subr.mxu0 0.0
    %2069 = vmatpush1.msra.mxu0 0.0
    %2070 = vmatprep.mubr.f32.mxu0 0.0
    %v2071 = vand.u32 %v81, 4294901760
    %2072 = vmatmul.mubr.f32.gmra.mrb[0].mxu0 %v2071
    %v2073 = vpop.f32.mrb[0].mxu0
    %v2074 = vadd.f32 %v1893, %v2073
    %v2075 = vpop.f32.mrb[0].mxu0
    %2076 = vmatprep.mubr.f32.mxu0 0.0
    %v2077 = vand.u32 %v82, 4294901760
    %2078 = vmatmul.mubr.f32.gmra.mrb[0].mxu0 %v2077
    %v2079 = vpop.f32.mrb[0].mxu0
    %v2080 = vadd.f32 %v1903, %v2079
    %v2081 = vpop.f32.mrb[0].mxu0
    %2082 = vmatprep.mubr.f32.mxu0 0.0
    %v2083 = vand.u32 %v83, 4294901760
    %2084 = vmatmul.mubr.f32.gmra.mrb[0].mxu0 %v2083
    %v2085 = vpop.f32.mrb[0].mxu0
    %v2086 = vadd.f32 %v1913, %v2085
    %v2087 = vpop.f32.mrb[0].mxu0
    %2088 = vmatprep.mubr.f32.mxu0 0.0
    %v2089 = vand.u32 %v84, 4294901760
    %2090 = vmatmul.mubr.f32.gmra.mrb[0].mxu0 %v2089
    %v2091 = vpop.f32.mrb[0].mxu0
    %v2092 = vadd.f32 %v1923, %v2091
    %v2093 = vpop.f32.mrb[0].mxu0
    %2094 = vdwg.mxu0
    %2095 = vmatprep.subr.mxu0 0.0
    %v2096 = vand.u32 %v249, 4294901760
    %v2097 = vsub.f32 %v249, %v2096
    %2098 = vmatpush1.msra.mxu0 %v2097
    %2099 = vmatprep.subr.mxu0 0.0
    %v2100 = vand.u32 %v250, 4294901760
    %v2101 = vsub.f32 %v250, %v2100
    %2102 = vmatpush1.msra.mxu0 %v2101
    %2103 = vmatprep.subr.mxu0 0.0
    %v2104 = vand.u32 %v251, 4294901760
    %v2105 = vsub.f32 %v251, %v2104
    %2106 = vmatpush1.msra.mxu0 %v2105
    %2107 = vmatprep.subr.mxu0 0.0
    %v2108 = vand.u32 %v252, 4294901760
    %v2109 = vsub.f32 %v252, %v2108
    %2110 = vmatpush1.msra.mxu0 %v2109
    %2111 = vmatprep.subr.mxu0 0.0
    %v2112 = vand.u32 %v253, 4294901760
    %v2113 = vsub.f32 %v253, %v2112
    %2114 = vmatpush1.msra.mxu0 %v2113
    %2115 = vmatprep.subr.mxu0 0.0
    %v2116 = vand.u32 %v254, 4294901760
    %v2117 = vsub.f32 %v254, %v2116
    %2118 = vmatpush1.msra.mxu0 %v2117
    %2119 = vmatprep.subr.mxu0 0.0
    %v2120 = vand.u32 %v255, 4294901760
    %v2121 = vsub.f32 %v255, %v2120
    %2122 = vmatpush1.msra.mxu0 %v2121
    %2123 = vmatprep.subr.mxu0 0.0
    %v2124 = vand.u32 %v256, 4294901760
    %v2125 = vsub.f32 %v256, %v2124
    %2126 = vmatpush1.msra.mxu0 %v2125
    %2127 = vmatprep.subr.mxu0 0.0
    %v2128 = vand.u32 %v257, 4294901760
    %v2129 = vsub.f32 %v257, %v2128
    %2130 = vmatpush1.msra.mxu0 %v2129
    %2131 = vmatprep.subr.mxu0 0.0
    %v2132 = vand.u32 %v258, 4294901760
    %v2133 = vsub.f32 %v258, %v2132
    %2134 = vmatpush1.msra.mxu0 %v2133
    %2135 = vmatprep.subr.mxu0 0.0
    %v2136 = vand.u32 %v259, 4294901760
    %v2137 = vsub.f32 %v259, %v2136
    %2138 = vmatpush1.msra.mxu0 %v2137
    %2139 = vmatprep.subr.mxu0 0.0
    %v2140 = vand.u32 %v260, 4294901760
    %v2141 = vsub.f32 %v260, %v2140
    %2142 = vmatpush1.msra.mxu0 %v2141
    %2143 = vmatprep.subr.mxu0 0.0
    %v2144 = vand.u32 %v261, 4294901760
    %v2145 = vsub.f32 %v261, %v2144
    %2146 = vmatpush1.msra.mxu0 %v2145
    %2147 = vmatprep.subr.mxu0 0.0
    %v2148 = vand.u32 %v262, 4294901760
    %v2149 = vsub.f32 %v262, %v2148
    %2150 = vmatpush1.msra.mxu0 %v2149
    %2151 = vmatprep.subr.mxu0 0.0
    %v2152 = vand.u32 %v263, 4294901760
    %v2153 = vsub.f32 %v263, %v2152
    %2154 = vmatpush1.msra.mxu0 %v2153
    %2155 = vmatprep.subr.mxu0 0.0
    %v2156 = vand.u32 %v264, 4294901760
    %v2157 = vsub.f32 %v264, %v2156
    %2158 = vmatpush1.msra.mxu0 %v2157
    %2159 = vmatprep.subr.mxu0 0.0
    %2160 = vmatpush1.msra.mxu0 0.0
    %2161 = vmatprep.subr.mxu0 0.0
    %2162 = vmatpush1.msra.mxu0 0.0
    %2163 = vmatprep.subr.mxu0 0.0
    %2164 = vmatpush1.msra.mxu0 0.0
    %2165 = vmatprep.subr.mxu0 0.0
    %2166 = vmatpush1.msra.mxu0 0.0
    %2167 = vmatprep.subr.mxu0 0.0
    %2168 = vmatpush1.msra.mxu0 0.0
    %2169 = vmatprep.subr.mxu0 0.0
    %2170 = vmatpush1.msra.mxu0 0.0
    %2171 = vmatprep.subr.mxu0 0.0
    %2172 = vmatpush1.msra.mxu0 0.0
    %2173 = vmatprep.subr.mxu0 0.0
    %2174 = vmatpush1.msra.mxu0 0.0
    %2175 = vmatprep.subr.mxu0 0.0
    %2176 = vmatpush1.msra.mxu0 0.0
    %2177 = vmatprep.subr.mxu0 0.0
    %2178 = vmatpush1.msra.mxu0 0.0
    %2179 = vmatprep.subr.mxu0 0.0
    %2180 = vmatpush1.msra.mxu0 0.0
    %2181 = vmatprep.subr.mxu0 0.0
    %2182 = vmatpush1.msra.mxu0 0.0
    %2183 = vmatprep.subr.mxu0 0.0
    %2184 = vmatpush1.msra.mxu0 0.0
    %2185 = vmatprep.subr.mxu0 0.0
    %2186 = vmatpush1.msra.mxu0 0.0
    %2187 = vmatprep.subr.mxu0 0.0
    %2188 = vmatpush1.msra.mxu0 0.0
    %2189 = vmatprep.subr.mxu0 0.0
    %2190 = vmatpush1.msra.mxu0 0.0
    %2191 = vmatprep.mubr.f32.mxu0 0.0
    %v2192 = vand.u32 %v81, 4294901760
    %v2193 = vsub.f32 %v81, %v2192
    %2194 = vmatmul.mubr.f32.gmra.mrb[0].mxu0 %v2193
    %v2195 = vpop.f32.mrb[0].mxu0
    %v2196 = vadd.f32 %v2074, %v2195
    %v2197 = vpop.f32.mrb[0].mxu0
    %2198 = vmatprep.mubr.f32.mxu0 0.0
    %v2199 = vand.u32 %v82, 4294901760
    %v2200 = vsub.f32 %v82, %v2199
    %2201 = vmatmul.mubr.f32.gmra.mrb[0].mxu0 %v2200
    %v2202 = vpop.f32.mrb[0].mxu0
    %v2203 = vadd.f32 %v2080, %v2202
    %v2204 = vpop.f32.mrb[0].mxu0
    %2205 = vmatprep.mubr.f32.mxu0 0.0
    %v2206 = vand.u32 %v83, 4294901760
    %v2207 = vsub.f32 %v83, %v2206
    %2208 = vmatmul.mubr.f32.gmra.mrb[0].mxu0 %v2207
    %v2209 = vpop.f32.mrb[0].mxu0
    %v2210 = vadd.f32 %v2086, %v2209
    %v2211 = vpop.f32.mrb[0].mxu0
    %2212 = vmatprep.mubr.f32.mxu0 0.0
    %v2213 = vand.u32 %v84, 4294901760
    %v2214 = vsub.f32 %v84, %v2213
    %2215 = vmatmul.mubr.f32.gmra.mrb[0].mxu0 %v2214
    %v2216 = vpop.f32.mrb[0].mxu0
    %v2217 = vadd.f32 %v2092, %v2216
    %v2218 = vpop.f32.mrb[0].mxu0
    %2219 = vdwg.mxu0
    %2220 = vmatprep.subr.mxu0 0.0
    %v2221 = vand.u32 %v249, 4294901760
    %2222 = vmatpush1.msra.mxu0 %v2221
    %2223 = vmatprep.subr.mxu0 0.0
    %v2224 = vand.u32 %v250, 4294901760
    %2225 = vmatpush1.msra.mxu0 %v2224
    %2226 = vmatprep.subr.mxu0 0.0
    %v2227 = vand.u32 %v251, 4294901760
    %2228 = vmatpush1.msra.mxu0 %v2227
    %2229 = vmatprep.subr.mxu0 0.0
    %v2230 = vand.u32 %v252, 4294901760
    %2231 = vmatpush1.msra.mxu0 %v2230
    %2232 = vmatprep.subr.mxu0 0.0
    %v2233 = vand.u32 %v253, 4294901760
    %2234 = vmatpush1.msra.mxu0 %v2233
    %2235 = vmatprep.subr.mxu0 0.0
    %v2236 = vand.u32 %v254, 4294901760
    %2237 = vmatpush1.msra.mxu0 %v2236
    %2238 = vmatprep.subr.mxu0 0.0
    %v2239 = vand.u32 %v255, 4294901760
    %2240 = vmatpush1.msra.mxu0 %v2239
    %2241 = vmatprep.subr.mxu0 0.0
    %v2242 = vand.u32 %v256, 4294901760
    %2243 = vmatpush1.msra.mxu0 %v2242
    %2244 = vmatprep.subr.mxu0 0.0
    %v2245 = vand.u32 %v257, 4294901760
    %2246 = vmatpush1.msra.mxu0 %v2245
    %2247 = vmatprep.subr.mxu0 0.0
    %v2248 = vand.u32 %v258, 4294901760
    %2249 = vmatpush1.msra.mxu0 %v2248
    %2250 = vmatprep.subr.mxu0 0.0
    %v2251 = vand.u32 %v259, 4294901760
    %2252 = vmatpush1.msra.mxu0 %v2251
    %2253 = vmatprep.subr.mxu0 0.0
    %v2254 = vand.u32 %v260, 4294901760
    %2255 = vmatpush1.msra.mxu0 %v2254
    %2256 = vmatprep.subr.mxu0 0.0
    %v2257 = vand.u32 %v261, 4294901760
    %2258 = vmatpush1.msra.mxu0 %v2257
    %2259 = vmatprep.subr.mxu0 0.0
    %v2260 = vand.u32 %v262, 4294901760
    %2261 = vmatpush1.msra.mxu0 %v2260
    %2262 = vmatprep.subr.mxu0 0.0
    %v2263 = vand.u32 %v263, 4294901760
    %2264 = vmatpush1.msra.mxu0 %v2263
    %2265 = vmatprep.subr.mxu0 0.0
    %v2266 = vand.u32 %v264, 4294901760
    %2267 = vmatpush1.msra.mxu0 %v2266
    %2268 = vmatprep.subr.mxu0 0.0
    %2269 = vmatpush1.msra.mxu0 0.0
    %2270 = vmatprep.subr.mxu0 0.0
    %2271 = vmatpush1.msra.mxu0 0.0
    %2272 = vmatprep.subr.mxu0 0.0
    %2273 = vmatpush1.msra.mxu0 0.0
    %2274 = vmatprep.subr.mxu0 0.0
    %2275 = vmatpush1.msra.mxu0 0.0
    %2276 = vmatprep.subr.mxu0 0.0
    %2277 = vmatpush1.msra.mxu0 0.0
    %2278 = vmatprep.subr.mxu0 0.0
    %2279 = vmatpush1.msra.mxu0 0.0
    %2280 = vmatprep.subr.mxu0 0.0
    %2281 = vmatpush1.msra.mxu0 0.0
    %2282 = vmatprep.subr.mxu0 0.0
    %2283 = vmatpush1.msra.mxu0 0.0
    %2284 = vmatprep.subr.mxu0 0.0
    %2285 = vmatpush1.msra.mxu0 0.0
    %2286 = vmatprep.subr.mxu0 0.0
    %2287 = vmatpush1.msra.mxu0 0.0
    %2288 = vmatprep.subr.mxu0 0.0
    %2289 = vmatpush1.msra.mxu0 0.0
    %2290 = vmatprep.subr.mxu0 0.0
    %2291 = vmatpush1.msra.mxu0 0.0
    %2292 = vmatprep.subr.mxu0 0.0
    %2293 = vmatpush1.msra.mxu0 0.0
    %2294 = vmatprep.subr.mxu0 0.0
    %2295 = vmatpush1.msra.mxu0 0.0
    %2296 = vmatprep.subr.mxu0 0.0
    %2297 = vmatpush1.msra.mxu0 0.0
    %2298 = vmatprep.subr.mxu0 0.0
    %2299 = vmatpush1.msra.mxu0 0.0
    %2300 = vmatprep.mubr.f32.mxu0 0.0
    %v2301 = vand.u32 %v81, 4294901760
    %v2302 = vsub.f32 %v81, %v2301
    %v2303 = vand.u32 %v2302, 4294901760
    %2304 = vmatmul.mubr.f32.gmra.mrb[0].mxu0 %v2303
    %v2305 = vpop.f32.mrb[0].mxu0
    %v2306 = vadd.f32 %v2196, %v2305
    %v2307 = vpop.f32.mrb[0].mxu0
    %2308 = vmatprep.mubr.f32.mxu0 0.0
    %v2309 = vand.u32 %v82, 4294901760
    %v2310 = vsub.f32 %v82, %v2309
    %v2311 = vand.u32 %v2310, 4294901760
    %2312 = vmatmul.mubr.f32.gmra.mrb[0].mxu0 %v2311
    %v2313 = vpop.f32.mrb[0].mxu0
    %v2314 = vadd.f32 %v2203, %v2313
    %v2315 = vpop.f32.mrb[0].mxu0
    %2316 = vmatprep.mubr.f32.mxu0 0.0
    %v2317 = vand.u32 %v83, 4294901760
    %v2318 = vsub.f32 %v83, %v2317
    %v2319 = vand.u32 %v2318, 4294901760
    %2320 = vmatmul.mubr.f32.gmra.mrb[0].mxu0 %v2319
    %v2321 = vpop.f32.mrb[0].mxu0
    %v2322 = vadd.f32 %v2210, %v2321
    %v2323 = vpop.f32.mrb[0].mxu0
    %2324 = vmatprep.mubr.f32.mxu0 0.0
    %v2325 = vand.u32 %v84, 4294901760
    %v2326 = vsub.f32 %v84, %v2325
    %v2327 = vand.u32 %v2326, 4294901760
    %2328 = vmatmul.mubr.f32.gmra.mrb[0].mxu0 %v2327
    %v2329 = vpop.f32.mrb[0].mxu0
    %v2330 = vadd.f32 %v2217, %v2329
    %v2331 = vpop.f32.mrb[0].mxu0
    %2332 = vdwg.mxu0
    %2333 = vmatprep.subr.mxu0 0.0
    %v2334 = vand.u32 %v249, 4294901760
    %v2335 = vsub.f32 %v249, %v2334
    %v2336 = vand.u32 %v2335, 4294901760
    %2337 = vmatpush1.msra.mxu0 %v2336
    %2338 = vmatprep.subr.mxu0 0.0
    %v2339 = vand.u32 %v250, 4294901760
    %v2340 = vsub.f32 %v250, %v2339
    %v2341 = vand.u32 %v2340, 4294901760
    %2342 = vmatpush1.msra.mxu0 %v2341
    %2343 = vmatprep.subr.mxu0 0.0
    %v2344 = vand.u32 %v251, 4294901760
    %v2345 = vsub.f32 %v251, %v2344
    %v2346 = vand.u32 %v2345, 4294901760
    %2347 = vmatpush1.msra.mxu0 %v2346
    %2348 = vmatprep.subr.mxu0 0.0
    %v2349 = vand.u32 %v252, 4294901760
    %v2350 = vsub.f32 %v252, %v2349
    %v2351 = vand.u32 %v2350, 4294901760
    %2352 = vmatpush1.msra.mxu0 %v2351
    %2353 = vmatprep.subr.mxu0 0.0
    %v2354 = vand.u32 %v253, 4294901760
    %v2355 = vsub.f32 %v253, %v2354
    %v2356 = vand.u32 %v2355, 4294901760
    %2357 = vmatpush1.msra.mxu0 %v2356
    %2358 = vmatprep.subr.mxu0 0.0
    %v2359 = vand.u32 %v254, 4294901760
    %v2360 = vsub.f32 %v254, %v2359
    %v2361 = vand.u32 %v2360, 4294901760
    %2362 = vmatpush1.msra.mxu0 %v2361
    %2363 = vmatprep.subr.mxu0 0.0
    %v2364 = vand.u32 %v255, 4294901760
    %v2365 = vsub.f32 %v255, %v2364
    %v2366 = vand.u32 %v2365, 4294901760
    %2367 = vmatpush1.msra.mxu0 %v2366
    %2368 = vmatprep.subr.mxu0 0.0
    %v2369 = vand.u32 %v256, 4294901760
    %v2370 = vsub.f32 %v256, %v2369
    %v2371 = vand.u32 %v2370, 4294901760
    %2372 = vmatpush1.msra.mxu0 %v2371
    %2373 = vmatprep.subr.mxu0 0.0
    %v2374 = vand.u32 %v257, 4294901760
    %v2375 = vsub.f32 %v257, %v2374
    %v2376 = vand.u32 %v2375, 4294901760
    %2377 = vmatpush1.msra.mxu0 %v2376
    %2378 = vmatprep.subr.mxu0 0.0
    %v2379 = vand.u32 %v258, 4294901760
    %v2380 = vsub.f32 %v258, %v2379
    %v2381 = vand.u32 %v2380, 4294901760
    %2382 = vmatpush1.msra.mxu0 %v2381
    %2383 = vmatprep.subr.mxu0 0.0
    %v2384 = vand.u32 %v259, 4294901760
    %v2385 = vsub.f32 %v259, %v2384
    %v2386 = vand.u32 %v2385, 4294901760
    %2387 = vmatpush1.msra.mxu0 %v2386
    %2388 = vmatprep.subr.mxu0 0.0
    %v2389 = vand.u32 %v260, 4294901760
    %v2390 = vsub.f32 %v260, %v2389
    %v2391 = vand.u32 %v2390, 4294901760
    %2392 = vmatpush1.msra.mxu0 %v2391
    %2393 = vmatprep.subr.mxu0 0.0
    %v2394 = vand.u32 %v261, 4294901760
    %v2395 = vsub.f32 %v261, %v2394
    %v2396 = vand.u32 %v2395, 4294901760
    %2397 = vmatpush1.msra.mxu0 %v2396
    %2398 = vmatprep.subr.mxu0 0.0
    %v2399 = vand.u32 %v262, 4294901760
    %v2400 = vsub.f32 %v262, %v2399
    %v2401 = vand.u32 %v2400, 4294901760
    %2402 = vmatpush1.msra.mxu0 %v2401
    %2403 = vmatprep.subr.mxu0 0.0
    %v2404 = vand.u32 %v263, 4294901760
    %v2405 = vsub.f32 %v263, %v2404
    %v2406 = vand.u32 %v2405, 4294901760
    %2407 = vmatpush1.msra.mxu0 %v2406
    %2408 = vmatprep.subr.mxu0 0.0
    %v2409 = vand.u32 %v264, 4294901760
    %v2410 = vsub.f32 %v264, %v2409
    %v2411 = vand.u32 %v2410, 4294901760
    %2412 = vmatpush1.msra.mxu0 %v2411
    %2413 = vmatprep.subr.mxu0 0.0
    %2414 = vmatpush1.msra.mxu0 0.0
    %2415 = vmatprep.subr.mxu0 0.0
    %2416 = vmatpush1.msra.mxu0 0.0
    %2417 = vmatprep.subr.mxu0 0.0
    %2418 = vmatpush1.msra.mxu0 0.0
    %2419 = vmatprep.subr.mxu0 0.0
    %2420 = vmatpush1.msra.mxu0 0.0
    %2421 = vmatprep.subr.mxu0 0.0
    %2422 = vmatpush1.msra.mxu0 0.0
    %2423 = vmatprep.subr.mxu0 0.0
    %2424 = vmatpush1.msra.mxu0 0.0
    %2425 = vmatprep.subr.mxu0 0.0
    %2426 = vmatpush1.msra.mxu0 0.0
    %2427 = vmatprep.subr.mxu0 0.0
    %2428 = vmatpush1.msra.mxu0 0.0
    %2429 = vmatprep.subr.mxu0 0.0
    %2430 = vmatpush1.msra.mxu0 0.0
    %2431 = vmatprep.subr.mxu0 0.0
    %2432 = vmatpush1.msra.mxu0 0.0
    %2433 = vmatprep.subr.mxu0 0.0
    %2434 = vmatpush1.msra.mxu0 0.0
    %2435 = vmatprep.subr.mxu0 0.0
    %2436 = vmatpush1.msra.mxu0 0.0
    %2437 = vmatprep.subr.mxu0 0.0
    %2438 = vmatpush1.msra.mxu0 0.0
    %2439 = vmatprep.subr.mxu0 0.0
    %2440 = vmatpush1.msra.mxu0 0.0
    %2441 = vmatprep.subr.mxu0 0.0
    %2442 = vmatpush1.msra.mxu0 0.0
    %2443 = vmatprep.subr.mxu0 0.0
    %2444 = vmatpush1.msra.mxu0 0.0
    %2445 = vmatprep.mubr.f32.mxu0 0.0
    %v2446 = vand.u32 %v81, 4294901760
    %2447 = vmatmul.mubr.f32.gmra.mrb[0].mxu0 %v2446
    %v2448 = vpop.f32.mrb[0].mxu0
    %v2449 = vadd.f32 %v2306, %v2448
    %v2450 = vpop.f32.mrb[0].mxu0
    %2451 = vmatprep.mubr.f32.mxu0 0.0
    %v2452 = vand.u32 %v82, 4294901760
    %2453 = vmatmul.mubr.f32.gmra.mrb[0].mxu0 %v2452
    %v2454 = vpop.f32.mrb[0].mxu0
    %v2455 = vadd.f32 %v2314, %v2454
    %v2456 = vpop.f32.mrb[0].mxu0
    %2457 = vmatprep.mubr.f32.mxu0 0.0
    %v2458 = vand.u32 %v83, 4294901760
    %2459 = vmatmul.mubr.f32.gmra.mrb[0].mxu0 %v2458
    %v2460 = vpop.f32.mrb[0].mxu0
    %v2461 = vadd.f32 %v2322, %v2460
    %v2462 = vpop.f32.mrb[0].mxu0
    %2463 = vmatprep.mubr.f32.mxu0 0.0
    %v2464 = vand.u32 %v84, 4294901760
    %2465 = vmatmul.mubr.f32.gmra.mrb[0].mxu0 %v2464
    %v2466 = vpop.f32.mrb[0].mxu0
    %v2467 = vadd.f32 %v2330, %v2466
    %v2468 = vpop.f32.mrb[0].mxu0
    %2469 = vdwg.mxu0
    %2470 = vmatprep.subr.mxu0 0.0
    %v2471 = vand.u32 %v249, 4294901760
    %2472 = vmatpush1.msra.mxu0 %v2471
    %2473 = vmatprep.subr.mxu0 0.0
    %v2474 = vand.u32 %v250, 4294901760
    %2475 = vmatpush1.msra.mxu0 %v2474
    %2476 = vmatprep.subr.mxu0 0.0
    %v2477 = vand.u32 %v251, 4294901760
    %2478 = vmatpush1.msra.mxu0 %v2477
    %2479 = vmatprep.subr.mxu0 0.0
    %v2480 = vand.u32 %v252, 4294901760
    %2481 = vmatpush1.msra.mxu0 %v2480
    %2482 = vmatprep.subr.mxu0 0.0
    %v2483 = vand.u32 %v253, 4294901760
    %2484 = vmatpush1.msra.mxu0 %v2483
    %2485 = vmatprep.subr.mxu0 0.0
    %v2486 = vand.u32 %v254, 4294901760
    %2487 = vmatpush1.msra.mxu0 %v2486
    %2488 = vmatprep.subr.mxu0 0.0
    %v2489 = vand.u32 %v255, 4294901760
    %2490 = vmatpush1.msra.mxu0 %v2489
    %2491 = vmatprep.subr.mxu0 0.0
    %v2492 = vand.u32 %v256, 4294901760
    %2493 = vmatpush1.msra.mxu0 %v2492
    %2494 = vmatprep.subr.mxu0 0.0
    %v2495 = vand.u32 %v257, 4294901760
    %2496 = vmatpush1.msra.mxu0 %v2495
    %2497 = vmatprep.subr.mxu0 0.0
    %v2498 = vand.u32 %v258, 4294901760
    %2499 = vmatpush1.msra.mxu0 %v2498
    %2500 = vmatprep.subr.mxu0 0.0
    %v2501 = vand.u32 %v259, 4294901760
    %2502 = vmatpush1.msra.mxu0 %v2501
    %2503 = vmatprep.subr.mxu0 0.0
    %v2504 = vand.u32 %v260, 4294901760
    %2505 = vmatpush1.msra.mxu0 %v2504
    %2506 = vmatprep.subr.mxu0 0.0
    %v2507 = vand.u32 %v261, 4294901760
    %2508 = vmatpush1.msra.mxu0 %v2507
    %2509 = vmatprep.subr.mxu0 0.0
    %v2510 = vand.u32 %v262, 4294901760
    %2511 = vmatpush1.msra.mxu0 %v2510
    %2512 = vmatprep.subr.mxu0 0.0
    %v2513 = vand.u32 %v263, 4294901760
    %2514 = vmatpush1.msra.mxu0 %v2513
    %2515 = vmatprep.subr.mxu0 0.0
    %v2516 = vand.u32 %v264, 4294901760
    %2517 = vmatpush1.msra.mxu0 %v2516
    %2518 = vmatprep.subr.mxu0 0.0
    %2519 = vmatpush1.msra.mxu0 0.0
    %2520 = vmatprep.subr.mxu0 0.0
    %2521 = vmatpush1.msra.mxu0 0.0
    %2522 = vmatprep.subr.mxu0 0.0
    %2523 = vmatpush1.msra.mxu0 0.0
    %2524 = vmatprep.subr.mxu0 0.0
    %2525 = vmatpush1.msra.mxu0 0.0
    %2526 = vmatprep.subr.mxu0 0.0
    %2527 = vmatpush1.msra.mxu0 0.0
    %2528 = vmatprep.subr.mxu0 0.0
    %2529 = vmatpush1.msra.mxu0 0.0
    %2530 = vmatprep.subr.mxu0 0.0
    %2531 = vmatpush1.msra.mxu0 0.0
    %2532 = vmatprep.subr.mxu0 0.0
    %2533 = vmatpush1.msra.mxu0 0.0
    %2534 = vmatprep.subr.mxu0 0.0
    %2535 = vmatpush1.msra.mxu0 0.0
    %2536 = vmatprep.subr.mxu0 0.0
    %2537 = vmatpush1.msra.mxu0 0.0
    %2538 = vmatprep.subr.mxu0 0.0
    %2539 = vmatpush1.msra.mxu0 0.0
    %2540 = vmatprep.subr.mxu0 0.0
    %2541 = vmatpush1.msra.mxu0 0.0
    %2542 = vmatprep.subr.mxu0 0.0
    %2543 = vmatpush1.msra.mxu0 0.0
    %2544 = vmatprep.subr.mxu0 0.0
    %2545 = vmatpush1.msra.mxu0 0.0
    %2546 = vmatprep.subr.mxu0 0.0
    %2547 = vmatpush1.msra.mxu0 0.0
    %2548 = vmatprep.subr.mxu0 0.0
    %2549 = vmatpush1.msra.mxu0 0.0
    %2550 = vmatprep.mubr.f32.mxu0 0.0
    %v2551 = vand.u32 %v81, 4294901760
    %2552 = vmatmul.mubr.f32.gmra.mrb[0].mxu0 %v2551
    %v2553 = vpop.f32.mrb[0].mxu0
    %v2554 = vadd.f32 %v2449, %v2553
    %v2555 = vpop.f32.mrb[0].mxu0
    %2556 = vmatprep.mubr.f32.mxu0 0.0
    %v2557 = vand.u32 %v82, 4294901760
    %2558 = vmatmul.mubr.f32.gmra.mrb[0].mxu0 %v2557
    %v2559 = vpop.f32.mrb[0].mxu0
    %v2560 = vadd.f32 %v2455, %v2559
    %v2561 = vpop.f32.mrb[0].mxu0
    %2562 = vmatprep.mubr.f32.mxu0 0.0
    %v2563 = vand.u32 %v83, 4294901760
    %2564 = vmatmul.mubr.f32.gmra.mrb[0].mxu0 %v2563
    %v2565 = vpop.f32.mrb[0].mxu0
    %v2566 = vadd.f32 %v2461, %v2565
    %v2567 = vpop.f32.mrb[0].mxu0
    %2568 = vmatprep.mubr.f32.mxu0 0.0
    %v2569 = vand.u32 %v84, 4294901760
    %2570 = vmatmul.mubr.f32.gmra.mrb[0].mxu0 %v2569
    %v2571 = vpop.f32.mrb[0].mxu0
    %v2572 = vadd.f32 %v2467, %v2571
    %v2573 = vpop.f32.mrb[0].mxu0
    %2574 = vdwg.mxu0
    %2575 = vmatprep.subr.mxu0 0.0
    %v2576 = vand.u32 %v249, 4294901760
    %2577 = vmatpush1.msra.mxu0 %v2576
    %2578 = vmatprep.subr.mxu0 0.0
    %v2579 = vand.u32 %v250, 4294901760
    %2580 = vmatpush1.msra.mxu0 %v2579
    %2581 = vmatprep.subr.mxu0 0.0
    %v2582 = vand.u32 %v251, 4294901760
    %2583 = vmatpush1.msra.mxu0 %v2582
    %2584 = vmatprep.subr.mxu0 0.0
    %v2585 = vand.u32 %v252, 4294901760
    %2586 = vmatpush1.msra.mxu0 %v2585
    %2587 = vmatprep.subr.mxu0 0.0
    %v2588 = vand.u32 %v253, 4294901760
    %2589 = vmatpush1.msra.mxu0 %v2588
    %2590 = vmatprep.subr.mxu0 0.0
    %v2591 = vand.u32 %v254, 4294901760
    %2592 = vmatpush1.msra.mxu0 %v2591
    %2593 = vmatprep.subr.mxu0 0.0
    %v2594 = vand.u32 %v255, 4294901760
    %2595 = vmatpush1.msra.mxu0 %v2594
    %2596 = vmatprep.subr.mxu0 0.0
    %v2597 = vand.u32 %v256, 4294901760
    %2598 = vmatpush1.msra.mxu0 %v2597
    %2599 = vmatprep.subr.mxu0 0.0
    %v2600 = vand.u32 %v257, 4294901760
    %2601 = vmatpush1.msra.mxu0 %v2600
    %2602 = vmatprep.subr.mxu0 0.0
    %v2603 = vand.u32 %v258, 4294901760
    %2604 = vmatpush1.msra.mxu0 %v2603
    %2605 = vmatprep.subr.mxu0 0.0
    %v2606 = vand.u32 %v259, 4294901760
    %2607 = vmatpush1.msra.mxu0 %v2606
    %2608 = vmatprep.subr.mxu0 0.0
    %v2609 = vand.u32 %v260, 4294901760
    %2610 = vmatpush1.msra.mxu0 %v2609
    %2611 = vmatprep.subr.mxu0 0.0
    %v2612 = vand.u32 %v261, 4294901760
    %2613 = vmatpush1.msra.mxu0 %v2612
    %2614 = vmatprep.subr.mxu0 0.0
    %v2615 = vand.u32 %v262, 4294901760
    %2616 = vmatpush1.msra.mxu0 %v2615
    %2617 = vmatprep.subr.mxu0 0.0
    %v2618 = vand.u32 %v263, 4294901760
    %2619 = vmatpush1.msra.mxu0 %v2618
    %2620 = vmatprep.subr.mxu0 0.0
    %v2621 = vand.u32 %v264, 4294901760
    %2622 = vmatpush1.msra.mxu0 %v2621
    %2623 = vmatprep.subr.mxu0 0.0
    %2624 = vmatpush1.msra.mxu0 0.0
    %2625 = vmatprep.subr.mxu0 0.0
    %2626 = vmatpush1.msra.mxu0 0.0
    %2627 = vmatprep.subr.mxu0 0.0
    %2628 = vmatpush1.msra.mxu0 0.0
    %2629 = vmatprep.subr.mxu0 0.0
    %2630 = vmatpush1.msra.mxu0 0.0
    %2631 = vmatprep.subr.mxu0 0.0
    %2632 = vmatpush1.msra.mxu0 0.0
    %2633 = vmatprep.subr.mxu0 0.0
    %2634 = vmatpush1.msra.mxu0 0.0
    %2635 = vmatprep.subr.mxu0 0.0
    %2636 = vmatpush1.msra.mxu0 0.0
    %2637 = vmatprep.subr.mxu0 0.0
    %2638 = vmatpush1.msra.mxu0 0.0
    %2639 = vmatprep.subr.mxu0 0.0
    %2640 = vmatpush1.msra.mxu0 0.0
    %2641 = vmatprep.subr.mxu0 0.0
    %2642 = vmatpush1.msra.mxu0 0.0
    %2643 = vmatprep.subr.mxu0 0.0
    %2644 = vmatpush1.msra.mxu0 0.0
    %2645 = vmatprep.subr.mxu0 0.0
    %2646 = vmatpush1.msra.mxu0 0.0
    %2647 = vmatprep.subr.mxu0 0.0
    %2648 = vmatpush1.msra.mxu0 0.0
    %2649 = vmatprep.subr.mxu0 0.0
    %2650 = vmatpush1.msra.mxu0 0.0
    %2651 = vmatprep.subr.mxu0 0.0
    %2652 = vmatpush1.msra.mxu0 0.0
    %2653 = vmatprep.subr.mxu0 0.0
    %2654 = vmatpush1.msra.mxu0 0.0
    %2655 = vmatprep.mubr.f32.mxu0 0.0
    %v2656 = vand.u32 %v85, 4294901760
    %v2657 = vsub.f32 %v85, %v2656
    %v2658 = vand.u32 %v2657, 4294901760
    %v2659 = vsub.f32 %v2657, %v2658
    %v2660 = vand.u32 %v2659, 4294901760
    %2661 = vmatmul.mubr.f32.gmra.mrb[0].mxu0 %v2660
    %v2662 = vpop.f32.mrb[0].mxu0
    %v2663 = vadd.f32 0.0, %v2662
    %v2664 = vpop.f32.mrb[0].mxu0
    %2665 = vmatprep.mubr.f32.mxu0 0.0
    %v2666 = vand.u32 %v86, 4294901760
    %v2667 = vsub.f32 %v86, %v2666
    %v2668 = vand.u32 %v2667, 4294901760
    %v2669 = vsub.f32 %v2667, %v2668
    %v2670 = vand.u32 %v2669, 4294901760
    %2671 = vmatmul.mubr.f32.gmra.mrb[0].mxu0 %v2670
    %v2672 = vpop.f32.mrb[0].mxu0
    %v2673 = vadd.f32 0.0, %v2672
    %v2674 = vpop.f32.mrb[0].mxu0
    %2675 = vmatprep.mubr.f32.mxu0 0.0
    %v2676 = vand.u32 %v87, 4294901760
    %v2677 = vsub.f32 %v87, %v2676
    %v2678 = vand.u32 %v2677, 4294901760
    %v2679 = vsub.f32 %v2677, %v2678
    %v2680 = vand.u32 %v2679, 4294901760
    %2681 = vmatmul.mubr.f32.gmra.mrb[0].mxu0 %v2680
    %v2682 = vpop.f32.mrb[0].mxu0
    %v2683 = vadd.f32 0.0, %v2682
    %v2684 = vpop.f32.mrb[0].mxu0
    %2685 = vmatprep.mubr.f32.mxu0 0.0
    %v2686 = vand.u32 %v88, 4294901760
    %v2687 = vsub.f32 %v88, %v2686
    %v2688 = vand.u32 %v2687, 4294901760
    %v2689 = vsub.f32 %v2687, %v2688
    %v2690 = vand.u32 %v2689, 4294901760
    %2691 = vmatmul.mubr.f32.gmra.mrb[0].mxu0 %v2690
    %v2692 = vpop.f32.mrb[0].mxu0
    %v2693 = vadd.f32 0.0, %v2692
    %v2694 = vpop.f32.mrb[0].mxu0
    %2695 = vdwg.mxu0
    %2696 = vmatprep.subr.mxu0 0.0
    %v2697 = vand.u32 %v249, 4294901760
    %v2698 = vsub.f32 %v249, %v2697
    %v2699 = vand.u32 %v2698, 4294901760
    %v2700 = vsub.f32 %v2698, %v2699
    %v2701 = vand.u32 %v2700, 4294901760
    %2702 = vmatpush1.msra.mxu0 %v2701
    %2703 = vmatprep.subr.mxu0 0.0
    %v2704 = vand.u32 %v250, 4294901760
    %v2705 = vsub.f32 %v250, %v2704
    %v2706 = vand.u32 %v2705, 4294901760
    %v2707 = vsub.f32 %v2705, %v2706
    %v2708 = vand.u32 %v2707, 4294901760
    %2709 = vmatpush1.msra.mxu0 %v2708
    %2710 = vmatprep.subr.mxu0 0.0
    %v2711 = vand.u32 %v251, 4294901760
    %v2712 = vsub.f32 %v251, %v2711
    %v2713 = vand.u32 %v2712, 4294901760
    %v2714 = vsub.f32 %v2712, %v2713
    %v2715 = vand.u32 %v2714, 4294901760
    %2716 = vmatpush1.msra.mxu0 %v2715
    %2717 = vmatprep.subr.mxu0 0.0
    %v2718 = vand.u32 %v252, 4294901760
    %v2719 = vsub.f32 %v252, %v2718
    %v2720 = vand.u32 %v2719, 4294901760
    %v2721 = vsub.f32 %v2719, %v2720
    %v2722 = vand.u32 %v2721, 4294901760
    %2723 = vmatpush1.msra.mxu0 %v2722
    %2724 = vmatprep.subr.mxu0 0.0
    %v2725 = vand.u32 %v253, 4294901760
    %v2726 = vsub.f32 %v253, %v2725
    %v2727 = vand.u32 %v2726, 4294901760
    %v2728 = vsub.f32 %v2726, %v2727
    %v2729 = vand.u32 %v2728, 4294901760
    %2730 = vmatpush1.msra.mxu0 %v2729
    %2731 = vmatprep.subr.mxu0 0.0
    %v2732 = vand.u32 %v254, 4294901760
    %v2733 = vsub.f32 %v254, %v2732
    %v2734 = vand.u32 %v2733, 4294901760
    %v2735 = vsub.f32 %v2733, %v2734
    %v2736 = vand.u32 %v2735, 4294901760
    %2737 = vmatpush1.msra.mxu0 %v2736
    %2738 = vmatprep.subr.mxu0 0.0
    %v2739 = vand.u32 %v255, 4294901760
    %v2740 = vsub.f32 %v255, %v2739
    %v2741 = vand.u32 %v2740, 4294901760
    %v2742 = vsub.f32 %v2740, %v2741
    %v2743 = vand.u32 %v2742, 4294901760
    %2744 = vmatpush1.msra.mxu0 %v2743
    %2745 = vmatprep.subr.mxu0 0.0
    %v2746 = vand.u32 %v256, 4294901760
    %v2747 = vsub.f32 %v256, %v2746
    %v2748 = vand.u32 %v2747, 4294901760
    %v2749 = vsub.f32 %v2747, %v2748
    %v2750 = vand.u32 %v2749, 4294901760
    %2751 = vmatpush1.msra.mxu0 %v2750
    %2752 = vmatprep.subr.mxu0 0.0
    %v2753 = vand.u32 %v257, 4294901760
    %v2754 = vsub.f32 %v257, %v2753
    %v2755 = vand.u32 %v2754, 4294901760
    %v2756 = vsub.f32 %v2754, %v2755
    %v2757 = vand.u32 %v2756, 4294901760
    %2758 = vmatpush1.msra.mxu0 %v2757
    %2759 = vmatprep.subr.mxu0 0.0
    %v2760 = vand.u32 %v258, 4294901760
    %v2761 = vsub.f32 %v258, %v2760
    %v2762 = vand.u32 %v2761, 4294901760
    %v2763 = vsub.f32 %v2761, %v2762
    %v2764 = vand.u32 %v2763, 4294901760
    %2765 = vmatpush1.msra.mxu0 %v2764
    %2766 = vmatprep.subr.mxu0 0.0
    %v2767 = vand.u32 %v259, 4294901760
    %v2768 = vsub.f32 %v259, %v2767
    %v2769 = vand.u32 %v2768, 4294901760
    %v2770 = vsub.f32 %v2768, %v2769
    %v2771 = vand.u32 %v2770, 4294901760
    %2772 = vmatpush1.msra.mxu0 %v2771
    %2773 = vmatprep.subr.mxu0 0.0
    %v2774 = vand.u32 %v260, 4294901760
    %v2775 = vsub.f32 %v260, %v2774
    %v2776 = vand.u32 %v2775, 4294901760
    %v2777 = vsub.f32 %v2775, %v2776
    %v2778 = vand.u32 %v2777, 4294901760
    %2779 = vmatpush1.msra.mxu0 %v2778
    %2780 = vmatprep.subr.mxu0 0.0
    %v2781 = vand.u32 %v261, 4294901760
    %v2782 = vsub.f32 %v261, %v2781
    %v2783 = vand.u32 %v2782, 4294901760
    %v2784 = vsub.f32 %v2782, %v2783
    %v2785 = vand.u32 %v2784, 4294901760
    %2786 = vmatpush1.msra.mxu0 %v2785
    %2787 = vmatprep.subr.mxu0 0.0
    %v2788 = vand.u32 %v262, 4294901760
    %v2789 = vsub.f32 %v262, %v2788
    %v2790 = vand.u32 %v2789, 4294901760
    %v2791 = vsub.f32 %v2789, %v2790
    %v2792 = vand.u32 %v2791, 4294901760
    %2793 = vmatpush1.msra.mxu0 %v2792
    %2794 = vmatprep.subr.mxu0 0.0
    %v2795 = vand.u32 %v263, 4294901760
    %v2796 = vsub.f32 %v263, %v2795
    %v2797 = vand.u32 %v2796, 4294901760
    %v2798 = vsub.f32 %v2796, %v2797
    %v2799 = vand.u32 %v2798, 4294901760
    %2800 = vmatpush1.msra.mxu0 %v2799
    %2801 = vmatprep.subr.mxu0 0.0
    %v2802 = vand.u32 %v264, 4294901760
    %v2803 = vsub.f32 %v264, %v2802
    %v2804 = vand.u32 %v2803, 4294901760
    %v2805 = vsub.f32 %v2803, %v2804
    %v2806 = vand.u32 %v2805, 4294901760
    %2807 = vmatpush1.msra.mxu0 %v2806
    %2808 = vmatprep.subr.mxu0 0.0
    %2809 = vmatpush1.msra.mxu0 0.0
    %2810 = vmatprep.subr.mxu0 0.0
    %2811 = vmatpush1.msra.mxu0 0.0
    %2812 = vmatprep.subr.mxu0 0.0
    %2813 = vmatpush1.msra.mxu0 0.0
    %2814 = vmatprep.subr.mxu0 0.0
    %2815 = vmatpush1.msra.mxu0 0.0
    %2816 = vmatprep.subr.mxu0 0.0
    %2817 = vmatpush1.msra.mxu0 0.0
    %2818 = vmatprep.subr.mxu0 0.0
    %2819 = vmatpush1.msra.mxu0 0.0
    %2820 = vmatprep.subr.mxu0 0.0
    %2821 = vmatpush1.msra.mxu0 0.0
    %2822 = vmatprep.subr.mxu0 0.0
    %2823 = vmatpush1.msra.mxu0 0.0
    %2824 = vmatprep.subr.mxu0 0.0
    %2825 = vmatpush1.msra.mxu0 0.0
    %2826 = vmatprep.subr.mxu0 0.0
    %2827 = vmatpush1.msra.mxu0 0.0
    %2828 = vmatprep.subr.mxu0 0.0
    %2829 = vmatpush1.msra.mxu0 0.0
    %2830 = vmatprep.subr.mxu0 0.0
    %2831 = vmatpush1.msra.mxu0 0.0
    %2832 = vmatprep.subr.mxu0 0.0
    %2833 = vmatpush1.msra.mxu0 0.0
    %2834 = vmatprep.subr.mxu0 0.0
    %2835 = vmatpush1.msra.mxu0 0.0
    %2836 = vmatprep.subr.mxu0 0.0
    %2837 = vmatpush1.msra.mxu0 0.0
    %2838 = vmatprep.subr.mxu0 0.0
    %2839 = vmatpush1.msra.mxu0 0.0
    %2840 = vmatprep.mubr.f32.mxu0 0.0
    %v2841 = vand.u32 %v85, 4294901760
    %2842 = vmatmul.mubr.f32.gmra.mrb[0].mxu0 %v2841
    %v2843 = vpop.f32.mrb[0].mxu0
    %v2844 = vadd.f32 %v2663, %v2843
    %v2845 = vpop.f32.mrb[0].mxu0
    %2846 = vmatprep.mubr.f32.mxu0 0.0
    %v2847 = vand.u32 %v86, 4294901760
    %2848 = vmatmul.mubr.f32.gmra.mrb[0].mxu0 %v2847
    %v2849 = vpop.f32.mrb[0].mxu0
    %v2850 = vadd.f32 %v2673, %v2849
    %v2851 = vpop.f32.mrb[0].mxu0
    %2852 = vmatprep.mubr.f32.mxu0 0.0
    %v2853 = vand.u32 %v87, 4294901760
    %2854 = vmatmul.mubr.f32.gmra.mrb[0].mxu0 %v2853
    %v2855 = vpop.f32.mrb[0].mxu0
    %v2856 = vadd.f32 %v2683, %v2855
    %v2857 = vpop.f32.mrb[0].mxu0
    %2858 = vmatprep.mubr.f32.mxu0 0.0
    %v2859 = vand.u32 %v88, 4294901760
    %2860 = vmatmul.mubr.f32.gmra.mrb[0].mxu0 %v2859
    %v2861 = vpop.f32.mrb[0].mxu0
    %v2862 = vadd.f32 %v2693, %v2861
    %v2863 = vpop.f32.mrb[0].mxu0
    %2864 = vdwg.mxu0
    %2865 = vmatprep.subr.mxu0 0.0
    %v2866 = vand.u32 %v249, 4294901760
    %v2867 = vsub.f32 %v249, %v2866
    %2868 = vmatpush1.msra.mxu0 %v2867
    %2869 = vmatprep.subr.mxu0 0.0
    %v2870 = vand.u32 %v250, 4294901760
    %v2871 = vsub.f32 %v250, %v2870
    %2872 = vmatpush1.msra.mxu0 %v2871
    %2873 = vmatprep.subr.mxu0 0.0
    %v2874 = vand.u32 %v251, 4294901760
    %v2875 = vsub.f32 %v251, %v2874
    %2876 = vmatpush1.msra.mxu0 %v2875
    %2877 = vmatprep.subr.mxu0 0.0
    %v2878 = vand.u32 %v252, 4294901760
    %v2879 = vsub.f32 %v252, %v2878
    %2880 = vmatpush1.msra.mxu0 %v2879
    %2881 = vmatprep.subr.mxu0 0.0
    %v2882 = vand.u32 %v253, 4294901760
    %v2883 = vsub.f32 %v253, %v2882
    %2884 = vmatpush1.msra.mxu0 %v2883
    %2885 = vmatprep.subr.mxu0 0.0
    %v2886 = vand.u32 %v254, 4294901760
    %v2887 = vsub.f32 %v254, %v2886
    %2888 = vmatpush1.msra.mxu0 %v2887
    %2889 = vmatprep.subr.mxu0 0.0
    %v2890 = vand.u32 %v255, 4294901760
    %v2891 = vsub.f32 %v255, %v2890
    %2892 = vmatpush1.msra.mxu0 %v2891
    %2893 = vmatprep.subr.mxu0 0.0
    %v2894 = vand.u32 %v256, 4294901760
    %v2895 = vsub.f32 %v256, %v2894
    %2896 = vmatpush1.msra.mxu0 %v2895
    %2897 = vmatprep.subr.mxu0 0.0
    %v2898 = vand.u32 %v257, 4294901760
    %v2899 = vsub.f32 %v257, %v2898
    %2900 = vmatpush1.msra.mxu0 %v2899
    %2901 = vmatprep.subr.mxu0 0.0
    %v2902 = vand.u32 %v258, 4294901760
    %v2903 = vsub.f32 %v258, %v2902
    %2904 = vmatpush1.msra.mxu0 %v2903
    %2905 = vmatprep.subr.mxu0 0.0
    %v2906 = vand.u32 %v259, 4294901760
    %v2907 = vsub.f32 %v259, %v2906
    %2908 = vmatpush1.msra.mxu0 %v2907
    %2909 = vmatprep.subr.mxu0 0.0
    %v2910 = vand.u32 %v260, 4294901760
    %v2911 = vsub.f32 %v260, %v2910
    %2912 = vmatpush1.msra.mxu0 %v2911
    %2913 = vmatprep.subr.mxu0 0.0
    %v2914 = vand.u32 %v261, 4294901760
    %v2915 = vsub.f32 %v261, %v2914
    %2916 = vmatpush1.msra.mxu0 %v2915
    %2917 = vmatprep.subr.mxu0 0.0
    %v2918 = vand.u32 %v262, 4294901760
    %v2919 = vsub.f32 %v262, %v2918
    %2920 = vmatpush1.msra.mxu0 %v2919
    %2921 = vmatprep.subr.mxu0 0.0
    %v2922 = vand.u32 %v263, 4294901760
    %v2923 = vsub.f32 %v263, %v2922
    %2924 = vmatpush1.msra.mxu0 %v2923
    %2925 = vmatprep.subr.mxu0 0.0
    %v2926 = vand.u32 %v264, 4294901760
    %v2927 = vsub.f32 %v264, %v2926
    %2928 = vmatpush1.msra.mxu0 %v2927
    %2929 = vmatprep.subr.mxu0 0.0
    %2930 = vmatpush1.msra.mxu0 0.0
    %2931 = vmatprep.subr.mxu0 0.0
    %2932 = vmatpush1.msra.mxu0 0.0
    %2933 = vmatprep.subr.mxu0 0.0
    %2934 = vmatpush1.msra.mxu0 0.0
    %2935 = vmatprep.subr.mxu0 0.0
    %2936 = vmatpush1.msra.mxu0 0.0
    %2937 = vmatprep.subr.mxu0 0.0
    %2938 = vmatpush1.msra.mxu0 0.0
    %2939 = vmatprep.subr.mxu0 0.0
    %2940 = vmatpush1.msra.mxu0 0.0
    %2941 = vmatprep.subr.mxu0 0.0
    %2942 = vmatpush1.msra.mxu0 0.0
    %2943 = vmatprep.subr.mxu0 0.0
    %2944 = vmatpush1.msra.mxu0 0.0
    %2945 = vmatprep.subr.mxu0 0.0
    %2946 = vmatpush1.msra.mxu0 0.0
    %2947 = vmatprep.subr.mxu0 0.0
    %2948 = vmatpush1.msra.mxu0 0.0
    %2949 = vmatprep.subr.mxu0 0.0
    %2950 = vmatpush1.msra.mxu0 0.0
    %2951 = vmatprep.subr.mxu0 0.0
    %2952 = vmatpush1.msra.mxu0 0.0
    %2953 = vmatprep.subr.mxu0 0.0
    %2954 = vmatpush1.msra.mxu0 0.0
    %2955 = vmatprep.subr.mxu0 0.0
    %2956 = vmatpush1.msra.mxu0 0.0
    %2957 = vmatprep.subr.mxu0 0.0
    %2958 = vmatpush1.msra.mxu0 0.0
    %2959 = vmatprep.subr.mxu0 0.0
    %2960 = vmatpush1.msra.mxu0 0.0
    %2961 = vmatprep.mubr.f32.mxu0 0.0
    %v2962 = vand.u32 %v85, 4294901760
    %v2963 = vsub.f32 %v85, %v2962
    %2964 = vmatmul.mubr.f32.gmra.mrb[0].mxu0 %v2963
    %v2965 = vpop.f32.mrb[0].mxu0
    %v2966 = vadd.f32 %v2844, %v2965
    %v2967 = vpop.f32.mrb[0].mxu0
    %2968 = vmatprep.mubr.f32.mxu0 0.0
    %v2969 = vand.u32 %v86, 4294901760
    %v2970 = vsub.f32 %v86, %v2969
    %2971 = vmatmul.mubr.f32.gmra.mrb[0].mxu0 %v2970
    %v2972 = vpop.f32.mrb[0].mxu0
    %v2973 = vadd.f32 %v2850, %v2972
    %v2974 = vpop.f32.mrb[0].mxu0
    %2975 = vmatprep.mubr.f32.mxu0 0.0
    %v2976 = vand.u32 %v87, 4294901760
    %v2977 = vsub.f32 %v87, %v2976
    %2978 = vmatmul.mubr.f32.gmra.mrb[0].mxu0 %v2977
    %v2979 = vpop.f32.mrb[0].mxu0
    %v2980 = vadd.f32 %v2856, %v2979
    %v2981 = vpop.f32.mrb[0].mxu0
    %2982 = vmatprep.mubr.f32.mxu0 0.0
    %v2983 = vand.u32 %v88, 4294901760
    %v2984 = vsub.f32 %v88, %v2983
    %2985 = vmatmul.mubr.f32.gmra.mrb[0].mxu0 %v2984
    %v2986 = vpop.f32.mrb[0].mxu0
    %v2987 = vadd.f32 %v2862, %v2986
    %v2988 = vpop.f32.mrb[0].mxu0
    %2989 = vdwg.mxu0
    %2990 = vmatprep.subr.mxu0 0.0
    %v2991 = vand.u32 %v249, 4294901760
    %2992 = vmatpush1.msra.mxu0 %v2991
    %2993 = vmatprep.subr.mxu0 0.0
    %v2994 = vand.u32 %v250, 4294901760
    %2995 = vmatpush1.msra.mxu0 %v2994
    %2996 = vmatprep.subr.mxu0 0.0
    %v2997 = vand.u32 %v251, 4294901760
    %2998 = vmatpush1.msra.mxu0 %v2997
    %2999 = vmatprep.subr.mxu0 0.0
    %v3000 = vand.u32 %v252, 4294901760
    %3001 = vmatpush1.msra.mxu0 %v3000
    %3002 = vmatprep.subr.mxu0 0.0
    %v3003 = vand.u32 %v253, 4294901760
    %3004 = vmatpush1.msra.mxu0 %v3003
    %3005 = vmatprep.subr.mxu0 0.0
    %v3006 = vand.u32 %v254, 4294901760
    %3007 = vmatpush1.msra.mxu0 %v3006
    %3008 = vmatprep.subr.mxu0 0.0
    %v3009 = vand.u32 %v255, 4294901760
    %3010 = vmatpush1.msra.mxu0 %v3009
    %3011 = vmatprep.subr.mxu0 0.0
    %v3012 = vand.u32 %v256, 4294901760
    %3013 = vmatpush1.msra.mxu0 %v3012
    %3014 = vmatprep.subr.mxu0 0.0
    %v3015 = vand.u32 %v257, 4294901760
    %3016 = vmatpush1.msra.mxu0 %v3015
    %3017 = vmatprep.subr.mxu0 0.0
    %v3018 = vand.u32 %v258, 4294901760
    %3019 = vmatpush1.msra.mxu0 %v3018
    %3020 = vmatprep.subr.mxu0 0.0
    %v3021 = vand.u32 %v259, 4294901760
    %3022 = vmatpush1.msra.mxu0 %v3021
    %3023 = vmatprep.subr.mxu0 0.0
    %v3024 = vand.u32 %v260, 4294901760
    %3025 = vmatpush1.msra.mxu0 %v3024
    %3026 = vmatprep.subr.mxu0 0.0
    %v3027 = vand.u32 %v261, 4294901760
    %3028 = vmatpush1.msra.mxu0 %v3027
    %3029 = vmatprep.subr.mxu0 0.0
    %v3030 = vand.u32 %v262, 4294901760
    %3031 = vmatpush1.msra.mxu0 %v3030
    %3032 = vmatprep.subr.mxu0 0.0
    %v3033 = vand.u32 %v263, 4294901760
    %3034 = vmatpush1.msra.mxu0 %v3033
    %3035 = vmatprep.subr.mxu0 0.0
    %v3036 = vand.u32 %v264, 4294901760
    %3037 = vmatpush1.msra.mxu0 %v3036
    %3038 = vmatprep.subr.mxu0 0.0
    %3039 = vmatpush1.msra.mxu0 0.0
    %3040 = vmatprep.subr.mxu0 0.0
    %3041 = vmatpush1.msra.mxu0 0.0
    %3042 = vmatprep.subr.mxu0 0.0
    %3043 = vmatpush1.msra.mxu0 0.0
    %3044 = vmatprep.subr.mxu0 0.0
    %3045 = vmatpush1.msra.mxu0 0.0
    %3046 = vmatprep.subr.mxu0 0.0
    %3047 = vmatpush1.msra.mxu0 0.0
    %3048 = vmatprep.subr.mxu0 0.0
    %3049 = vmatpush1.msra.mxu0 0.0
    %3050 = vmatprep.subr.mxu0 0.0
    %3051 = vmatpush1.msra.mxu0 0.0
    %3052 = vmatprep.subr.mxu0 0.0
    %3053 = vmatpush1.msra.mxu0 0.0
    %3054 = vmatprep.subr.mxu0 0.0
    %3055 = vmatpush1.msra.mxu0 0.0
    %3056 = vmatprep.subr.mxu0 0.0
    %3057 = vmatpush1.msra.mxu0 0.0
    %3058 = vmatprep.subr.mxu0 0.0
    %3059 = vmatpush1.msra.mxu0 0.0
    %3060 = vmatprep.subr.mxu0 0.0
    %3061 = vmatpush1.msra.mxu0 0.0
    %3062 = vmatprep.subr.mxu0 0.0
    %3063 = vmatpush1.msra.mxu0 0.0
    %3064 = vmatprep.subr.mxu0 0.0
    %3065 = vmatpush1.msra.mxu0 0.0
    %3066 = vmatprep.subr.mxu0 0.0
    %3067 = vmatpush1.msra.mxu0 0.0
    %3068 = vmatprep.subr.mxu0 0.0
    %3069 = vmatpush1.msra.mxu0 0.0
    %3070 = vmatprep.mubr.f32.mxu0 0.0
    %v3071 = vand.u32 %v85, 4294901760
    %v3072 = vsub.f32 %v85, %v3071
    %v3073 = vand.u32 %v3072, 4294901760
    %3074 = vmatmul.mubr.f32.gmra.mrb[0].mxu0 %v3073
    %v3075 = vpop.f32.mrb[0].mxu0
    %v3076 = vadd.f32 %v2966, %v3075
    %v3077 = vpop.f32.mrb[0].mxu0
    %3078 = vmatprep.mubr.f32.mxu0 0.0
    %v3079 = vand.u32 %v86, 4294901760
    %v3080 = vsub.f32 %v86, %v3079
    %v3081 = vand.u32 %v3080, 4294901760
    %3082 = vmatmul.mubr.f32.gmra.mrb[0].mxu0 %v3081
    %v3083 = vpop.f32.mrb[0].mxu0
    %v3084 = vadd.f32 %v2973, %v3083
    %v3085 = vpop.f32.mrb[0].mxu0
    %3086 = vmatprep.mubr.f32.mxu0 0.0
    %v3087 = vand.u32 %v87, 4294901760
    %v3088 = vsub.f32 %v87, %v3087
    %v3089 = vand.u32 %v3088, 4294901760
    %3090 = vmatmul.mubr.f32.gmra.mrb[0].mxu0 %v3089
    %v3091 = vpop.f32.mrb[0].mxu0
    %v3092 = vadd.f32 %v2980, %v3091
    %v3093 = vpop.f32.mrb[0].mxu0
    %3094 = vmatprep.mubr.f32.mxu0 0.0
    %v3095 = vand.u32 %v88, 4294901760
    %v3096 = vsub.f32 %v88, %v3095
    %v3097 = vand.u32 %v3096, 4294901760
    %3098 = vmatmul.mubr.f32.gmra.mrb[0].mxu0 %v3097
    %v3099 = vpop.f32.mrb[0].mxu0
    %v3100 = vadd.f32 %v2987, %v3099
    %v3101 = vpop.f32.mrb[0].mxu0
    %3102 = vdwg.mxu0
    %3103 = vmatprep.subr.mxu0 0.0
    %v3104 = vand.u32 %v249, 4294901760
    %v3105 = vsub.f32 %v249, %v3104
    %v3106 = vand.u32 %v3105, 4294901760
    %3107 = vmatpush1.msra.mxu0 %v3106
    %3108 = vmatprep.subr.mxu0 0.0
    %v3109 = vand.u32 %v250, 4294901760
    %v3110 = vsub.f32 %v250, %v3109
    %v3111 = vand.u32 %v3110, 4294901760
    %3112 = vmatpush1.msra.mxu0 %v3111
    %3113 = vmatprep.subr.mxu0 0.0
    %v3114 = vand.u32 %v251, 4294901760
    %v3115 = vsub.f32 %v251, %v3114
    %v3116 = vand.u32 %v3115, 4294901760
    %3117 = vmatpush1.msra.mxu0 %v3116
    %3118 = vmatprep.subr.mxu0 0.0
    %v3119 = vand.u32 %v252, 4294901760
    %v3120 = vsub.f32 %v252, %v3119
    %v3121 = vand.u32 %v3120, 4294901760
    %3122 = vmatpush1.msra.mxu0 %v3121
    %3123 = vmatprep.subr.mxu0 0.0
    %v3124 = vand.u32 %v253, 4294901760
    %v3125 = vsub.f32 %v253, %v3124
    %v3126 = vand.u32 %v3125, 4294901760
    %3127 = vmatpush1.msra.mxu0 %v3126
    %3128 = vmatprep.subr.mxu0 0.0
    %v3129 = vand.u32 %v254, 4294901760
    %v3130 = vsub.f32 %v254, %v3129
    %v3131 = vand.u32 %v3130, 4294901760
    %3132 = vmatpush1.msra.mxu0 %v3131
    %3133 = vmatprep.subr.mxu0 0.0
    %v3134 = vand.u32 %v255, 4294901760
    %v3135 = vsub.f32 %v255, %v3134
    %v3136 = vand.u32 %v3135, 4294901760
    %3137 = vmatpush1.msra.mxu0 %v3136
    %3138 = vmatprep.subr.mxu0 0.0
    %v3139 = vand.u32 %v256, 4294901760
    %v3140 = vsub.f32 %v256, %v3139
    %v3141 = vand.u32 %v3140, 4294901760
    %3142 = vmatpush1.msra.mxu0 %v3141
    %3143 = vmatprep.subr.mxu0 0.0
    %v3144 = vand.u32 %v257, 4294901760
    %v3145 = vsub.f32 %v257, %v3144
    %v3146 = vand.u32 %v3145, 4294901760
    %3147 = vmatpush1.msra.mxu0 %v3146
    %3148 = vmatprep.subr.mxu0 0.0
    %v3149 = vand.u32 %v258, 4294901760
    %v3150 = vsub.f32 %v258, %v3149
    %v3151 = vand.u32 %v3150, 4294901760
    %3152 = vmatpush1.msra.mxu0 %v3151
    %3153 = vmatprep.subr.mxu0 0.0
    %v3154 = vand.u32 %v259, 4294901760
    %v3155 = vsub.f32 %v259, %v3154
    %v3156 = vand.u32 %v3155, 4294901760
    %3157 = vmatpush1.msra.mxu0 %v3156
    %3158 = vmatprep.subr.mxu0 0.0
    %v3159 = vand.u32 %v260, 4294901760
    %v3160 = vsub.f32 %v260, %v3159
    %v3161 = vand.u32 %v3160, 4294901760
    %3162 = vmatpush1.msra.mxu0 %v3161
    %3163 = vmatprep.subr.mxu0 0.0
    %v3164 = vand.u32 %v261, 4294901760
    %v3165 = vsub.f32 %v261, %v3164
    %v3166 = vand.u32 %v3165, 4294901760
    %3167 = vmatpush1.msra.mxu0 %v3166
    %3168 = vmatprep.subr.mxu0 0.0
    %v3169 = vand.u32 %v262, 4294901760
    %v3170 = vsub.f32 %v262, %v3169
    %v3171 = vand.u32 %v3170, 4294901760
    %3172 = vmatpush1.msra.mxu0 %v3171
    %3173 = vmatprep.subr.mxu0 0.0
    %v3174 = vand.u32 %v263, 4294901760
    %v3175 = vsub.f32 %v263, %v3174
    %v3176 = vand.u32 %v3175, 4294901760
    %3177 = vmatpush1.msra.mxu0 %v3176
    %3178 = vmatprep.subr.mxu0 0.0
    %v3179 = vand.u32 %v264, 4294901760
    %v3180 = vsub.f32 %v264, %v3179
    %v3181 = vand.u32 %v3180, 4294901760
    %3182 = vmatpush1.msra.mxu0 %v3181
    %3183 = vmatprep.subr.mxu0 0.0
    %3184 = vmatpush1.msra.mxu0 0.0
    %3185 = vmatprep.subr.mxu0 0.0
    %3186 = vmatpush1.msra.mxu0 0.0
    %3187 = vmatprep.subr.mxu0 0.0
    %3188 = vmatpush1.msra.mxu0 0.0
    %3189 = vmatprep.subr.mxu0 0.0
    %3190 = vmatpush1.msra.mxu0 0.0
    %3191 = vmatprep.subr.mxu0 0.0
    %3192 = vmatpush1.msra.mxu0 0.0
    %3193 = vmatprep.subr.mxu0 0.0
    %3194 = vmatpush1.msra.mxu0 0.0
    %3195 = vmatprep.subr.mxu0 0.0
    %3196 = vmatpush1.msra.mxu0 0.0
    %3197 = vmatprep.subr.mxu0 0.0
    %3198 = vmatpush1.msra.mxu0 0.0
    %3199 = vmatprep.subr.mxu0 0.0
    %3200 = vmatpush1.msra.mxu0 0.0
    %3201 = vmatprep.subr.mxu0 0.0
    %3202 = vmatpush1.msra.mxu0 0.0
    %3203 = vmatprep.subr.mxu0 0.0
    %3204 = vmatpush1.msra.mxu0 0.0
    %3205 = vmatprep.subr.mxu0 0.0
    %3206 = vmatpush1.msra.mxu0 0.0
    %3207 = vmatprep.subr.mxu0 0.0
    %3208 = vmatpush1.msra.mxu0 0.0
    %3209 = vmatprep.subr.mxu0 0.0
    %3210 = vmatpush1.msra.mxu0 0.0
    %3211 = vmatprep.subr.mxu0 0.0
    %3212 = vmatpush1.msra.mxu0 0.0
    %3213 = vmatprep.subr.mxu0 0.0
    %3214 = vmatpush1.msra.mxu0 0.0
    %3215 = vmatprep.mubr.f32.mxu0 0.0
    %v3216 = vand.u32 %v85, 4294901760
    %3217 = vmatmul.mubr.f32.gmra.mrb[0].mxu0 %v3216
    %v3218 = vpop.f32.mrb[0].mxu0
    %v3219 = vadd.f32 %v3076, %v3218
    %v3220 = vpop.f32.mrb[0].mxu0
    %3221 = vmatprep.mubr.f32.mxu0 0.0
    %v3222 = vand.u32 %v86, 4294901760
    %3223 = vmatmul.mubr.f32.gmra.mrb[0].mxu0 %v3222
    %v3224 = vpop.f32.mrb[0].mxu0
    %v3225 = vadd.f32 %v3084, %v3224
    %v3226 = vpop.f32.mrb[0].mxu0
    %3227 = vmatprep.mubr.f32.mxu0 0.0
    %v3228 = vand.u32 %v87, 4294901760
    %3229 = vmatmul.mubr.f32.gmra.mrb[0].mxu0 %v3228
    %v3230 = vpop.f32.mrb[0].mxu0
    %v3231 = vadd.f32 %v3092, %v3230
    %v3232 = vpop.f32.mrb[0].mxu0
    %3233 = vmatprep.mubr.f32.mxu0 0.0
    %v3234 = vand.u32 %v88, 4294901760
    %3235 = vmatmul.mubr.f32.gmra.mrb[0].mxu0 %v3234
    %v3236 = vpop.f32.mrb[0].mxu0
    %v3237 = vadd.f32 %v3100, %v3236
    %v3238 = vpop.f32.mrb[0].mxu0
    %3239 = vdwg.mxu0
    %3240 = vmatprep.subr.mxu0 0.0
    %v3241 = vand.u32 %v249, 4294901760
    %3242 = vmatpush1.msra.mxu0 %v3241
    %3243 = vmatprep.subr.mxu0 0.0
    %v3244 = vand.u32 %v250, 4294901760
    %3245 = vmatpush1.msra.mxu0 %v3244
    %3246 = vmatprep.subr.mxu0 0.0
    %v3247 = vand.u32 %v251, 4294901760
    %3248 = vmatpush1.msra.mxu0 %v3247
    %3249 = vmatprep.subr.mxu0 0.0
    %v3250 = vand.u32 %v252, 4294901760
    %3251 = vmatpush1.msra.mxu0 %v3250
    %3252 = vmatprep.subr.mxu0 0.0
    %v3253 = vand.u32 %v253, 4294901760
    %3254 = vmatpush1.msra.mxu0 %v3253
    %3255 = vmatprep.subr.mxu0 0.0
    %v3256 = vand.u32 %v254, 4294901760
    %3257 = vmatpush1.msra.mxu0 %v3256
    %3258 = vmatprep.subr.mxu0 0.0
    %v3259 = vand.u32 %v255, 4294901760
    %3260 = vmatpush1.msra.mxu0 %v3259
    %3261 = vmatprep.subr.mxu0 0.0
    %v3262 = vand.u32 %v256, 4294901760
    %3263 = vmatpush1.msra.mxu0 %v3262
    %3264 = vmatprep.subr.mxu0 0.0
    %v3265 = vand.u32 %v257, 4294901760
    %3266 = vmatpush1.msra.mxu0 %v3265
    %3267 = vmatprep.subr.mxu0 0.0
    %v3268 = vand.u32 %v258, 4294901760
    %3269 = vmatpush1.msra.mxu0 %v3268
    %3270 = vmatprep.subr.mxu0 0.0
    %v3271 = vand.u32 %v259, 4294901760
    %3272 = vmatpush1.msra.mxu0 %v3271
    %3273 = vmatprep.subr.mxu0 0.0
    %v3274 = vand.u32 %v260, 4294901760
    %3275 = vmatpush1.msra.mxu0 %v3274
    %3276 = vmatprep.subr.mxu0 0.0
    %v3277 = vand.u32 %v261, 4294901760
    %3278 = vmatpush1.msra.mxu0 %v3277
    %3279 = vmatprep.subr.mxu0 0.0
    %v3280 = vand.u32 %v262, 4294901760
    %3281 = vmatpush1.msra.mxu0 %v3280
    %3282 = vmatprep.subr.mxu0 0.0
    %v3283 = vand.u32 %v263, 4294901760
    %3284 = vmatpush1.msra.mxu0 %v3283
    %3285 = vmatprep.subr.mxu0 0.0
    %v3286 = vand.u32 %v264, 4294901760
    %3287 = vmatpush1.msra.mxu0 %v3286
    %3288 = vmatprep.subr.mxu0 0.0
    %3289 = vmatpush1.msra.mxu0 0.0
    %3290 = vmatprep.subr.mxu0 0.0
    %3291 = vmatpush1.msra.mxu0 0.0
    %3292 = vmatprep.subr.mxu0 0.0
    %3293 = vmatpush1.msra.mxu0 0.0
    %3294 = vmatprep.subr.mxu0 0.0
    %3295 = vmatpush1.msra.mxu0 0.0
    %3296 = vmatprep.subr.mxu0 0.0
    %3297 = vmatpush1.msra.mxu0 0.0
    %3298 = vmatprep.subr.mxu0 0.0
    %3299 = vmatpush1.msra.mxu0 0.0
    %3300 = vmatprep.subr.mxu0 0.0
    %3301 = vmatpush1.msra.mxu0 0.0
    %3302 = vmatprep.subr.mxu0 0.0
    %3303 = vmatpush1.msra.mxu0 0.0
    %3304 = vmatprep.subr.mxu0 0.0
    %3305 = vmatpush1.msra.mxu0 0.0
    %3306 = vmatprep.subr.mxu0 0.0
    %3307 = vmatpush1.msra.mxu0 0.0
    %3308 = vmatprep.subr.mxu0 0.0
    %3309 = vmatpush1.msra.mxu0 0.0
    %3310 = vmatprep.subr.mxu0 0.0
    %3311 = vmatpush1.msra.mxu0 0.0
    %3312 = vmatprep.subr.mxu0 0.0
    %3313 = vmatpush1.msra.mxu0 0.0
    %3314 = vmatprep.subr.mxu0 0.0
    %3315 = vmatpush1.msra.mxu0 0.0
    %3316 = vmatprep.subr.mxu0 0.0
    %3317 = vmatpush1.msra.mxu0 0.0
    %3318 = vmatprep.subr.mxu0 0.0
    %3319 = vmatpush1.msra.mxu0 0.0
    %3320 = vmatprep.mubr.f32.mxu0 0.0
    %v3321 = vand.u32 %v85, 4294901760
    %3322 = vmatmul.mubr.f32.gmra.mrb[0].mxu0 %v3321
    %v3323 = vpop.f32.mrb[0].mxu0
    %v3324 = vadd.f32 %v3219, %v3323
    %v3325 = vpop.f32.mrb[0].mxu0
    %3326 = vmatprep.mubr.f32.mxu0 0.0
    %v3327 = vand.u32 %v86, 4294901760
    %3328 = vmatmul.mubr.f32.gmra.mrb[0].mxu0 %v3327
    %v3329 = vpop.f32.mrb[0].mxu0
    %v3330 = vadd.f32 %v3225, %v3329
    %v3331 = vpop.f32.mrb[0].mxu0
    %3332 = vmatprep.mubr.f32.mxu0 0.0
    %v3333 = vand.u32 %v87, 4294901760
    %3334 = vmatmul.mubr.f32.gmra.mrb[0].mxu0 %v3333
    %v3335 = vpop.f32.mrb[0].mxu0
    %v3336 = vadd.f32 %v3231, %v3335
    %v3337 = vpop.f32.mrb[0].mxu0
    %3338 = vmatprep.mubr.f32.mxu0 0.0
    %v3339 = vand.u32 %v88, 4294901760
    %3340 = vmatmul.mubr.f32.gmra.mrb[0].mxu0 %v3339
    %v3341 = vpop.f32.mrb[0].mxu0
    %v3342 = vadd.f32 %v3237, %v3341
    %v3343 = vpop.f32.mrb[0].mxu0
    %3344 = vdwg.mxu0
    %v3345 = vmul.f32 %v1014, %v1014
    %v3346 = vmul.f32 %v1020, %v1020
    %v3347 = vmul.f32 %v1026, %v1026
    %v3348 = vmul.f32 %v1032, %v1032
    %v3349 = vadd.f32 %v3345, %v3346
    %v3350 = vadd.f32 %v3349, %v3347
    %v3351 = vadd.f32 %v3350, %v3348
    %v3352 = vrot.slane %v3351, 4
    %v3353 = vadd.f32 %v3351, %v3352
    %v3354 = vrot.slane %v3353, 2
    %v3355 = vadd.f32 %v3353, %v3354
    %v3356 = vrot.slane %v3355, 1
    %v3357 = vadd.f32 %v3355, %v3356
    %v3358 = vmax.f32 %v3357, 1e-24
    %v3359 = vrsqrt.pop %v3358
    %v3360 = vmul.f32 %v1014, %v3359
    %v3361 = vmul.f32 %v1020, %v3359
    %v3362 = vmul.f32 %v1026, %v3359
    %v3363 = vmul.f32 %v1032, %v3359
    %v3364 = vmul.f32 %v1784, %v1784
    %v3365 = vmul.f32 %v1790, %v1790
    %v3366 = vmul.f32 %v1796, %v1796
    %v3367 = vmul.f32 %v1802, %v1802
    %v3368 = vadd.f32 %v3364, %v3365
    %v3369 = vadd.f32 %v3368, %v3366
    %v3370 = vadd.f32 %v3369, %v3367
    %v3371 = vrot.slane %v3370, 4
    %v3372 = vadd.f32 %v3370, %v3371
    %v3373 = vrot.slane %v3372, 2
    %v3374 = vadd.f32 %v3372, %v3373
    %v3375 = vrot.slane %v3374, 1
    %v3376 = vadd.f32 %v3374, %v3375
    %v3377 = vmax.f32 %v3376, 1e-24
    %v3378 = vrsqrt.pop %v3377
    %v3379 = vmul.f32 %v1784, %v3378
    %v3380 = vmul.f32 %v1790, %v3378
    %v3381 = vmul.f32 %v1796, %v3378
    %v3382 = vmul.f32 %v1802, %v3378
    %v3383 = vmul.f32 %v2554, %v2554
    %v3384 = vmul.f32 %v2560, %v2560
    %v3385 = vmul.f32 %v2566, %v2566
    %v3386 = vmul.f32 %v2572, %v2572
    %v3387 = vadd.f32 %v3383, %v3384
    %v3388 = vadd.f32 %v3387, %v3385
    %v3389 = vadd.f32 %v3388, %v3386
    %v3390 = vrot.slane %v3389, 4
    %v3391 = vadd.f32 %v3389, %v3390
    %v3392 = vrot.slane %v3391, 2
    %v3393 = vadd.f32 %v3391, %v3392
    %v3394 = vrot.slane %v3393, 1
    %v3395 = vadd.f32 %v3393, %v3394
    %v3396 = vmax.f32 %v3395, 1e-24
    %v3397 = vrsqrt.pop %v3396
    %v3398 = vmul.f32 %v2554, %v3397
    %v3399 = vmul.f32 %v2560, %v3397
    %v3400 = vmul.f32 %v2566, %v3397
    %v3401 = vmul.f32 %v2572, %v3397
    %v3402 = vmul.f32 %v3324, %v3324
    %v3403 = vmul.f32 %v3330, %v3330
    %v3404 = vmul.f32 %v3336, %v3336
    %v3405 = vmul.f32 %v3342, %v3342
    %v3406 = vadd.f32 %v3402, %v3403
    %v3407 = vadd.f32 %v3406, %v3404
    %v3408 = vadd.f32 %v3407, %v3405
    %v3409 = vrot.slane %v3408, 4
    %v3410 = vadd.f32 %v3408, %v3409
    %v3411 = vrot.slane %v3410, 2
    %v3412 = vadd.f32 %v3410, %v3411
    %v3413 = vrot.slane %v3412, 1
    %v3414 = vadd.f32 %v3412, %v3413
    %v3415 = vmax.f32 %v3414, 1e-24
    %v3416 = vrsqrt.pop %v3415
    %v3417 = vmul.f32 %v3324, %v3416
    %v3418 = vmul.f32 %v3330, %v3416
    %v3419 = vmul.f32 %v3336, %v3416
    %v3420 = vmul.f32 %v3342, %v3416
    %v3421 = vsub.f32 %v3379, %v3360
    %v3422 = vsub.f32 %v3380, %v3361
    %v3423 = vsub.f32 %v3381, %v3362
    %v3424 = vsub.f32 %v3382, %v3363
    %v3425 = vmul.f32 %v3417, %v3421
    %v3426 = vmul.f32 %v3418, %v3422
    %v3427 = vmul.f32 %v3419, %v3423
    %v3428 = vmul.f32 %v3420, %v3424
    %v3429 = vadd.f32 %v3425, %v3426
    %v3430 = vadd.f32 %v3429, %v3427
    %v3431 = vadd.f32 %v3430, %v3428
    %v3432 = vrot.slane %v3431, 4
    %v3433 = vadd.f32 %v3431, %v3432
    %v3434 = vrot.slane %v3433, 2
    %v3435 = vadd.f32 %v3433, %v3434
    %v3436 = vrot.slane %v3435, 1
    %v3437 = vadd.f32 %v3435, %v3436
    %v3438 = vmul.f32 %v3437, %v3417
    %v3439 = vmul.f32 %v3437, %v3418
    %v3440 = vmul.f32 %v3437, %v3419
    %v3441 = vmul.f32 %v3437, %v3420
    %v3442 = vsub.f32 %v3421, %v3438
    %v3443 = vsub.f32 %v3422, %v3439
    %v3444 = vsub.f32 %v3423, %v3440
    %v3445 = vsub.f32 %v3424, %v3441
    %v3446 = vsub.f32 %v3442, %v3398
    %v3447 = vsub.f32 %v3443, %v3399
    %v3448 = vsub.f32 %v3444, %v3400
    %v3449 = vsub.f32 %v3445, %v3401
    %v3450 = vmul.f32 %v3446, %v3446
    %v3451 = vmul.f32 %v3447, %v3447
    %v3452 = vmul.f32 %v3448, %v3448
    %v3453 = vmul.f32 %v3449, %v3449
    %v3454 = vadd.f32 %v3450, %v3451
    %v3455 = vadd.f32 %v3454, %v3452
    %v3456 = vadd.f32 %v3455, %v3453
    %v3457 = vrot.slane %v3456, 4
    %v3458 = vadd.f32 %v3456, %v3457
    %v3459 = vrot.slane %v3458, 2
    %v3460 = vadd.f32 %v3458, %v3459
    %v3461 = vrot.slane %v3460, 1
    %v3462 = vadd.f32 %v3460, %v3461
    %v3463 = vrsqrt.pop %v3462
    %v3464 = vmul.f32 %v3462, %v3463
    %vm3465 = vcmp.eq.f32.partialorder %v3462, inf
    %v3466 = vsel %vm3465, %v3462, %v3464
    %vm3467 = vcmp.eq.f32.partialorder %v3462, 0.0
    %v3468 = vand.u32 %v3462, 2147483648
    %v3469 = vsel %vm3467, %v3468, %v3466
    %3470 = vst [vmem:[#allocation10] sm:$0x1] %v3469
    // Predicated region
    $region42: #{tpu_custom_call.1} parent=1 // pred_check
      _
    $region43: #{tpu_custom_call.1} parent=1 // pred_check_branch
      %3472 = sbr.rel (0) target = $region45
    $region44: #{tpu_custom_call.1} parent=1 // pred_region
      %s3474 = ssub.s32 16, 16
      %3475 = vsyncadd [#allocation4], %s3474
      %s3477 = sshll.u32 [#allocation10], 4
      %s3478 = int_to_ptr.vmem [resolvable:$true] %s3477
      %3480 = dma.vmem_to_hbm [thread:$0]  %s3478, 16, %s6, [#allocation4]
    $region45: #{tpu_custom_call.1} parent=1 // pred_fallthru
      _
    // Predicated region
    $region46: #{tpu_custom_call.1} parent=1 // pred_check
      _
    $region47: #{tpu_custom_call.1} parent=1 // pred_check_branch
      %3482 = sbr.rel (0) target = $region49
    $region48: #{tpu_custom_call.1} parent=1 // pred_region
      %3483 = dma.done [#allocation4], 16
    $region49: #{tpu_custom_call.1} parent=1 // pred_fallthru
      _
    %3484 = vsyncpa [#allocation3], 1
    %3485 = vsyncpa [#allocation6], 1
    %3486 = vsyncpa [#allocation9], 1
    %3487 = vsyncpa [#allocation4], 1

</llo_original>
